<compile_context>
chip_gen: v7x
topology: tpu7x:2x2x1
jax: 0.10.0
libtpu: 0.0.40
codegen_flags: <defaults>
</compile_context>

<pallas_src>
import functools
import math

import jax
import jax.numpy as jnp
from jax.experimental import pallas as pl
from jax.experimental.pallas import tpu as pltpu


# ---------------------------------------------------------------------------
# Capability probe: single-buffered (resident) constant-index weight blocks.
# ---------------------------------------------------------------------------

def _probe_single_buffered_weights():
    """True iff pl.Buffered(1) on a constant-index input BlockSpec works here."""
    try:
        def k(x_ref, o_ref):
            o_ref[...] = x_ref[...] + 1.0

        out = pl.pallas_call(
            k,
            out_shape=jax.ShapeDtypeStruct((8, 128), jnp.float32),
            grid=(2,),
            in_specs=[pl.BlockSpec((8, 128), lambda i: (0, 0),
                                   pipeline_mode=pl.Buffered(1))],
            out_specs=pl.BlockSpec((8, 128), lambda i: (0, 0)),
        )(jnp.zeros((8, 128), jnp.float32))
        return bool(jnp.all(jax.block_until_ready(out) == 1.0))
    except Exception:
        return False


_SINGLE_BUFFER_WEIGHTS = _probe_single_buffered_weights()


def _wspec(shape, index_map):
    """BlockSpec for a weight whose index_map is constant over the grid."""
    if _SINGLE_BUFFER_WEIGHTS:
        return pl.BlockSpec(shape, index_map, pipeline_mode=pl.Buffered(1))
    return pl.BlockSpec(shape, index_map)


def _tile(n, cap):
    """Largest power-of-two-ish divisor of n that is <= cap (else full n)."""
    if n <= cap:
        return n
    for t in (2048, 1024, 512, 256, 128, 64, 32, 16, 8):
        if t <= cap and n % t == 0:
            return t
    return n


def _vmem_limit(est_bytes):
    """Explicit scoped-VMEM limit sized from the block budget (clamped)."""
    return int(min(64 * 2**20, max(32 * 2**20, 2 * est_bytes)))


# ---------------------------------------------------------------------------
# Fused Pallas kernels
# ---------------------------------------------------------------------------

def attn_ln_kernel(x_q_ref, x_kv_ref, mask_ref, wq_ref, bq_ref, wkv_ref, bkv_ref,
                   wo_ref, bo_ref, gamma_ref, beta_ref, o_ref, attn_buf,
                   *, num_heads):
    """Fused MHA(x, x, x, mask) + residual + LayerNorm for one (tq, D) q-tile."""
    xq = x_q_ref[0]                               # (tq, D) bf16 (q rows)
    xkv = x_kv_ref[0]                             # (S,  D) bf16 (full sequence)
    _, D = xq.shape
    H = num_heads
    hd = D // H

    # Q projection for this q-tile; 1/sqrt(hd) already folded into wq / bq.
    q = jnp.dot(xq, wq_ref[...], preferred_element_type=jnp.float32) + bq_ref[...]
    # K / V projection for the full sequence in one fused (D, 2D) MXU pass.
    # TODO(synk): K/V are recomputed per q-tile; for long S use a flash-style
    #             kv-tile loop with online softmax (v7x VMEM) or a separate
    #             KV-projection kernel.
    kv = jnp.dot(xkv, wkv_ref[...], preferred_element_type=jnp.float32) + bkv_ref[...]

    keep = mask_ref[...] != 0                     # (tq, S) bool, int8 input
    dnums = (((1,), (1,)), ((), ()))              # contract last dims, no batch

    # Per-head attention straight from lane slices (no (H,S,hd) relayouts);
    # PV results land in lane slices of a (tq, D) scratch so the output
    # projection below is a single matmul at full contraction depth K = D.
    for h in range(H):
        qh = q[:, h * hd:(h + 1) * hd].astype(jnp.bfloat16)
        kh = kv[:, h * hd:(h + 1) * hd].astype(jnp.bfloat16)
        vh = kv[:, D + h * hd:D + (h + 1) * hd].astype(jnp.bfloat16)
        s = jax.lax.dot_general(qh, kh, dnums,
                                preferred_element_type=jnp.float32)   # (tq, S)
        s = jnp.where(keep, s, jnp.float32(-1e9))
        m = jnp.max(s, axis=-1, keepdims=True)                         # f32 stats
        p = jnp.exp(s - m)
        denom = jnp.maximum(jnp.sum(p, axis=-1, keepdims=True), jnp.float32(1e-30))
        p = p * pl.reciprocal(denom, approx=True)                      # EUP
        attn_buf[:, h * hd:(h + 1) * hd] = jnp.dot(
            p.astype(jnp.bfloat16), vh, preferred_element_type=jnp.float32)

    # Single (tq, D) x (D, D) output projection.
    out = jnp.dot(attn_buf[...].astype(jnp.bfloat16), wo_ref[...],
                  preferred_element_type=jnp.float32) + bo_ref[...]

    # Residual + LayerNorm (f32 statistics), store bf16.
    z = xq.astype(jnp.float32) + out
    mean = jnp.mean(z, axis=-1, keepdims=True)
    var = jnp.mean((z - mean) ** 2, axis=-1, keepdims=True)
    zn = (z - mean) * jax.lax.rsqrt(var + jnp.float32(1e-5))
    o_ref[...] = ((zn * gamma_ref[...] + beta_ref[...]).astype(jnp.bfloat16))[None]


def ff_ln_kernel(x_ref, w1_ref, b1_ref, w2_ref, b2_ref, gamma_ref, beta_ref,
                 o_ref, acc_ref):
    """Fused FeedForward(relu) + residual + LayerNorm; Dff tiled on grid axis 2."""
    ki = pl.program_id(2)

    @pl.when(ki == 0)
    def _():
        acc_ref[...] = jnp.zeros_like(acc_ref)

    x = x_ref[0]                                                    # (ts, D) bf16
    h = jnp.dot(x, w1_ref[...], preferred_element_type=jnp.float32) + b1_ref[...]
    h = jnp.maximum(h, 0.0).astype(jnp.bfloat16)                    # ReLU
    acc_ref[...] += jnp.dot(h, w2_ref[...], preferred_element_type=jnp.float32)

    @pl.when(ki == pl.num_programs(2) - 1)
    def _():
        z = x.astype(jnp.float32) + acc_ref[...] + b2_ref[...]
        mean = jnp.mean(z, axis=-1, keepdims=True)
        var = jnp.mean((z - mean) ** 2, axis=-1, keepdims=True)
        zn = (z - mean) * jax.lax.rsqrt(var + jnp.float32(1e-5))
        o_ref[...] = ((zn * gamma_ref[...] + beta_ref[...]).astype(jnp.bfloat16))[None]


def logits_ls_kernel(x_ref, w_ref, b_ref, o_ref, *, tv, nv):
    """fc + log_softmax for one (ts, D) tile; vocab tiled on grid axis 2.

    The (1, ts, V) output block stays resident across the V sweep; raw logits
    are stashed into their lane slice, then normalized in place at the last step.
    TODO(synk): for very large V the resident output block itself should be
                streamed (two-pass / online logsumexp over HBM logits).
    """
    x = x_ref[0]                                                    # (ts, D) bf16
    logits = jnp.dot(x, w_ref[...], preferred_element_type=jnp.float32) + b_ref[...]

    def _normalize(full):
        m = jnp.max(full, axis=-1, keepdims=True)
        s = full - m
        lse = jnp.log(jnp.sum(jnp.exp(s), axis=-1, keepdims=True))
        return s - lse

    if nv == 1:                                   # static branch: whole vocab in-block
        o_ref[...] = _normalize(logits)[None]
    else:
        vi = pl.program_id(2)
        start = pl.multiple_of(vi * tv, tv)
        o_ref[:, :, pl.ds(start, tv)] = logits[None]

        @pl.when(vi == nv - 1)
        def _():
            o_ref[...] = _normalize(o_ref[0])[None]


# ---------------------------------------------------------------------------
# pallas_call wrappers
# ---------------------------------------------------------------------------

def attn_ln(x, mask_i8, ap, gamma, beta, num_heads):
    B, S, D = x.shape
    tq = _tile(S, 512)
    nq = S // tq
    kern = functools.partial(attn_ln_kernel, num_heads=num_heads)

    wbuf = 1 if _SINGLE_BUFFER_WEIGHTS else 2
    est = (2 * (tq * D + S * D) * 2           # x_q / x_kv blocks (bf16, double buffered)
           + 2 * tq * S                       # int8 mask
           + wbuf * 4 * D * D * 2             # wq + wkv + wo (bf16)
           + 2 * tq * D * 2                   # output block (bf16)
           + tq * D * 4                       # attn scratch
           + (tq * D + 2 * S * D + 2 * tq * S) * 4)   # f32 temporaries

    return pl.pallas_call(
        kern,
        out_shape=jax.ShapeDtypeStruct((B, S, D), jnp.bfloat16),
        grid=(B, nq),
        in_specs=[
            pl.BlockSpec((1, tq, D), lambda b, qi: (b, qi, 0)),   # x (q rows)
            pl.BlockSpec((1, S, D), lambda b, qi: (b, 0, 0)),     # x (kv rows)
            pl.BlockSpec((tq, S), lambda b, qi: (qi, 0)),         # mask (int8)
            _wspec((D, D), lambda b, qi: (0, 0)),                 # wq (scaled, bf16)
            _wspec((1, D), lambda b, qi: (0, 0)),                 # bq (scaled)
            _wspec((D, 2 * D), lambda b, qi: (0, 0)),             # wkv (bf16)
            _wspec((1, 2 * D), lambda b, qi: (0, 0)),             # bkv
            _wspec((D, D), lambda b, qi: (0, 0)),                 # wo (bf16)
            _wspec((1, D), lambda b, qi: (0, 0)),                 # bo
            _wspec((1, D), lambda b, qi: (0, 0)),                 # gamma
            _wspec((1, D), lambda b, qi: (0, 0)),                 # beta
        ],
        out_specs=pl.BlockSpec((1, tq, D), lambda b, qi: (b, qi, 0)),
        scratch_shapes=[pltpu.VMEM((tq, D), jnp.float32)],
        compiler_params=pltpu.CompilerParams(
            dimension_semantics=("parallel", "parallel"),
            vmem_limit_bytes=_vmem_limit(est)),
    )(x, x, mask_i8, ap["wq"], ap["bq"], ap["wkv"], ap["bkv"],
      ap["wo"], ap["bo"], gamma, beta)


def ff_ln(x, fp, gamma, beta):
    B, S, D = x.shape
    Dff = fp["w1"].shape[1]
    ts = _tile(S, 512)
    ns = S // ts
    tdff = _tile(Dff, 1024)
    nk = Dff // tdff

    est = (2 * ts * D * 2                     # x block (bf16)
           + 2 * (D * tdff + tdff * D) * 2    # w1 / w2 blocks (bf16)
           + 2 * ts * D * 2                   # output block (bf16)
           + ts * D * 4                       # f32 accumulator
           + 2 * ts * tdff * 4)               # intermediate activations

    return pl.pallas_call(
        ff_ln_kernel,
        out_shape=jax.ShapeDtypeStruct((B, S, D), jnp.bfloat16),
        grid=(B, ns, nk),
        in_specs=[
            pl.BlockSpec((1, ts, D), lambda b, si, ki: (b, si, 0)),   # x
            pl.BlockSpec((D, tdff), lambda b, si, ki: (0, ki)),       # w1 (bf16)
            pl.BlockSpec((1, tdff), lambda b, si, ki: (0, ki)),       # b1
            pl.BlockSpec((tdff, D), lambda b, si, ki: (ki, 0)),       # w2 (bf16)
            _wspec((1, D), lambda b, si, ki: (0, 0)),                 # b2
            _wspec((1, D), lambda b, si, ki: (0, 0)),                 # gamma
            _wspec((1, D), lambda b, si, ki: (0, 0)),                 # beta
        ],
        out_specs=pl.BlockSpec((1, ts, D), lambda b, si, ki: (b, si, 0)),
        scratch_shapes=[pltpu.VMEM((ts, D), jnp.float32)],
        compiler_params=pltpu.CompilerParams(
            dimension_semantics=("parallel", "parallel", "arbitrary"),
            vmem_limit_bytes=_vmem_limit(est)),
    )(x, fp["w1"], fp["b1"], fp["w2"], fp["b2"], gamma, beta)


def fc_log_softmax(x, w, b):
    B, S, D = x.shape
    V = w.shape[1]
    ts = _tile(S, 512)
    ns = S // ts
    tv = _tile(V, 512)
    nv = V // tv
    kern = functools.partial(logits_ls_kernel, tv=tv, nv=nv)

    est = (2 * ts * D * 2                     # x block (bf16)
           + 2 * (D * tv * 2 + tv * 4)        # w / b blocks
           + ts * V * 4                       # resident output block (f32)
           + 2 * ts * tv * 4)                 # logits temporaries

    return pl.pallas_call(
        kern,
        out_shape=jax.ShapeDtypeStruct((B, S, V), jnp.float32),
        grid=(B, ns, nv),
        in_specs=[
            pl.BlockSpec((1, ts, D), lambda b, si, vi: (b, si, 0)),   # x
            pl.BlockSpec((D, tv), lambda b, si, vi: (0, vi)),         # fc_w (bf16)
            pl.BlockSpec((1, tv), lambda b, si, vi: (0, vi)),         # fc_b
        ],
        out_specs=pl.BlockSpec((1, ts, V), lambda b, si, vi: (b, si, 0)),
        compiler_params=pltpu.CompilerParams(
            dimension_semantics=("parallel", "parallel", "arbitrary"),
            vmem_limit_bytes=_vmem_limit(est)),
    )(x, w, b)


# ---------------------------------------------------------------------------
# Parameter construction (deterministic, synthetic) and forward pass
# ---------------------------------------------------------------------------

def sinusoidal_pe(max_len, d_model):
    pos = jnp.arange(max_len, dtype=jnp.float32)[:, None]
    i = jnp.arange(0, d_model, 2, dtype=jnp.float32)[None, :]
    div = jnp.exp(-math.log(10000.0) * i / d_model)
    pe = jnp.zeros((max_len, d_model), jnp.float32)
    pe = pe.at[:, 0::2].set(jnp.sin(pos * div))
    pe = pe.at[:, 1::2].set(jnp.cos(pos * div))
    return pe


def init_params(key, vocab_size, d_model, num_heads, num_layers, d_ff):
    hd = d_model // num_heads
    scale = 1.0 / math.sqrt(hd)

    def dense(k, fan_in, fan_out):
        w = jax.random.normal(k, (fan_in, fan_out), jnp.float32) * 0.02
        return w, jnp.zeros((1, fan_out), jnp.float32)

    keys = jax.random.split(key, 2 + num_layers)
    params = {
        "emb": jax.random.normal(keys[0], (vocab_size, d_model), jnp.float32) * 0.02,
        "layers": [],
    }
    fc_w, fc_b = dense(keys[1], d_model, vocab_size)
    params["fc_w"] = fc_w.astype(jnp.bfloat16)       # MXU weights stored bf16
    params["fc_b"] = fc_b

    for li in range(num_layers):
        lk = jax.random.split(keys[2 + li], 4)

        def attn_params(k):
            ks = jax.random.split(k, 4)
            wq, bq = dense(ks[0], d_model, d_model)
            wk, bk = dense(ks[1], d_model, d_model)
            wv, bv = dense(ks[2], d_model, d_model)
            wo, bo = dense(ks[3], d_model, d_model)
            return dict(
                # 1/sqrt(head_dim) folded into the Q projection at init.
                wq=(wq * scale).astype(jnp.bfloat16),
                bq=bq * scale,
                wkv=jnp.concatenate([wk, wv], axis=1).astype(jnp.bfloat16),
                bkv=jnp.concatenate([bk, bv], axis=1),
                wo=wo.astype(jnp.bfloat16),
                bo=bo,
            )

        w1, b1 = dense(lk[2], d_model, d_ff)
        w2, b2 = dense(lk[3], d_ff, d_model)
        layer = dict(
            self_attn=attn_params(lk[0]),
            cross_attn=attn_params(lk[1]),
            ff=dict(w1=w1.astype(jnp.bfloat16), b1=b1,
                    w2=w2.astype(jnp.bfloat16), b2=b2),
            norm1_g=jnp.ones((1, d_model), jnp.float32),
            norm1_b=jnp.zeros((1, d_model), jnp.float32),
            norm2_g=jnp.ones((1, d_model), jnp.float32),
            norm2_b=jnp.zeros((1, d_model), jnp.float32),
            norm3_g=jnp.ones((1, d_model), jnp.float32),
            norm3_b=jnp.zeros((1, d_model), jnp.float32),
        )
        params["layers"].append(layer)
    return params


def transformer_decoder_forward(params, tokens, tgt_mask, *, d_model, num_heads, pe):
    B, S = tokens.shape
    mask_i8 = (tgt_mask != 0).astype(jnp.int8)   # 1 = attend, 0 = masked

    # Embedding lookup (plain-JAX gather) + sqrt(d_model) scale + positional enc.
    # TODO(synk): the gather stays in XLA; a Pallas DMA-gather is only worthwhile
    #             for very large embedding tables.
    x = params["emb"][tokens] * jnp.float32(math.sqrt(d_model))
    x = (x + pe[:S][None, :, :]).astype(jnp.bfloat16)   # bf16 activations between kernels

    for lp in params["layers"]:
        # self-attention + add&norm (fused)
        x = attn_ln(x, mask_i8, lp["self_attn"], lp["norm1_g"], lp["norm1_b"], num_heads)
        # TODO(synk): reference forward calls layer(x, tgt_mask) although
        #             DecoderLayer.forward takes (x, y, tgt_mask, cross_mask);
        #             interpreted as decoder-only: y = x, cross_mask = tgt_mask.
        x = attn_ln(x, mask_i8, lp["cross_attn"], lp["norm2_g"], lp["norm2_b"], num_heads)
        # feed-forward + add&norm (fused); dropout is inference-mode identity.
        x = ff_ln(x, lp["ff"], lp["norm3_g"], lp["norm3_b"])

    return fc_log_softmax(x, params["fc_w"], params["fc_b"])


# ---------------------------------------------------------------------------

if __name__ == "__main__":
    vocab_size = 16
    d_model = 32
    num_layers = 2
    num_heads = 4
    d_ff = 64
    max_seq_length = 16
    B, S = 2, 8

    key = jax.random.PRNGKey(0)
    pkey, tkey = jax.random.split(key)
    params = init_params(pkey, vocab_size, d_model, num_heads, num_layers, d_ff)
    pe = sinusoidal_pe(max_seq_length, d_model)

    tokens = jax.random.randint(tkey, (B, S), 0, vocab_size, dtype=jnp.int32)
    # causal target mask (S, S): 1 = attend, 0 = masked
    tgt_mask = jnp.tril(jnp.ones((S, S), jnp.float32))

    fwd = jax.jit(functools.partial(transformer_decoder_forward,
                                    d_model=d_model, num_heads=num_heads, pe=pe))
    out = fwd(params, tokens, tgt_mask)
    out = jax.block_until_ready(out)

    assert out.shape == (B, S, vocab_size)
    assert out.dtype == jnp.float32
    # log_softmax sanity: probabilities over the vocab sum to 1 (exact normalizer)
    assert bool(jnp.allclose(jnp.sum(jnp.exp(out), axis=-1), 1.0, atol=1e-4))
    print("KERNEL_OK")
</pallas_src>

<mosaic_0001>
module attributes {stable_mosaic.version = 11 : i64} {
  func.func @k(%arg0: i32, %arg1: memref<8x128xf32, #tpu.memory_space<vmem>>, %arg2: memref<8x128xf32, #tpu.memory_space<vmem>>) attributes {dimension_semantics = [#tpu.dimension_semantics<arbitrary>], iteration_bounds = array<i64: 2>, scalar_prefetch = 0 : i64, scratch_operands = 0 : i64, tpu.core_type = #tpu.core_type<tc>, window_params = [{pipeline_mode = #tpu.pipeline_mode<synchronous>, transform_indices = @transform_0, window_bounds = array<i64: 8, 128>}, {pipeline_mode = #tpu.pipeline_mode<synchronous>, transform_indices = @transform_1, window_bounds = array<i64: 8, 128>}]} {
    %c0 = arith.constant 0 : index
    %c0_0 = arith.constant 0 : index
    %0 = vector.load %arg1[%c0, %c0_0] : memref<8x128xf32, #tpu.memory_space<vmem>>, vector<8x128xf32>
    %cst = arith.constant 1.000000e+00 : f32
    %1 = vector.broadcast %cst : f32 to vector<8x128xf32>
    %2 = arith.addf %0, %1 : vector<8x128xf32>
    %c0_1 = arith.constant 0 : index
    %c0_2 = arith.constant 0 : index
    %3 = vector.load %arg2[%c0_1, %c0_2] : memref<8x128xf32, #tpu.memory_space<vmem>>, vector<8x128xf32>
    tpu.vector_store %arg2[%c0_1, %c0_2], %2 {strides = array<i32>} : memref<8x128xf32, #tpu.memory_space<vmem>>, vector<8x128xf32>,
    return
  }
  func.func @transform_0(%arg0: i32) -> (i32, i32) {
    %c0_i32 = arith.constant 0 : i32
    %c0_i32_0 = arith.constant 0 : i32
    %c0_i32_1 = arith.constant 0 : i32
    return %c0_i32, %c0_i32_0 : i32, i32
  }
  func.func @transform_1(%arg0: i32) -> (i32, i32) {
    %c0_i32 = arith.constant 0 : i32
    %c0_i32_0 = arith.constant 0 : i32
    %c0_i32_1 = arith.constant 0 : i32
    return %c0_i32, %c0_i32_0 : i32, i32
  }
}

module attributes {stable_mosaic.version = 11 : i64} {
  func.func @logits_ls_kernel(%arg0: i32, %arg1: i32, %arg2: i32, %arg3: memref<1x8x32xbf16, #tpu.memory_space<vmem>>, %arg4: memref<32x16xbf16, #tpu.memory_space<vmem>>, %arg5: memref<1x16xf32, #tpu.memory_space<vmem>>, %arg6: memref<1x8x16xf32, #tpu.memory_space<vmem>>) attributes {dimension_semantics = [#tpu.dimension_semantics<parallel>, #tpu.dimension_semantics<parallel>, #tpu.dimension_semantics<arbitrary>], iteration_bounds = array<i64: 2, 1, 1>, scalar_prefetch = 0 : i64, scratch_operands = 0 : i64, tpu.core_type = #tpu.core_type<tc>, window_params = [{transform_indices = @transform_0, window_bounds = array<i64: 1, 8, 32>}, {transform_indices = @transform_1, window_bounds = array<i64: 32, 16>}, {transform_indices = @transform_2, window_bounds = array<i64: 1, 16>}, {transform_indices = @transform_3, window_bounds = array<i64: 1, 8, 16>}]} {
    %c0 = arith.constant 0 : index
    %c0_0 = arith.constant 0 : index
    %c0_1 = arith.constant 0 : index
    %0 = vector.load %arg3[%c0, %c0_0, %c0_1] : memref<1x8x32xbf16, #tpu.memory_space<vmem>>, vector<1x8x32xbf16>
    %1 = vector.shape_cast %0 : vector<1x8x32xbf16> to vector<8x32xbf16>
    %c0_2 = arith.constant 0 : index
    %c0_3 = arith.constant 0 : index
    %2 = vector.load %arg4[%c0_2, %c0_3] : memref<32x16xbf16, #tpu.memory_space<vmem>>, vector<32x16xbf16>
    %cst = arith.constant dense<0.000000e+00> : vector<8x16xf32>
    %3 = tpu.matmul %1, %2, %cst {dimension_numbers = #tpu.dot_dimension_numbers<[1], [0], [0], [1], [0, 0, 1, 1], [], []>} : vector<8x32xbf16>, vector<32x16xbf16>, vector<8x16xf32> -> vector<8x16xf32>
    %c0_4 = arith.constant 0 : index
    %c0_5 = arith.constant 0 : index
    %4 = vector.load %arg5[%c0_4, %c0_5] : memref<1x16xf32, #tpu.memory_space<vmem>>, vector<1x16xf32>
    %5 = vector.broadcast %4 : vector<1x16xf32> to vector<8x16xf32>
    %6 = arith.addf %3, %5 : vector<8x16xf32>
    %cst_6 = arith.constant dense<0xFF800000> : vector<8xf32>
    %7 = vector.multi_reduction <maximumf>, %6, %cst_6 [1] : vector<8x16xf32> to vector<8xf32>
    %8 = vector.shape_cast %7 : vector<8xf32> to vector<8x1xf32>
    %9 = vector.broadcast %8 : vector<8x1xf32> to vector<8x16xf32>
    %10 = arith.subf %6, %9 : vector<8x16xf32>
    %11 = math.exp %10 : vector<8x16xf32>
    %cst_7 = arith.constant dense<0.000000e+00> : vector<8xf32>
    %12 = vector.multi_reduction <add>, %11, %cst_7 [1] : vector<8x16xf32> to vector<8xf32>
    %13 = vector.shape_cast %12 : vector<8xf32> to vector<8x1xf32>
    %14 = math.log %13 : vector<8x1xf32>
    %15 = vector.broadcast %14 : vector<8x1xf32> to vector<8x16xf32>
    %16 = arith.subf %10, %15 : vector<8x16xf32>
    %17 = vector.shape_cast %16 : vector<8x16xf32> to vector<1x8x16xf32>
    %c0_8 = arith.constant 0 : index
    %c0_9 = arith.constant 0 : index
    %c0_10 = arith.constant 0 : index
    %18 = vector.load %arg6[%c0_8, %c0_9, %c0_10] : memref<1x8x16xf32, #tpu.memory_space<vmem>>, vector<1x8x16xf32>
    tpu.vector_store %arg6[%c0_8, %c0_9, %c0_10], %17 {strides = array<i32>} : memref<1x8x16xf32, #tpu.memory_space<vmem>>, vector<1x8x16xf32>,
    return
  }
  func.func @transform_0(%arg0: i32, %arg1: i32, %arg2: i32) -> (i32, i32, i32) {
    %c0_i32 = arith.constant 0 : i32
    %c0_i32_0 = arith.constant 0 : i32
    return %arg0, %arg1, %c0_i32 : i32, i32, i32
  }
  func.func @transform_1(%arg0: i32, %arg1: i32, %arg2: i32) -> (i32, i32) {
    %c0_i32 = arith.constant 0 : i32
    %c0_i32_0 = arith.constant 0 : i32
    return %c0_i32, %arg2 : i32, i32
  }
  func.func @transform_2(%arg0: i32, %arg1: i32, %arg2: i32) -> (i32, i32) {
    %c0_i32 = arith.constant 0 : i32
    %c0_i32_0 = arith.constant 0 : i32
    return %c0_i32, %arg2 : i32, i32
  }
  func.func @transform_3(%arg0: i32, %arg1: i32, %arg2: i32) -> (i32, i32, i32) {
    %c0_i32 = arith.constant 0 : i32
    %c0_i32_0 = arith.constant 0 : i32
    return %arg0, %arg1, %c0_i32 : i32, i32, i32
  }
}

module attributes {stable_mosaic.version = 11 : i64} {
  func.func @attn_ln_kernel(%arg0: i32, %arg1: i32, %arg2: memref<1x8x32xbf16, #tpu.memory_space<vmem>>, %arg3: memref<1x8x32xbf16, #tpu.memory_space<vmem>>, %arg4: memref<8x8xi8, #tpu.memory_space<vmem>>, %arg5: memref<32x32xbf16, #tpu.memory_space<vmem>>, %arg6: memref<1x32xf32, #tpu.memory_space<vmem>>, %arg7: memref<32x64xbf16, #tpu.memory_space<vmem>>, %arg8: memref<1x64xf32, #tpu.memory_space<vmem>>, %arg9: memref<32x32xbf16, #tpu.memory_space<vmem>>, %arg10: memref<1x32xf32, #tpu.memory_space<vmem>>, %arg11: memref<1x32xf32, #tpu.memory_space<vmem>>, %arg12: memref<1x32xf32, #tpu.memory_space<vmem>>, %arg13: memref<1x8x32xbf16, #tpu.memory_space<vmem>>, %arg14: memref<8x32xf32, #tpu.memory_space<vmem>>) attributes {dimension_semantics = [#tpu.dimension_semantics<parallel>, #tpu.dimension_semantics<parallel>], iteration_bounds = array<i64: 2, 1>, scalar_prefetch = 0 : i64, scratch_operands = 1 : i64, tpu.core_type = #tpu.core_type<tc>, window_params = [{transform_indices = @transform_0, window_bounds = array<i64: 1, 8, 32>}, {transform_indices = @transform_1, window_bounds = array<i64: 1, 8, 32>}, {transform_indices = @transform_2, window_bounds = array<i64: 8, 8>}, {pipeline_mode = #tpu.pipeline_mode<synchronous>, transform_indices = @transform_3, window_bounds = array<i64: 32, 32>}, {pipeline_mode = #tpu.pipeline_mode<synchronous>, transform_indices = @transform_4, window_bounds = array<i64: 1, 32>}, {pipeline_mode = #tpu.pipeline_mode<synchronous>, transform_indices = @transform_5, window_bounds = array<i64: 32, 64>}, {pipeline_mode = #tpu.pipeline_mode<synchronous>, transform_indices = @transform_6, window_bounds = array<i64: 1, 64>}, {pipeline_mode = #tpu.pipeline_mode<synchronous>, transform_indices = @transform_7, window_bounds = array<i64: 32, 32>}, {pipeline_mode = #tpu.pipeline_mode<synchronous>, transform_indices = @transform_8, window_bounds = array<i64: 1, 32>}, {pipeline_mode = #tpu.pipeline_mode<synchronous>, transform_indices = @transform_9, window_bounds = array<i64: 1, 32>}, {pipeline_mode = #tpu.pipeline_mode<synchronous>, transform_indices = @transform_10, window_bounds = array<i64: 1, 32>}, {transform_indices = @transform_11, window_bounds = array<i64: 1, 8, 32>}]} {
    %c0 = arith.constant 0 : index
    %c0_0 = arith.constant 0 : index
    %c0_1 = arith.constant 0 : index
    %0 = vector.load %arg2[%c0, %c0_0, %c0_1] : memref<1x8x32xbf16, #tpu.memory_space<vmem>>, vector<1x8x32xbf16>
    %1 = vector.shape_cast %0 : vector<1x8x32xbf16> to vector<8x32xbf16>
    %c0_2 = arith.constant 0 : index
    %c0_3 = arith.constant 0 : index
    %c0_4 = arith.constant 0 : index
    %2 = vector.load %arg3[%c0_2, %c0_3, %c0_4] : memref<1x8x32xbf16, #tpu.memory_space<vmem>>, vector<1x8x32xbf16>
    %3 = vector.shape_cast %2 : vector<1x8x32xbf16> to vector<8x32xbf16>
    %c0_5 = arith.constant 0 : index
    %c0_6 = arith.constant 0 : index
    %4 = vector.load %arg5[%c0_5, %c0_6] : memref<32x32xbf16, #tpu.memory_space<vmem>>, vector<32x32xbf16>
    %cst = arith.constant dense<0.000000e+00> : vector<8x32xf32>
    %5 = tpu.matmul %1, %4, %cst {dimension_numbers = #tpu.dot_dimension_numbers<[1], [0], [0], [1], [0, 0, 1, 1], [], []>} : vector<8x32xbf16>, vector<32x32xbf16>, vector<8x32xf32> -> vector<8x32xf32>
    %c0_7 = arith.constant 0 : index
    %c0_8 = arith.constant 0 : index
    %6 = vector.load %arg6[%c0_7, %c0_8] : memref<1x32xf32, #tpu.memory_space<vmem>>, vector<1x32xf32>
    %7 = vector.broadcast %6 : vector<1x32xf32> to vector<8x32xf32>
    %8 = arith.addf %5, %7 : vector<8x32xf32>
    %c0_9 = arith.constant 0 : index
    %c0_10 = arith.constant 0 : index
    %9 = vector.load %arg7[%c0_9, %c0_10] : memref<32x64xbf16, #tpu.memory_space<vmem>>, vector<32x64xbf16>
    %cst_11 = arith.constant dense<0.000000e+00> : vector<8x64xf32>
    %10 = tpu.matmul %3, %9, %cst_11 {dimension_numbers = #tpu.dot_dimension_numbers<[1], [0], [0], [1], [0, 0, 1, 1], [], []>} : vector<8x32xbf16>, vector<32x64xbf16>, vector<8x64xf32> -> vector<8x64xf32>
    %c0_12 = arith.constant 0 : index
    %c0_13 = arith.constant 0 : index
    %11 = vector.load %arg8[%c0_12, %c0_13] : memref<1x64xf32, #tpu.memory_space<vmem>>, vector<1x64xf32>
    %12 = vector.broadcast %11 : vector<1x64xf32> to vector<8x64xf32>
    %13 = arith.addf %10, %12 : vector<8x64xf32>
    %c0_14 = arith.constant 0 : index
    %c0_15 = arith.constant 0 : index
    %14 = vector.load %arg4[%c0_14, %c0_15] : memref<8x8xi8, #tpu.memory_space<vmem>>, vector<8x8xi8>
    %c0_i8 = arith.constant 0 : i8
    %15 = vector.broadcast %c0_i8 : i8 to vector<8x8xi8>
    %16 = arith.cmpi ne, %14, %15 : vector<8x8xi8>
    %17 = vector.extract_strided_slice %8 {offsets = [0, 0], sizes = [8, 8], strides = [1, 1]} : vector<8x32xf32> to vector<8x8xf32>
    %18 = arith.truncf %17 : vector<8x8xf32> to vector<8x8xbf16>
    %19 = vector.extract_strided_slice %13 {offsets = [0, 0], sizes = [8, 8], strides = [1, 1]} : vector<8x64xf32> to vector<8x8xf32>
    %20 = arith.truncf %19 : vector<8x8xf32> to vector<8x8xbf16>
    %21 = vector.extract_strided_slice %13 {offsets = [0, 32], sizes = [8, 8], strides = [1, 1]} : vector<8x64xf32> to vector<8x8xf32>
    %22 = arith.truncf %21 : vector<8x8xf32> to vector<8x8xbf16>
    %cst_16 = arith.constant dense<0.000000e+00> : vector<8x8xf32>
    %23 = tpu.matmul %18, %20, %cst_16 {dimension_numbers = #tpu.dot_dimension_numbers<[1], [1], [0], [0], [0, 0, 1, 0], [], []>} : vector<8x8xbf16>, vector<8x8xbf16>, vector<8x8xf32> -> vector<8x8xf32>
    %cst_17 = arith.constant -1.000000e+09 : f32
    %24 = vector.broadcast %cst_17 : f32 to vector<8x8xf32>
    %25 = arith.select %16, %23, %24 : vector<8x8xi1>, vector<8x8xf32>
    %cst_18 = arith.constant dense<0xFF800000> : vector<8xf32>
    %26 = vector.multi_reduction <maximumf>, %25, %cst_18 [1] : vector<8x8xf32> to vector<8xf32>
    %27 = vector.shape_cast %26 : vector<8xf32> to vector<8x1xf32>
    %28 = vector.broadcast %27 : vector<8x1xf32> to vector<8x8xf32>
    %29 = arith.subf %25, %28 : vector<8x8xf32>
    %30 = math.exp %29 : vector<8x8xf32>
    %cst_19 = arith.constant dense<0.000000e+00> : vector<8xf32>
    %31 = vector.multi_reduction <add>, %30, %cst_19 [1] : vector<8x8xf32> to vector<8xf32>
    %32 = vector.shape_cast %31 : vector<8xf32> to vector<8x1xf32>
    %cst_20 = arith.constant 1.000000e-30 : f32
    %33 = vector.broadcast %cst_20 : f32 to vector<8x1xf32>
    %34 = arith.maximumf %32, %33 : vector<8x1xf32>
    %35 = tpu.reciprocal %34 {approx = true} : vector<8x1xf32> -> vector<8x1xf32>
    %36 = vector.broadcast %35 : vector<8x1xf32> to vector<8x8xf32>
    %37 = arith.mulf %30, %36 : vector<8x8xf32>
    %38 = arith.truncf %37 : vector<8x8xf32> to vector<8x8xbf16>
    %cst_21 = arith.constant dense<0.000000e+00> : vector<8x8xf32>
    %39 = tpu.matmul %38, %22, %cst_21 {dimension_numbers = #tpu.dot_dimension_numbers<[1], [0], [0], [1], [0, 0, 1, 1], [], []>} : vector<8x8xbf16>, vector<8x8xbf16>, vector<8x8xf32> -> vector<8x8xf32>
    %c0_22 = arith.constant 0 : index
    %c0_23 = arith.constant 0 : index
    %40 = vector.load %arg14[%c0_22, %c0_23] : memref<8x32xf32, #tpu.memory_space<vmem>>, vector<8x8xf32>
    tpu.vector_store %arg14[%c0_22, %c0_23], %39 {strides = array<i32>} : memref<8x32xf32, #tpu.memory_space<vmem>>, vector<8x8xf32>,
    %41 = vector.extract_strided_slice %8 {offsets = [0, 8], sizes = [8, 8], strides = [1, 1]} : vector<8x32xf32> to vector<8x8xf32>
    %42 = arith.truncf %41 : vector<8x8xf32> to vector<8x8xbf16>
    %43 = vector.extract_strided_slice %13 {offsets = [0, 8], sizes = [8, 8], strides = [1, 1]} : vector<8x64xf32> to vector<8x8xf32>
    %44 = arith.truncf %43 : vector<8x8xf32> to vector<8x8xbf16>
    %45 = vector.extract_strided_slice %13 {offsets = [0, 40], sizes = [8, 8], strides = [1, 1]} : vector<8x64xf32> to vector<8x8xf32>
    %46 = arith.truncf %45 : vector<8x8xf32> to vector<8x8xbf16>
    %cst_24 = arith.constant dense<0.000000e+00> : vector<8x8xf32>
    %47 = tpu.matmul %42, %44, %cst_24 {dimension_numbers = #tpu.dot_dimension_numbers<[1], [1], [0], [0], [0, 0, 1, 0], [], []>} : vector<8x8xbf16>, vector<8x8xbf16>, vector<8x8xf32> -> vector<8x8xf32>
    %cst_25 = arith.constant -1.000000e+09 : f32
    %48 = vector.broadcast %cst_25 : f32 to vector<8x8xf32>
    %49 = arith.select %16, %47, %48 : vector<8x8xi1>, vector<8x8xf32>
    %cst_26 = arith.constant dense<0xFF800000> : vector<8xf32>
    %50 = vector.multi_reduction <maximumf>, %49, %cst_26 [1] : vector<8x8xf32> to vector<8xf32>
    %51 = vector.shape_cast %50 : vector<8xf32> to vector<8x1xf32>
    %52 = vector.broadcast %51 : vector<8x1xf32> to vector<8x8xf32>
    %53 = arith.subf %49, %52 : vector<8x8xf32>
    %54 = math.exp %53 : vector<8x8xf32>
    %cst_27 = arith.constant dense<0.000000e+00> : vector<8xf32>
    %55 = vector.multi_reduction <add>, %54, %cst_27 [1] : vector<8x8xf32> to vector<8xf32>
    %56 = vector.shape_cast %55 : vector<8xf32> to vector<8x1xf32>
    %cst_28 = arith.constant 1.000000e-30 : f32
    %57 = vector.broadcast %cst_28 : f32 to vector<8x1xf32>
    %58 = arith.maximumf %56, %57 : vector<8x1xf32>
    %59 = tpu.reciprocal %58 {approx = true} : vector<8x1xf32> -> vector<8x1xf32>
    %60 = vector.broadcast %59 : vector<8x1xf32> to vector<8x8xf32>
    %61 = arith.mulf %54, %60 : vector<8x8xf32>
    %62 = arith.truncf %61 : vector<8x8xf32> to vector<8x8xbf16>
    %cst_29 = arith.constant dense<0.000000e+00> : vector<8x8xf32>
    %63 = tpu.matmul %62, %46, %cst_29 {dimension_numbers = #tpu.dot_dimension_numbers<[1], [0], [0], [1], [0, 0, 1, 1], [], []>} : vector<8x8xbf16>, vector<8x8xbf16>, vector<8x8xf32> -> vector<8x8xf32>
    %c0_30 = arith.constant 0 : index
    %c8 = arith.constant 8 : index
    %64 = vector.load %arg14[%c0_30, %c8] : memref<8x32xf32, #tpu.memory_space<vmem>>, vector<8x8xf32>
    tpu.vector_store %arg14[%c0_30, %c8], %63 {strides = array<i32>} : memref<8x32xf32, #tpu.memory_space<vmem>>, vector<8x8xf32>,
    %65 = vector.extract_strided_slice %8 {offsets = [0, 16], sizes = [8, 8], strides = [1, 1]} : vector<8x32xf32> to vector<8x8xf32>
    %66 = arith.truncf %65 : vector<8x8xf32> to vector<8x8xbf16>
    %67 = vector.extract_strided_slice %13 {offsets = [0, 16], sizes = [8, 8], strides = [1, 1]} : vector<8x64xf32> to vector<8x8xf32>
    %68 = arith.truncf %67 : vector<8x8xf32> to vector<8x8xbf16>
    %69 = vector.extract_strided_slice %13 {offsets = [0, 48], sizes = [8, 8], strides = [1, 1]} : vector<8x64xf32> to vector<8x8xf32>
    %70 = arith.truncf %69 : vector<8x8xf32> to vector<8x8xbf16>
    %cst_31 = arith.constant dense<0.000000e+00> : vector<8x8xf32>
    %71 = tpu.matmul %66, %68, %cst_31 {dimension_numbers = #tpu.dot_dimension_numbers<[1], [1], [0], [0], [0, 0, 1, 0], [], []>} : vector<8x8xbf16>, vector<8x8xbf16>, vector<8x8xf32> -> vector<8x8xf32>
    %cst_32 = arith.constant -1.000000e+09 : f32
    %72 = vector.broadcast %cst_32 : f32 to vector<8x8xf32>
    %73 = arith.select %16, %71, %72 : vector<8x8xi1>, vector<8x8xf32>
    %cst_33 = arith.constant dense<0xFF800000> : vector<8xf32>
    %74 = vector.multi_reduction <maximumf>, %73, %cst_33 [1] : vector<8x8xf32> to vector<8xf32>
    %75 = vector.shape_cast %74 : vector<8xf32> to vector<8x1xf32>
    %76 = vector.broadcast %75 : vector<8x1xf32> to vector<8x8xf32>
    %77 = arith.subf %73, %76 : vector<8x8xf32>
    %78 = math.exp %77 : vector<8x8xf32>
    %cst_34 = arith.constant dense<0.000000e+00> : vector<8xf32>
    %79 = vector.multi_reduction <add>, %78, %cst_34 [1] : vector<8x8xf32> to vector<8xf32>
    %80 = vector.shape_cast %79 : vector<8xf32> to vector<8x1xf32>
    %cst_35 = arith.constant 1.000000e-30 : f32
    %81 = vector.broadcast %cst_35 : f32 to vector<8x1xf32>
    %82 = arith.maximumf %80, %81 : vector<8x1xf32>
    %83 = tpu.reciprocal %82 {approx = true} : vector<8x1xf32> -> vector<8x1xf32>
    %84 = vector.broadcast %83 : vector<8x1xf32> to vector<8x8xf32>
    %85 = arith.mulf %78, %84 : vector<8x8xf32>
    %86 = arith.truncf %85 : vector<8x8xf32> to vector<8x8xbf16>
    %cst_36 = arith.constant dense<0.000000e+00> : vector<8x8xf32>
    %87 = tpu.matmul %86, %70, %cst_36 {dimension_numbers = #tpu.dot_dimension_numbers<[1], [0], [0], [1], [0, 0, 1, 1], [], []>} : vector<8x8xbf16>, vector<8x8xbf16>, vector<8x8xf32> -> vector<8x8xf32>
    %c0_37 = arith.constant 0 : index
    %c16 = arith.constant 16 : index
    %88 = vector.load %arg14[%c0_37, %c16] : memref<8x32xf32, #tpu.memory_space<vmem>>, vector<8x8xf32>
    tpu.vector_store %arg14[%c0_37, %c16], %87 {strides = array<i32>} : memref<8x32xf32, #tpu.memory_space<vmem>>, vector<8x8xf32>,
    %89 = vector.extract_strided_slice %8 {offsets = [0, 24], sizes = [8, 8], strides = [1, 1]} : vector<8x32xf32> to vector<8x8xf32>
    %90 = arith.truncf %89 : vector<8x8xf32> to vector<8x8xbf16>
    %91 = vector.extract_strided_slice %13 {offsets = [0, 24], sizes = [8, 8], strides = [1, 1]} : vector<8x64xf32> to vector<8x8xf32>
    %92 = arith.truncf %91 : vector<8x8xf32> to vector<8x8xbf16>
    %93 = vector.extract_strided_slice %13 {offsets = [0, 56], sizes = [8, 8], strides = [1, 1]} : vector<8x64xf32> to vector<8x8xf32>
    %94 = arith.truncf %93 : vector<8x8xf32> to vector<8x8xbf16>
    %cst_38 = arith.constant dense<0.000000e+00> : vector<8x8xf32>
    %95 = tpu.matmul %90, %92, %cst_38 {dimension_numbers = #tpu.dot_dimension_numbers<[1], [1], [0], [0], [0, 0, 1, 0], [], []>} : vector<8x8xbf16>, vector<8x8xbf16>, vector<8x8xf32> -> vector<8x8xf32>
    %cst_39 = arith.constant -1.000000e+09 : f32
    %96 = vector.broadcast %cst_39 : f32 to vector<8x8xf32>
    %97 = arith.select %16, %95, %96 : vector<8x8xi1>, vector<8x8xf32>
    %cst_40 = arith.constant dense<0xFF800000> : vector<8xf32>
    %98 = vector.multi_reduction <maximumf>, %97, %cst_40 [1] : vector<8x8xf32> to vector<8xf32>
    %99 = vector.shape_cast %98 : vector<8xf32> to vector<8x1xf32>
    %100 = vector.broadcast %99 : vector<8x1xf32> to vector<8x8xf32>
    %101 = arith.subf %97, %100 : vector<8x8xf32>
    %102 = math.exp %101 : vector<8x8xf32>
    %cst_41 = arith.constant dense<0.000000e+00> : vector<8xf32>
    %103 = vector.multi_reduction <add>, %102, %cst_41 [1] : vector<8x8xf32> to vector<8xf32>
    %104 = vector.shape_cast %103 : vector<8xf32> to vector<8x1xf32>
    %cst_42 = arith.constant 1.000000e-30 : f32
    %105 = vector.broadcast %cst_42 : f32 to vector<8x1xf32>
    %106 = arith.maximumf %104, %105 : vector<8x1xf32>
    %107 = tpu.reciprocal %106 {approx = true} : vector<8x1xf32> -> vector<8x1xf32>
    %108 = vector.broadcast %107 : vector<8x1xf32> to vector<8x8xf32>
    %109 = arith.mulf %102, %108 : vector<8x8xf32>
    %110 = arith.truncf %109 : vector<8x8xf32> to vector<8x8xbf16>
    %cst_43 = arith.constant dense<0.000000e+00> : vector<8x8xf32>
    %111 = tpu.matmul %110, %94, %cst_43 {dimension_numbers = #tpu.dot_dimension_numbers<[1], [0], [0], [1], [0, 0, 1, 1], [], []>} : vector<8x8xbf16>, vector<8x8xbf16>, vector<8x8xf32> -> vector<8x8xf32>
    %c0_44 = arith.constant 0 : index
    %c24 = arith.constant 24 : index
    %112 = vector.load %arg14[%c0_44, %c24] : memref<8x32xf32, #tpu.memory_space<vmem>>, vector<8x8xf32>
    tpu.vector_store %arg14[%c0_44, %c24], %111 {strides = array<i32>} : memref<8x32xf32, #tpu.memory_space<vmem>>, vector<8x8xf32>,
    %c0_45 = arith.constant 0 : index
    %c0_46 = arith.constant 0 : index
    %113 = vector.load %arg14[%c0_45, %c0_46] : memref<8x32xf32, #tpu.memory_space<vmem>>, vector<8x32xf32>
    %114 = arith.truncf %113 : vector<8x32xf32> to vector<8x32xbf16>
    %c0_47 = arith.constant 0 : index
    %c0_48 = arith.constant 0 : index
    %115 = vector.load %arg9[%c0_47, %c0_48] : memref<32x32xbf16, #tpu.memory_space<vmem>>, vector<32x32xbf16>
    %cst_49 = arith.constant dense<0.000000e+00> : vector<8x32xf32>
    %116 = tpu.matmul %114, %115, %cst_49 {dimension_numbers = #tpu.dot_dimension_numbers<[1], [0], [0], [1], [0, 0, 1, 1], [], []>} : vector<8x32xbf16>, vector<32x32xbf16>, vector<8x32xf32> -> vector<8x32xf32>
    %c0_50 = arith.constant 0 : index
    %c0_51 = arith.constant 0 : index
    %117 = vector.load %arg10[%c0_50, %c0_51] : memref<1x32xf32, #tpu.memory_space<vmem>>, vector<1x32xf32>
    %118 = vector.broadcast %117 : vector<1x32xf32> to vector<8x32xf32>
    %119 = arith.addf %116, %118 : vector<8x32xf32>
    %120 = arith.extf %1 : vector<8x32xbf16> to vector<8x32xf32>
    %121 = arith.addf %120, %119 : vector<8x32xf32>
    %cst_52 = arith.constant dense<0.000000e+00> : vector<8xf32>
    %122 = vector.multi_reduction <add>, %121, %cst_52 [1] : vector<8x32xf32> to vector<8xf32>
    %123 = vector.shape_cast %122 : vector<8xf32> to vector<8x1xf32>
    %cst_53 = arith.constant 3.200000e+01 : f32
    %124 = vector.broadcast %cst_53 : f32 to vector<8x1xf32>
    %125 = arith.divf %123, %124 : vector<8x1xf32>
    %126 = vector.broadcast %125 : vector<8x1xf32> to vector<8x32xf32>
    %127 = arith.subf %121, %126 : vector<8x32xf32>
    %128 = arith.mulf %127, %127 : vector<8x32xf32>
    %cst_54 = arith.constant dense<0.000000e+00> : vector<8xf32>
    %129 = vector.multi_reduction <add>, %128, %cst_54 [1] : vector<8x32xf32> to vector<8xf32>
    %130 = vector.shape_cast %129 : vector<8xf32> to vector<8x1xf32>
    %cst_55 = arith.constant 3.200000e+01 : f32
    %131 = vector.broadcast %cst_55 : f32 to vector<8x1xf32>
    %132 = arith.divf %130, %131 : vector<8x1xf32>
    %133 = vector.broadcast %125 : vector<8x1xf32> to vector<8x32xf32>
    %134 = arith.subf %121, %133 : vector<8x32xf32>
    %cst_56 = arith.constant 9.99999974E-6 : f32
    %135 = vector.broadcast %cst_56 : f32 to vector<8x1xf32>
    %136 = arith.addf %132, %135 : vector<8x1xf32>
    %137 = math.rsqrt %136 : vector<8x1xf32>
    %138 = vector.broadcast %137 : vector<8x1xf32> to vector<8x32xf32>
    %139 = arith.mulf %134, %138 : vector<8x32xf32>
    %c0_57 = arith.constant 0 : index
    %c0_58 = arith.constant 0 : index
    %140 = vector.load %arg11[%c0_57, %c0_58] : memref<1x32xf32, #tpu.memory_space<vmem>>, vector<1x32xf32>
    %141 = vector.broadcast %140 : vector<1x32xf32> to vector<8x32xf32>
    %142 = arith.mulf %139, %141 : vector<8x32xf32>
    %c0_59 = arith.constant 0 : index
    %c0_60 = arith.constant 0 : index
    %143 = vector.load %arg12[%c0_59, %c0_60] : memref<1x32xf32, #tpu.memory_space<vmem>>, vector<1x32xf32>
    %144 = vector.broadcast %143 : vector<1x32xf32> to vector<8x32xf32>
    %145 = arith.addf %142, %144 : vector<8x32xf32>
    %146 = arith.truncf %145 : vector<8x32xf32> to vector<8x32xbf16>
    %147 = vector.shape_cast %146 : vector<8x32xbf16> to vector<1x8x32xbf16>
    %c0_61 = arith.constant 0 : index
    %c0_62 = arith.constant 0 : index
    %c0_63 = arith.constant 0 : index
    %148 = vector.load %arg13[%c0_61, %c0_62, %c0_63] : memref<1x8x32xbf16, #tpu.memory_space<vmem>>, vector<1x8x32xbf16>
    tpu.vector_store %arg13[%c0_61, %c0_62, %c0_63], %147 {strides = array<i32>} : memref<1x8x32xbf16, #tpu.memory_space<vmem>>, vector<1x8x32xbf16>,
    return
  }
  func.func @transform_0(%arg0: i32, %arg1: i32) -> (i32, i32, i32) {
    %c0_i32 = arith.constant 0 : i32
    %c0_i32_0 = arith.constant 0 : i32
    return %arg0, %arg1, %c0_i32 : i32, i32, i32
  }
  func.func @transform_1(%arg0: i32, %arg1: i32) -> (i32, i32, i32) {
    %c0_i32 = arith.constant 0 : i32
    %c0_i32_0 = arith.constant 0 : i32
    %c0_i32_1 = arith.constant 0 : i32
    return %arg0, %c0_i32, %c0_i32_0 : i32, i32, i32
  }
  func.func @transform_2(%arg0: i32, %arg1: i32) -> (i32, i32) {
    %c0_i32 = arith.constant 0 : i32
    %c0_i32_0 = arith.constant 0 : i32
    return %arg1, %c0_i32 : i32, i32
  }
  func.func @transform_3(%arg0: i32, %arg1: i32) -> (i32, i32) {
    %c0_i32 = arith.constant 0 : i32
    %c0_i32_0 = arith.constant 0 : i32
    %c0_i32_1 = arith.constant 0 : i32
    return %c0_i32, %c0_i32_0 : i32, i32
  }
  func.func @transform_4(%arg0: i32, %arg1: i32) -> (i32, i32) {
    %c0_i32 = arith.constant 0 : i32
    %c0_i32_0 = arith.constant 0 : i32
    %c0_i32_1 = arith.constant 0 : i32
    return %c0_i32, %c0_i32_0 : i32, i32
  }
  func.func @transform_5(%arg0: i32, %arg1: i32) -> (i32, i32) {
    %c0_i32 = arith.constant 0 : i32
    %c0_i32_0 = arith.constant 0 : i32
    %c0_i32_1 = arith.constant 0 : i32
    return %c0_i32, %c0_i32_0 : i32, i32
  }
  func.func @transform_6(%arg0: i32, %arg1: i32) -> (i32, i32) {
    %c0_i32 = arith.constant 0 : i32
    %c0_i32_0 = arith.constant 0 : i32
    %c0_i32_1 = arith.constant 0 : i32
    return %c0_i32, %c0_i32_0 : i32, i32
  }
  func.func @transform_7(%arg0: i32, %arg1: i32) -> (i32, i32) {
    %c0_i32 = arith.constant 0 : i32
    %c0_i32_0 = arith.constant 0 : i32
    %c0_i32_1 = arith.constant 0 : i32
    return %c0_i32, %c0_i32_0 : i32, i32
  }
  func.func @transform_8(%arg0: i32, %arg1: i32) -> (i32, i32) {
    %c0_i32 = arith.constant 0 : i32
    %c0_i32_0 = arith.constant 0 : i32
    %c0_i32_1 = arith.constant 0 : i32
    return %c0_i32, %c0_i32_0 : i32, i32
  }
  func.func @transform_9(%arg0: i32, %arg1: i32) -> (i32, i32) {
    %c0_i32 = arith.constant 0 : i32
    %c0_i32_0 = arith.constant 0 : i32
    %c0_i32_1 = arith.constant 0 : i32
    return %c0_i32, %c0_i32_0 : i32, i32
  }
  func.func @transform_10(%arg0: i32, %arg1: i32) -> (i32, i32) {
    %c0_i32 = arith.constant 0 : i32
    %c0_i32_0 = arith.constant 0 : i32
    %c0_i32_1 = arith.constant 0 : i32
    return %c0_i32, %c0_i32_0 : i32, i32
  }
  func.func @transform_11(%arg0: i32, %arg1: i32) -> (i32, i32, i32) {
    %c0_i32 = arith.constant 0 : i32
    %c0_i32_0 = arith.constant 0 : i32
    return %arg0, %arg1, %c0_i32 : i32, i32, i32
  }
}

module attributes {stable_mosaic.version = 11 : i64} {
  func.func @ff_ln_kernel(%arg0: i32, %arg1: i32, %arg2: i32, %arg3: memref<1x8x32xbf16, #tpu.memory_space<vmem>>, %arg4: memref<32x64xbf16, #tpu.memory_space<vmem>>, %arg5: memref<1x64xf32, #tpu.memory_space<vmem>>, %arg6: memref<64x32xbf16, #tpu.memory_space<vmem>>, %arg7: memref<1x32xf32, #tpu.memory_space<vmem>>, %arg8: memref<1x32xf32, #tpu.memory_space<vmem>>, %arg9: memref<1x32xf32, #tpu.memory_space<vmem>>, %arg10: memref<1x8x32xbf16, #tpu.memory_space<vmem>>, %arg11: memref<8x32xf32, #tpu.memory_space<vmem>>) attributes {dimension_semantics = [#tpu.dimension_semantics<parallel>, #tpu.dimension_semantics<parallel>, #tpu.dimension_semantics<arbitrary>], iteration_bounds = array<i64: 2, 1, 1>, scalar_prefetch = 0 : i64, scratch_operands = 1 : i64, tpu.core_type = #tpu.core_type<tc>, window_params = [{transform_indices = @transform_0, window_bounds = array<i64: 1, 8, 32>}, {transform_indices = @transform_1, window_bounds = array<i64: 32, 64>}, {transform_indices = @transform_2, window_bounds = array<i64: 1, 64>}, {transform_indices = @transform_3, window_bounds = array<i64: 64, 32>}, {pipeline_mode = #tpu.pipeline_mode<synchronous>, transform_indices = @transform_4, window_bounds = array<i64: 1, 32>}, {pipeline_mode = #tpu.pipeline_mode<synchronous>, transform_indices = @transform_5, window_bounds = array<i64: 1, 32>}, {pipeline_mode = #tpu.pipeline_mode<synchronous>, transform_indices = @transform_6, window_bounds = array<i64: 1, 32>}, {transform_indices = @transform_7, window_bounds = array<i64: 1, 8, 32>}]} {
    %c0_i32 = arith.constant 0 : i32
    %0 = arith.cmpi eq, %arg2, %c0_i32 : i32
    %1 = arith.extui %0 : i1 to i32
    %c0_i32_0 = arith.constant 0 : i32
    %2 = arith.cmpi ne, %1, %c0_i32_0 : i32
    scf.if %2 {
      %cst_17 = arith.constant 0.000000e+00 : f32
      %21 = vector.broadcast %cst_17 : f32 to vector<8x32xf32>
      %c0_18 = arith.constant 0 : index
      %c0_19 = arith.constant 0 : index
      %22 = vector.load %arg11[%c0_18, %c0_19] : memref<8x32xf32, #tpu.memory_space<vmem>>, vector<8x32xf32>
      tpu.vector_store %arg11[%c0_18, %c0_19], %21 {strides = array<i32>} : memref<8x32xf32, #tpu.memory_space<vmem>>, vector<8x32xf32>,
    } else {
    }
    %c0 = arith.constant 0 : index
    %c0_1 = arith.constant 0 : index
    %c0_2 = arith.constant 0 : index
    %3 = vector.load %arg3[%c0, %c0_1, %c0_2] : memref<1x8x32xbf16, #tpu.memory_space<vmem>>, vector<1x8x32xbf16>
    %4 = vector.shape_cast %3 : vector<1x8x32xbf16> to vector<8x32xbf16>
    %c0_3 = arith.constant 0 : index
    %c0_4 = arith.constant 0 : index
    %5 = vector.load %arg4[%c0_3, %c0_4] : memref<32x64xbf16, #tpu.memory_space<vmem>>, vector<32x64xbf16>
    %cst = arith.constant dense<0.000000e+00> : vector<8x64xf32>
    %6 = tpu.matmul %4, %5, %cst {dimension_numbers = #tpu.dot_dimension_numbers<[1], [0], [0], [1], [0, 0, 1, 1], [], []>} : vector<8x32xbf16>, vector<32x64xbf16>, vector<8x64xf32> -> vector<8x64xf32>
    %c0_5 = arith.constant 0 : index
    %c0_6 = arith.constant 0 : index
    %7 = vector.load %arg5[%c0_5, %c0_6] : memref<1x64xf32, #tpu.memory_space<vmem>>, vector<1x64xf32>
    %8 = vector.broadcast %7 : vector<1x64xf32> to vector<8x64xf32>
    %9 = arith.addf %6, %8 : vector<8x64xf32>
    %cst_7 = arith.constant 0.000000e+00 : f32
    %10 = vector.broadcast %cst_7 : f32 to vector<8x64xf32>
    %11 = arith.maximumf %9, %10 : vector<8x64xf32>
    %12 = arith.truncf %11 : vector<8x64xf32> to vector<8x64xbf16>
    %c0_8 = arith.constant 0 : index
    %c0_9 = arith.constant 0 : index
    %13 = vector.load %arg11[%c0_8, %c0_9] : memref<8x32xf32, #tpu.memory_space<vmem>>, vector<8x32xf32>
    %c0_10 = arith.constant 0 : index
    %c0_11 = arith.constant 0 : index
    %14 = vector.load %arg6[%c0_10, %c0_11] : memref<64x32xbf16, #tpu.memory_space<vmem>>, vector<64x32xbf16>
    %cst_12 = arith.constant dense<0.000000e+00> : vector<8x32xf32>
    %15 = tpu.matmul %12, %14, %cst_12 {dimension_numbers = #tpu.dot_dimension_numbers<[1], [0], [0], [1], [0, 0, 1, 1], [], []>} : vector<8x64xbf16>, vector<64x32xbf16>, vector<8x32xf32> -> vector<8x32xf32>
    %16 = arith.addf %13, %15 : vector<8x32xf32>
    %c0_13 = arith.constant 0 : index
    %c0_14 = arith.constant 0 : index
    %17 = vector.load %arg11[%c0_13, %c0_14] : memref<8x32xf32, #tpu.memory_space<vmem>>, vector<8x32xf32>
    tpu.vector_store %arg11[%c0_13, %c0_14], %16 {strides = array<i32>} : memref<8x32xf32, #tpu.memory_space<vmem>>, vector<8x32xf32>,
    %c0_i32_15 = arith.constant 0 : i32
    %18 = arith.cmpi eq, %arg2, %c0_i32_15 : i32
    %19 = arith.extui %18 : i1 to i32
    %c0_i32_16 = arith.constant 0 : i32
    %20 = arith.cmpi ne, %19, %c0_i32_16 : i32
    scf.if %20 {
      %21 = arith.extf %4 : vector<8x32xbf16> to vector<8x32xf32>
      %c0_17 = arith.constant 0 : index
      %c0_18 = arith.constant 0 : index
      %22 = vector.load %arg11[%c0_17, %c0_18] : memref<8x32xf32, #tpu.memory_space<vmem>>, vector<8x32xf32>
      %23 = arith.addf %21, %22 : vector<8x32xf32>
      %c0_19 = arith.constant 0 : index
      %c0_20 = arith.constant 0 : index
      %24 = vector.load %arg7[%c0_19, %c0_20] : memref<1x32xf32, #tpu.memory_space<vmem>>, vector<1x32xf32>
      %25 = vector.broadcast %24 : vector<1x32xf32> to vector<8x32xf32>
      %26 = arith.addf %23, %25 : vector<8x32xf32>
      %cst_21 = arith.constant dense<0.000000e+00> : vector<8xf32>
      %27 = vector.multi_reduction <add>, %26, %cst_21 [1] : vector<8x32xf32> to vector<8xf32>
      %28 = vector.shape_cast %27 : vector<8xf32> to vector<8x1xf32>
      %cst_22 = arith.constant 3.200000e+01 : f32
      %29 = vector.broadcast %cst_22 : f32 to vector<8x1xf32>
      %30 = arith.divf %28, %29 : vector<8x1xf32>
      %31 = vector.broadcast %30 : vector<8x1xf32> to vector<8x32xf32>
      %32 = arith.subf %26, %31 : vector<8x32xf32>
      %33 = arith.mulf %32, %32 : vector<8x32xf32>
      %cst_23 = arith.constant dense<0.000000e+00> : vector<8xf32>
      %34 = vector.multi_reduction <add>, %33, %cst_23 [1] : vector<8x32xf32> to vector<8xf32>
      %35 = vector.shape_cast %34 : vector<8xf32> to vector<8x1xf32>
      %cst_24 = arith.constant 3.200000e+01 : f32
      %36 = vector.broadcast %cst_24 : f32 to vector<8x1xf32>
      %37 = arith.divf %35, %36 : vector<8x1xf32>
      %38 = vector.broadcast %30 : vector<8x1xf32> to vector<8x32xf32>
      %39 = arith.subf %26, %38 : vector<8x32xf32>
      %cst_25 = arith.constant 9.99999974E-6 : f32
      %40 = vector.broadcast %cst_25 : f32 to vector<8x1xf32>
      %41 = arith.addf %37, %40 : vector<8x1xf32>
      %42 = math.rsqrt %41 : vector<8x1xf32>
      %43 = vector.broadcast %42 : vector<8x1xf32> to vector<8x32xf32>
      %44 = arith.mulf %39, %43 : vector<8x32xf32>
      %c0_26 = arith.constant 0 : index
      %c0_27 = arith.constant 0 : index
      %45 = vector.load %arg8[%c0_26, %c0_27] : memref<1x32xf32, #tpu.memory_space<vmem>>, vector<1x32xf32>
      %46 = vector.broadcast %45 : vector<1x32xf32> to vector<8x32xf32>
      %47 = arith.mulf %44, %46 : vector<8x32xf32>
      %c0_28 = arith.constant 0 : index
      %c0_29 = arith.constant 0 : index
      %48 = vector.load %arg9[%c0_28, %c0_29] : memref<1x32xf32, #tpu.memory_space<vmem>>, vector<1x32xf32>
      %49 = vector.broadcast %48 : vector<1x32xf32> to vector<8x32xf32>
      %50 = arith.addf %47, %49 : vector<8x32xf32>
      %51 = arith.truncf %50 : vector<8x32xf32> to vector<8x32xbf16>
      %52 = vector.shape_cast %51 : vector<8x32xbf16> to vector<1x8x32xbf16>
      %c0_30 = arith.constant 0 : index
      %c0_31 = arith.constant 0 : index
      %c0_32 = arith.constant 0 : index
      %53 = vector.load %arg10[%c0_30, %c0_31, %c0_32] : memref<1x8x32xbf16, #tpu.memory_space<vmem>>, vector<1x8x32xbf16>
      tpu.vector_store %arg10[%c0_30, %c0_31, %c0_32], %52 {strides = array<i32>} : memref<1x8x32xbf16, #tpu.memory_space<vmem>>, vector<1x8x32xbf16>,
    } else {
    }
    return
  }
  func.func @transform_0(%arg0: i32, %arg1: i32, %arg2: i32) -> (i32, i32, i32) {
    %c0_i32 = arith.constant 0 : i32
    %c0_i32_0 = arith.constant 0 : i32
    return %arg0, %arg1, %c0_i32 : i32, i32, i32
  }
  func.func @transform_1(%arg0: i32, %arg1: i32, %arg2: i32) -> (i32, i32) {
    %c0_i32 = arith.constant 0 : i32
    %c0_i32_0 = arith.constant 0 : i32
    return %c0_i32, %arg2 : i32, i32
  }
  func.func @transform_2(%arg0: i32, %arg1: i32, %arg2: i32) -> (i32, i32) {
    %c0_i32 = arith.constant 0 : i32
    %c0_i32_0 = arith.constant 0 : i32
    return %c0_i32, %arg2 : i32, i32
  }
  func.func @transform_3(%arg0: i32, %arg1: i32, %arg2: i32) -> (i32, i32) {
    %c0_i32 = arith.constant 0 : i32
    %c0_i32_0 = arith.constant 0 : i32
    return %arg2, %c0_i32 : i32, i32
  }
  func.func @transform_4(%arg0: i32, %arg1: i32, %arg2: i32) -> (i32, i32) {
    %c0_i32 = arith.constant 0 : i32
    %c0_i32_0 = arith.constant 0 : i32
    %c0_i32_1 = arith.constant 0 : i32
    return %c0_i32, %c0_i32_0 : i32, i32
  }
  func.func @transform_5(%arg0: i32, %arg1: i32, %arg2: i32) -> (i32, i32) {
    %c0_i32 = arith.constant 0 : i32
    %c0_i32_0 = arith.constant 0 : i32
    %c0_i32_1 = arith.constant 0 : i32
    return %c0_i32, %c0_i32_0 : i32, i32
  }
  func.func @transform_6(%arg0: i32, %arg1: i32, %arg2: i32) -> (i32, i32) {
    %c0_i32 = arith.constant 0 : i32
    %c0_i32_0 = arith.constant 0 : i32
    %c0_i32_1 = arith.constant 0 : i32
    return %c0_i32, %c0_i32_0 : i32, i32
  }
  func.func @transform_7(%arg0: i32, %arg1: i32, %arg2: i32) -> (i32, i32, i32) {
    %c0_i32 = arith.constant 0 : i32
    %c0_i32_0 = arith.constant 0 : i32
    return %arg0, %arg1, %c0_i32 : i32, i32, i32
  }
}

</mosaic_0001>

<llo_original>
// kernel: tpu_custom_call.1
$region0: #{tpu_custom_call.1}
  #allocation0 [shape = 'u32[]', space=smem, size = 0x4, offset = 0x4, fixed_abs, tag = 'smem constant byte address 0x4 - core index']
  #allocation1 [shape = 'u32[144,128]{1,0:T(1,128)}', space=vmem, size = 0x12000, scoped, tag = 'internal scratch']
  %s0 = inlined_call_operand.hbm [shape: f32[8,128], index: 0, kind: input, shape index: {}]
  %s1 = inlined_call_operand.hbm [shape: f32[8,128], index: 1, kind: output, shape index: {}]
  %s2 = sld [smem:[#allocation0]]
  $region41: #{tpu_custom_call.1} parent=0
    _
  %s4 = ssub.s32 1, %s2
  %s5 = scalar_select 0, %s4, %s2
  $region1: #{tpu_custom_call.1} parent=0
    #allocation2 [shape = 'u8[4096]{0}', space=vmem, size = 0x1000, scoped, tag = 'input window, operand 0, single buffered']
    #allocation3 [shape = 's32[2]{0}', space=sflag, size = 0x8, scoped, tag = 'scoped memory for tpu_custom_call.1']
    #allocation4 [shape = 's32[2]{0}', space=sflag, size = 0x8, scoped, tag = 'scoped memory for tpu_custom_call.1']
    #allocation5 [shape = 'u8[4096]{0}', space=vmem, size = 0x1000, scoped, tag = 'output window, operand 0, single buffered']
    %6 = vsyncpa [#allocation3], 0
    %7 = vsyncpa [#allocation4], 0
    loop: start=0, step=1, limit=4
    $region2: #{tpu_custom_call.1} parent=1 // loop_pre_header
      _
    $region3: #{tpu_custom_call.1} parent=1 // loop_header
      %s9 = sphi 0, %s13
      %p10 = scmp.ge.s32.totalorder %s9, 4
      %s17 = sphi 0, %s17
      %s19 = sphi 0, %s17
      %s20 = sphi 0, %s19
      %s34 = sphi 0, %s20
      %s38 = sphi 0, %s38
      %s40 = sphi 0, %s38
      %s41 = sphi 0, %s40
      %s55 = sphi 0, %s41
    $region4: #{tpu_custom_call.1} parent=1 // loop_header_branch
      %12 = sbr.rel (%p10) target = $region8
    $region5: #{tpu_custom_call.1} parent=1 // loop_body
      %s14 = ssub.s32 %s9, 1
      %s15 = ssub.s32 %s9, 2
      %s16 = sadd.s32 %s9, 1
      %s18 = sadd.s32 %s17, 1
      %p21 = scmp.eq.s32.totalorder %s9, 1
      %p22 = scmp.ne.s32.totalorder %s17, %s19
      %p23 = scmp.eq.s32.totalorder %s9, 0
      %p24 = por %p22, %p23
      %p25 = scmp.ne.s32.totalorder %s17, %s19
      %p26 = scmp.eq.s32.totalorder %s14, 1
      %p27 = por %p25, %p26
      %p28 = scmp.ne.s32.totalorder %s19, %s20
      %p29 = scmp.eq.s32.totalorder %s14, 0
      %p30 = por %p28, %p29
      %p31 = scmp.ne.s32.totalorder %s19, %s20
      %p32 = scmp.eq.s32.totalorder %s15, 1
      %p33 = por %p31, %p32
      %p35 = scmp.ne.s32.totalorder %s20, %s34
      %p36 = scmp.eq.s32.totalorder %s15, 0
      %p37 = por %p35, %p36
      %s39 = sadd.s32 %s38, 1
      %p42 = scmp.eq.s32.totalorder %s9, 1
      %p43 = scmp.ne.s32.totalorder %s38, %s40
      %p44 = scmp.eq.s32.totalorder %s9, 0
      %p45 = por %p43, %p44
      %p46 = scmp.ne.s32.totalorder %s38, %s40
      %p47 = scmp.eq.s32.totalorder %s14, 1
      %p48 = por %p46, %p47
      %p49 = scmp.ne.s32.totalorder %s40, %s41
      %p50 = scmp.eq.s32.totalorder %s14, 0
      %p51 = por %p49, %p50
      %p52 = scmp.ne.s32.totalorder %s40, %s41
      %p53 = scmp.eq.s32.totalorder %s15, 1
      %p54 = por %p52, %p53
      %p56 = scmp.ne.s32.totalorder %s41, %s55
      %p57 = scmp.eq.s32.totalorder %s15, 0
      %p58 = por %p56, %p57
      %p59 = scmp.le.s32.totalorder 1, %s9
      %p60 = scmp.lt.s32.totalorder %s9, 3
      %p61 = pnand %p59, %p60
      %p62 = pneg %p61
      // Predicated region
      $region9: #{tpu_custom_call.1} parent=5 // pred_check
        _
      $region10: #{tpu_custom_call.1} parent=5 // pred_check_branch
        %64 = sbr.rel (%p61) target = $region12
      $region11: #{tpu_custom_call.1} parent=5 // pred_region
        %s65 = ssub.s32 %s9, 1
        // Predicated region
        $region13: #{tpu_custom_call.1} parent=11 // pred_check
          %p66 = pneg %p30
        $region14: #{tpu_custom_call.1} parent=11 // pred_check_branch
          %68 = sbr.rel (%p66) target = $region16
        $region15: #{tpu_custom_call.1} parent=11 // pred_region
          %s70 = ssub.s32 128, 128
          %71 = vsyncadd [#allocation3], %s70
          %s73 = sshll.u32 [#allocation2], 4
          %s74 = int_to_ptr.vmem [resolvable:$true] %s73
          %76 = dma.hbm_to_vmem [thread:$0]  %s0, 128, %s74, [#allocation3]
        $region16: #{tpu_custom_call.1} parent=11 // pred_fallthru
          _
      $region12: #{tpu_custom_call.1} parent=5 // pred_fallthru
        _
      %p77 = scmp.lt.s32.totalorder %s9, 2
      // Predicated region
      $region17: #{tpu_custom_call.1} parent=5 // pred_check
        %p78 = pneg %p77
      $region18: #{tpu_custom_call.1} parent=5 // pred_check_branch
        %80 = sbr.rel (%p78) target = $region20
      $region19: #{tpu_custom_call.1} parent=5 // pred_region
        _
      $region20: #{tpu_custom_call.1} parent=5 // pred_fallthru
        _
      %p81 = scmp.le.s32.totalorder 1, %s9
      %p82 = scmp.lt.s32.totalorder %s9, 3
      %p83 = pnand %p81, %p82
      %p84 = pneg %p83
      // Predicated region
      $region21: #{tpu_custom_call.1} parent=5 // pred_check
        _
      $region22: #{tpu_custom_call.1} parent=5 // pred_check_branch
        %86 = sbr.rel (%p83) target = $region24
      $region23: #{tpu_custom_call.1} parent=5 // pred_region
        %s87 = ssub.s32 %s9, 1
        // Predicated region
        $region25: #{tpu_custom_call.1} parent=23 // pred_check
          %p88 = pneg %p30
        $region26: #{tpu_custom_call.1} parent=23 // pred_check_branch
          %90 = sbr.rel (%p88) target = $region28
        $region27: #{tpu_custom_call.1} parent=23 // pred_region
          %91 = dma.done [#allocation3], 128
        $region28: #{tpu_custom_call.1} parent=23 // pred_fallthru
          _
        %p92 = pneg %p30
        %p93 = pneg %p27
        %p94 = pneg %p51
        %p95 = pneg %p48
        %v96 = vld [vmem:[#allocation2] sm:$0xff]
        %v97 = vadd.f32 %v96, 1.0
        %98 = vst [vmem:[#allocation5] sm:$0xff] %v97
        // Predicated region
        $region29: #{tpu_custom_call.1} parent=23 // pred_check
          %p99 = pneg %p48
        $region30: #{tpu_custom_call.1} parent=23 // pred_check_branch
          %101 = sbr.rel (%p99) target = $region32
        $region31: #{tpu_custom_call.1} parent=23 // pred_region
          %s103 = ssub.s32 128, 128
          %104 = vsyncadd [#allocation4], %s103
          %s106 = sshll.u32 [#allocation5], 4
          %s107 = int_to_ptr.vmem [resolvable:$true] %s106
          %109 = dma.vmem_to_hbm [thread:$0]  %s107, 128, %s1, [#allocation4]
        $region32: #{tpu_custom_call.1} parent=23 // pred_fallthru
          _
        // Predicated region
        $region33: #{tpu_custom_call.1} parent=23 // pred_check
          %p110 = pneg %p48
        $region34: #{tpu_custom_call.1} parent=23 // pred_check_branch
          %112 = sbr.rel (%p110) target = $region36
        $region35: #{tpu_custom_call.1} parent=23 // pred_region
          %113 = dma.done [#allocation4], 128
        $region36: #{tpu_custom_call.1} parent=23 // pred_fallthru
          _
      $region24: #{tpu_custom_call.1} parent=5 // pred_fallthru
        _
      %p114 = scmp.le.s32.totalorder 2, %s9
      // Predicated region
      $region37: #{tpu_custom_call.1} parent=5 // pred_check
        %p115 = pneg %p114
      $region38: #{tpu_custom_call.1} parent=5 // pred_check_branch
        %117 = sbr.rel (%p115) target = $region40
      $region39: #{tpu_custom_call.1} parent=5 // pred_region
        %s118 = ssub.s32 %s9, 2
      $region40: #{tpu_custom_call.1} parent=5 // pred_fallthru
        _
    $region6: #{tpu_custom_call.1} parent=1 // loop_footer
      %s13 = sadd.s32 1, %s9
    $region7: #{tpu_custom_call.1} parent=1 // loop_footer_branch
      %8 = sbr.rel target = $region3
    $region8: #{tpu_custom_call.1} parent=1 // loop_exit
      _
    %119 = vsyncpa [#allocation3], 1
    %s120 = scalar_lea.sflag [#allocation3], 1
    %121 = vsyncpa %s120, 1
    %122 = vsyncpa [#allocation4], 1
    %s123 = scalar_lea.sflag [#allocation4], 1
    %124 = vsyncpa %s123, 1

// kernel: transformer_decoder_forward.13
$region0: #{transformer_decoder_forward.13}
  #allocation0 [shape = 'u32[]', space=smem, size = 0x4, offset = 0x4, fixed_abs, tag = 'smem constant byte address 0x4 - core index']
  #allocation1 [shape = 'u32[144,128]{1,0:T(1,128)}', space=vmem, size = 0x12000, scoped, tag = 'internal scratch']
  %s0 = inlined_call_operand.vmem [shape: bf16[2,8,32], index: 0, kind: input, shape index: {}]
  %s1 = inlined_call_operand.vmem [shape: bf16[32,16], index: 1, kind: input, shape index: {}]
  %s2 = inlined_call_operand.vmem [shape: f32[1,16], index: 2, kind: input, shape index: {}]
  %s3 = inlined_call_operand.hbm [shape: f32[2,8,16], index: 3, kind: output, shape index: {}]
  %s4 = sld [smem:[#allocation0]]
  $region45: #{transformer_decoder_forward.13} parent=0
    _
  %s6 = ssub.s32 1, %s4
  %s7 = scalar_select 0, %s6, %s4
  $region1: #{transformer_decoder_forward.13} parent=0
    #allocation2 [shape = 'u8[8192]{0}', space=vmem, size = 0x2000, scoped, tag = 'output window, operand 0']
    #allocation3 [shape = 's32[2]{0}', space=sflag, size = 0x8, scoped, tag = 'scoped memory for transformer_decoder_forward.13']
    %8 = vsyncpa [#allocation3], 0
    %s9 = scalar_lea.sflag [#allocation3], 1
    %10 = vsyncpa %s9, 0
    loop: start=0, step=1, limit=4
    $region2: #{transformer_decoder_forward.13} parent=1 // loop_pre_header
      _
    $region3: #{transformer_decoder_forward.13} parent=1 // loop_header
      %s12 = sphi 0, %s16
      %p13 = scmp.ge.s32.totalorder %s12, 4
      %s19 = sphi 0, %s38
      %s20 = sphi 0, %s34
      %s21 = sphi 0, %s30
      %s22 = sphi 0, %s19
      %s23 = sphi 0, %s20
      %s24 = sphi 0, %s21
      %s25 = sphi 0, %s22
      %s26 = sphi 0, %s23
      %s27 = sphi 0, %s24
      %s43 = sphi 0, %s45
      %s46 = sphi 0, %s43
      %s47 = sphi 0, %s46
      %s63 = sphi 0, %s47
      %s69 = sphi 0, %s71
      %s72 = sphi 0, %s69
      %s73 = sphi 0, %s72
      %s89 = sphi 0, %s73
      %s95 = sphi 0, %s97
      %s98 = sphi 0, %s95
      %s99 = sphi 0, %s98
      %s115 = sphi 0, %s99
      %s123 = sphi 0, %s125
      %s126 = sphi 0, %s123
      %s127 = sphi 0, %s126
      %s143 = sphi 0, %s127
    $region4: #{transformer_decoder_forward.13} parent=1 // loop_header_branch
      %15 = sbr.rel (%p13) target = $region8
    $region5: #{transformer_decoder_forward.13} parent=1 // loop_body
      %s17 = ssub.s32 %s12, 1
      %s18 = ssub.s32 %s12, 2
      %s28 = sadd.s32 1, %s21
      %p29 = scmp.ge.s32.totalorder %s28, 1
      %s30 = scalar_select %p29, 0, %s28
      %s31 = sadd.s32 1, %s20
      %s32 = scalar_select %p29, %s31, %s20
      %p33 = scmp.ge.s32.totalorder %s32, 1
      %s34 = scalar_select %p33, 0, %s32
      %s35 = sadd.s32 1, %s19
      %s36 = scalar_select %p33, %s35, %s19
      %p37 = scmp.ge.s32.totalorder %s36, 2
      %s38 = scalar_select %p37, 0, %s36
      %s39 = ssub.s32 %s19, %s38
      %s40 = ssub.s32 %s20, %s34
      %s41 = sor.u32 %s39, %s40
      %p42 = scmp.eq.s32.totalorder %s41, 0
      %s44 = sadd.s32 %s43, 1
      %s45 = scalar_select %p42, %s43, %s44
      %p48 = pneg %p42
      %p49 = scmp.eq.s32.totalorder %s12, 1
      %p50 = por %p48, %p49
      %p51 = scmp.ne.s32.totalorder %s43, %s46
      %p52 = scmp.eq.s32.totalorder %s12, 0
      %p53 = por %p51, %p52
      %p54 = scmp.ne.s32.totalorder %s43, %s46
      %p55 = scmp.eq.s32.totalorder %s17, 1
      %p56 = por %p54, %p55
      %p57 = scmp.ne.s32.totalorder %s46, %s47
      %p58 = scmp.eq.s32.totalorder %s17, 0
      %p59 = por %p57, %p58
      %p60 = scmp.ne.s32.totalorder %s46, %s47
      %p61 = scmp.eq.s32.totalorder %s18, 1
      %p62 = por %p60, %p61
      %p64 = scmp.ne.s32.totalorder %s47, %s63
      %p65 = scmp.eq.s32.totalorder %s18, 0
      %p66 = por %p64, %p65
      %s67 = ssub.s32 %s21, %s30
      %p68 = scmp.eq.s32.totalorder %s67, 0
      %s70 = sadd.s32 %s69, 1
      %s71 = scalar_select %p68, %s69, %s70
      %p74 = pneg %p68
      %p75 = scmp.eq.s32.totalorder %s12, 1
      %p76 = por %p74, %p75
      %p77 = scmp.ne.s32.totalorder %s69, %s72
      %p78 = scmp.eq.s32.totalorder %s12, 0
      %p79 = por %p77, %p78
      %p80 = scmp.ne.s32.totalorder %s69, %s72
      %p81 = scmp.eq.s32.totalorder %s17, 1
      %p82 = por %p80, %p81
      %p83 = scmp.ne.s32.totalorder %s72, %s73
      %p84 = scmp.eq.s32.totalorder %s17, 0
      %p85 = por %p83, %p84
      %p86 = scmp.ne.s32.totalorder %s72, %s73
      %p87 = scmp.eq.s32.totalorder %s18, 1
      %p88 = por %p86, %p87
      %p90 = scmp.ne.s32.totalorder %s73, %s89
      %p91 = scmp.eq.s32.totalorder %s18, 0
      %p92 = por %p90, %p91
      %s93 = ssub.s32 %s21, %s30
      %p94 = scmp.eq.s32.totalorder %s93, 0
      %s96 = sadd.s32 %s95, 1
      %s97 = scalar_select %p94, %s95, %s96
      %p100 = pneg %p94
      %p101 = scmp.eq.s32.totalorder %s12, 1
      %p102 = por %p100, %p101
      %p103 = scmp.ne.s32.totalorder %s95, %s98
      %p104 = scmp.eq.s32.totalorder %s12, 0
      %p105 = por %p103, %p104
      %p106 = scmp.ne.s32.totalorder %s95, %s98
      %p107 = scmp.eq.s32.totalorder %s17, 1
      %p108 = por %p106, %p107
      %p109 = scmp.ne.s32.totalorder %s98, %s99
      %p110 = scmp.eq.s32.totalorder %s17, 0
      %p111 = por %p109, %p110
      %p112 = scmp.ne.s32.totalorder %s98, %s99
      %p113 = scmp.eq.s32.totalorder %s18, 1
      %p114 = por %p112, %p113
      %p116 = scmp.ne.s32.totalorder %s99, %s115
      %p117 = scmp.eq.s32.totalorder %s18, 0
      %p118 = por %p116, %p117
      %s119 = ssub.s32 %s19, %s38
      %s120 = ssub.s32 %s20, %s34
      %s121 = sor.u32 %s119, %s120
      %p122 = scmp.eq.s32.totalorder %s121, 0
      %s124 = sadd.s32 %s123, 1
      %s125 = scalar_select %p122, %s123, %s124
      %p128 = pneg %p122
      %p129 = scmp.eq.s32.totalorder %s12, 1
      %p130 = por %p128, %p129
      %p131 = scmp.ne.s32.totalorder %s123, %s126
      %p132 = scmp.eq.s32.totalorder %s12, 0
      %p133 = por %p131, %p132
      %p134 = scmp.ne.s32.totalorder %s123, %s126
      %p135 = scmp.eq.s32.totalorder %s17, 1
      %p136 = por %p134, %p135
      %p137 = scmp.ne.s32.totalorder %s126, %s127
      %p138 = scmp.eq.s32.totalorder %s17, 0
      %p139 = por %p137, %p138
      %p140 = scmp.ne.s32.totalorder %s126, %s127
      %p141 = scmp.eq.s32.totalorder %s18, 1
      %p142 = por %p140, %p141
      %p144 = scmp.ne.s32.totalorder %s127, %s143
      %p145 = scmp.eq.s32.totalorder %s18, 0
      %p146 = por %p144, %p145
      %p147 = scmp.le.s32.totalorder 1, %s12
      %p148 = scmp.lt.s32.totalorder %s12, 3
      %p149 = pnand %p147, %p148
      %p150 = pneg %p149
      // Predicated region
      $region9: #{transformer_decoder_forward.13} parent=5 // pred_check
        _
      $region10: #{transformer_decoder_forward.13} parent=5 // pred_check_branch
        %152 = sbr.rel (%p149) target = $region12
      $region11: #{transformer_decoder_forward.13} parent=5 // pred_region
        %s153 = ssub.s32 %s12, 1
        // Predicated region
        $region13: #{transformer_decoder_forward.13} parent=11 // pred_check
          %p154 = pneg %p85
        $region14: #{transformer_decoder_forward.13} parent=11 // pred_check_branch
          %156 = sbr.rel (%p154) target = $region16
        $region15: #{transformer_decoder_forward.13} parent=11 // pred_region
          %p157 = scmp.lt.s32.totalorder %s24, 0
          %s158 = scalar_select %p157, %s24, 0
          %s159 = smul.addr %s158, 4
          %s160 = scalar_lea.vmem %s1, %s159
        $region16: #{transformer_decoder_forward.13} parent=11 // pred_fallthru
          _
        // Predicated region
        $region17: #{transformer_decoder_forward.13} parent=11 // pred_check
          %p161 = pneg %p111
        $region18: #{transformer_decoder_forward.13} parent=11 // pred_check_branch
          %163 = sbr.rel (%p161) target = $region20
        $region19: #{transformer_decoder_forward.13} parent=11 // pred_region
          %p164 = scmp.lt.s32.totalorder %s24, 0
          %s165 = scalar_select %p164, %s24, 0
          %s166 = scalar_lea.vmem %s2, %s165
        $region20: #{transformer_decoder_forward.13} parent=11 // pred_fallthru
          _
      $region12: #{transformer_decoder_forward.13} parent=5 // pred_fallthru
        _
      %p167 = scmp.lt.s32.totalorder %s12, 2
      // Predicated region
      $region21: #{transformer_decoder_forward.13} parent=5 // pred_check
        %p168 = pneg %p167
      $region22: #{transformer_decoder_forward.13} parent=5 // pred_check_branch
        %170 = sbr.rel (%p168) target = $region24
      $region23: #{transformer_decoder_forward.13} parent=5 // pred_region
        // Predicated region
        $region25: #{transformer_decoder_forward.13} parent=23 // pred_check
          %p171 = pneg %p53
        $region26: #{transformer_decoder_forward.13} parent=23 // pred_check_branch
          %173 = sbr.rel (%p171) target = $region28
        $region27: #{transformer_decoder_forward.13} parent=23 // pred_region
          %p174 = scmp.lt.s32.totalorder %s19, 1
          %s175 = scalar_select %p174, %s19, 1
          %p176 = scmp.lt.s32.totalorder %s20, 0
          %s177 = scalar_select %p176, %s20, 0
          %s178 = sadd.s32 %s177, %s175
          %s179 = smul.addr %s178, 4
          %s180 = scalar_lea.vmem %s0, %s179
        $region28: #{transformer_decoder_forward.13} parent=23 // pred_fallthru
          _
      $region24: #{transformer_decoder_forward.13} parent=5 // pred_fallthru
        _
      %p181 = scmp.le.s32.totalorder 1, %s12
      %p182 = scmp.lt.s32.totalorder %s12, 3
      %p183 = pnand %p181, %p182
      %p184 = pneg %p183
      // Predicated region
      $region29: #{transformer_decoder_forward.13} parent=5 // pred_check
        _
      $region30: #{transformer_decoder_forward.13} parent=5 // pred_check_branch
        %186 = sbr.rel (%p183) target = $region32
      $region31: #{transformer_decoder_forward.13} parent=5 // pred_region
        %s187 = ssub.s32 %s12, 1
        %p188 = scmp.lt.s32.totalorder %s22, 1
        %s189 = scalar_select %p188, %s22, 1
        %p190 = scmp.lt.s32.totalorder %s23, 0
        %s191 = scalar_select %p190, %s23, 0
        %s192 = sadd.s32 %s191, %s189
        %s193 = smul.addr %s192, 4
        %s194 = scalar_lea.vmem %s0, %s193
        %p195 = pneg %p59
        %p196 = pneg %p56
        %p197 = scmp.lt.s32.totalorder %s24, 0
        %s198 = scalar_select %p197, %s24, 0
        %s199 = smul.addr %s198, 4
        %s200 = scalar_lea.vmem %s1, %s199
        %p201 = pneg %p85
        %p202 = pneg %p82
        %p203 = scmp.lt.s32.totalorder %s24, 0
        %s204 = scalar_select %p203, %s24, 0
        %s205 = scalar_lea.vmem %s2, %s204
        %p206 = pneg %p111
        %p207 = pneg %p108
        %p208 = pneg %p139
        %p209 = pneg %p136
        %s210 = sand.u32 %s126, 1
        %s211 = scalar_lea.sflag [#allocation3], %s210
        %s212 = sand.u32 %s126, 1
        %s213 = smul.addr %s212, 8
        %s214 = scalar_lea.vmem [#allocation2], %s213
        %p215 = scmp.lt.s32.totalorder %s22, 1
        %s216 = scalar_select %p215, %s22, 1
        %p217 = scmp.lt.s32.totalorder %s23, 0
        %s218 = scalar_select %p217, %s23, 0
        %s219 = sadd.s32 %s218, %s216
        %s220 = smul.addr %s219, 4
        %s221 = scalar_lea.vmem %s0, %s220
        %p222 = scmp.lt.s32.totalorder %s24, 0
        %s223 = scalar_select %p222, %s24, 0
        %s224 = smul.addr %s223, 4
        %s225 = scalar_lea.vmem %s1, %s224
        %p226 = scmp.lt.s32.totalorder %s24, 0
        %s227 = scalar_select %p226, %s24, 0
        %s228 = scalar_lea.vmem %s2, %s227
        %v230 = vld [vmem:[%s221] sm:$0xf]
        %v231 = vld [vmem:[%s225] sm:$0xf]
        %v232 = vld [vmem:[%s225 + $0x4] sm:$0xf]
        %v233 = vld [vmem:[%s225 + $0x8] sm:$0xf]
        %v234 = vld [vmem:[%s225 + $0xc] sm:$0xf]
        %v235 = vld [vmem:[%s228] sm:$0x1]
        %v237 = vlaneseq
        %v238 = vshrl.u32 %v237, 7
        %v239 = vsub.s32 0, %v238
        %v240 = vrot.slane %v235, %v239
        %v246 = vunpack.c.l.b16 %v231
        %v247 = vunpack.c.l.b16 %v232
        %v248 = vunpack.c.l.b16 %v233
        %v249 = vunpack.c.l.b16 %v234
        %v250 = vpack.c.b16 %v247, %v246
        %v251 = vpack.c.b16 %v249, %v248
        %vm254 = vcmask 261120
        %v256 = vsel %vm254, %v230, 0
        %258 = vmatprep.subr.bf16.mxu0 0
        %259 = vmatpush1.bf16.msra.mxu0 %v250
        %260 = vmatprep.subr.bf16.mxu0 0
        %261 = vmatpush1.bf16.msra.mxu0 %v251
        %262 = vmatprep.subr.bf16.mxu0 0
        %263 = vmatpush1.bf16.msra.mxu0 0
        %264 = vmatprep.subr.bf16.mxu0 0
        %265 = vmatpush1.bf16.msra.mxu0 0
        %266 = vmatprep.subr.bf16.mxu0 0
        %267 = vmatpush1.bf16.msra.mxu0 0
        %268 = vmatprep.subr.bf16.mxu0 0
        %269 = vmatpush1.bf16.msra.mxu0 0
        %270 = vmatprep.subr.bf16.mxu0 0
        %271 = vmatpush1.bf16.msra.mxu0 0
        %272 = vmatprep.subr.bf16.mxu0 0
        %273 = vmatpush1.bf16.msra.mxu0 0
        %274 = vmatprep.subr.bf16.mxu0 0
        %275 = vmatpush1.bf16.msra.mxu0 0
        %276 = vmatprep.subr.bf16.mxu0 0
        %277 = vmatpush1.bf16.msra.mxu0 0
        %278 = vmatprep.subr.bf16.mxu0 0
        %279 = vmatpush1.bf16.msra.mxu0 0
        %280 = vmatprep.subr.bf16.mxu0 0
        %281 = vmatpush1.bf16.msra.mxu0 0
        %282 = vmatprep.subr.bf16.mxu0 0
        %283 = vmatpush1.bf16.msra.mxu0 0
        %284 = vmatprep.subr.bf16.mxu0 0
        %285 = vmatpush1.bf16.msra.mxu0 0
        %286 = vmatprep.subr.bf16.mxu0 0
        %287 = vmatpush1.bf16.msra.mxu0 0
        %288 = vmatprep.subr.bf16.mxu0 0
        %289 = vmatpush1.bf16.msra.mxu0 0
        %290 = vmatprep.mubr.bf16.mxu0 0
        %291 = vmatmul.mubr.bf16.gmra.mrb[0].mxu0 %v256
        %v292 = vpop.f32.mrb[0].mxu0
        %v293 = vadd.f32 %v240, %v292
        %v294 = vpop.f32.mrb[0].mxu0
        %v295 = vpop.f32.mrb[0].mxu0
        %v296 = vpop.f32.mrb[0].mxu0
        %297 = vdwg.mxu0
        %vm298 = vcmask 130048
        %v299 = vsel %vm298, %v293, -inf
        %300 = vmax.xlane.f32.xlu0 %v299
        %v301 = vpop.xlane.xlu0 %300
        %v302 = vsub.f32 %v293, %v301
        %v303 = vmul.f32 %v302, 1.442695
        %v304 = vpow.pop %v303
        %v305 = vsel %vm298, %v304, 0.0
        %306 = vadd.xlane.f32.xlu0 %v305
        %v307 = vpop.xlane.xlu0 %306
        %v308 = vlog2.pop %v307
        %v309 = vmul.f32 %v308, 0.6931472
        %v310 = vsub.f32 %v302, %v309
        %311 = vst.msk [vmem:[%s214] sm:$0xff] %vm298, %v310
        %s312 = sand.u32 %s126, 1
        %s313 = scalar_lea.sflag [#allocation3], %s312
        %s314 = sand.u32 %s126, 1
        %s315 = smul.addr %s314, 8
        %s316 = scalar_lea.vmem [#allocation2], %s315
        // Predicated region
        $region33: #{transformer_decoder_forward.13} parent=31 // pred_check
          %p317 = pneg %p136
        $region34: #{transformer_decoder_forward.13} parent=31 // pred_check_branch
          %319 = sbr.rel (%p317) target = $region36
        $region35: #{transformer_decoder_forward.13} parent=31 // pred_region
          %s321 = ssub.s32 128, 128
          %322 = vsyncadd %s313, %s321
          %s323 = sadd.s32 %s23, %s22
          %s324 = smul.addr %s323, 128
          %s325 = scalar_lea.hbm %s3, %s324
          %s327 = sshll.u32 %s316, 4
          %s328 = int_to_ptr.vmem [resolvable:$true] %s327
          %330 = dma.vmem_to_hbm [thread:$0]  %s328, 128, %s325, %s313
        $region36: #{transformer_decoder_forward.13} parent=31 // pred_fallthru
          _
      $region32: #{transformer_decoder_forward.13} parent=5 // pred_fallthru
        _
      %p331 = scmp.le.s32.totalorder 2, %s12
      // Predicated region
      $region37: #{transformer_decoder_forward.13} parent=5 // pred_check
        %p332 = pneg %p331
      $region38: #{transformer_decoder_forward.13} parent=5 // pred_check_branch
        %334 = sbr.rel (%p332) target = $region40
      $region39: #{transformer_decoder_forward.13} parent=5 // pred_region
        %s335 = ssub.s32 %s12, 2
        // Predicated region
        $region41: #{transformer_decoder_forward.13} parent=39 // pred_check
          %p336 = pneg %p142
        $region42: #{transformer_decoder_forward.13} parent=39 // pred_check_branch
          %338 = sbr.rel (%p336) target = $region44
        $region43: #{transformer_decoder_forward.13} parent=39 // pred_region
          %s339 = sand.u32 %s127, 1
          %s340 = scalar_lea.sflag [#allocation3], %s339
          %s341 = sand.u32 %s127, 1
          %s342 = smul.addr %s341, 8
          %s343 = scalar_lea.vmem [#allocation2], %s342
          %344 = dma.done %s340, 128
        $region44: #{transformer_decoder_forward.13} parent=39 // pred_fallthru
          _
      $region40: #{transformer_decoder_forward.13} parent=5 // pred_fallthru
        _
    $region6: #{transformer_decoder_forward.13} parent=1 // loop_footer
      %s16 = sadd.s32 1, %s12
    $region7: #{transformer_decoder_forward.13} parent=1 // loop_footer_branch
      %11 = sbr.rel target = $region3
    $region8: #{transformer_decoder_forward.13} parent=1 // loop_exit
      _
    %345 = vsyncpa [#allocation3], 1
    %s346 = scalar_lea.sflag [#allocation3], 1
    %347 = vsyncpa %s346, 1

// kernel: transformer_decoder_forward.9
$region0: #{transformer_decoder_forward.9}
  #allocation0 [shape = 'u32[]', space=smem, size = 0x4, offset = 0x4, fixed_abs, tag = 'smem constant byte address 0x4 - core index']
  #allocation1 [shape = 'u32[144,128]{1,0:T(1,128)}', space=vmem, size = 0x12000, scoped, tag = 'internal scratch']
  #allocation2 [shape = 'f32[8,32]{1,0:T(8,128)}', space=vmem, size = 0x1000, scoped, tag = 'scratch operand']
  %s0 = inlined_call_operand.vmem [shape: bf16[2,8,32], index: 0, kind: input, shape index: {}]
  %s1 = inlined_call_operand.vmem [shape: bf16[32,64], index: 1, kind: input, shape index: {}]
  %s2 = inlined_call_operand.vmem [shape: f32[1,64], index: 2, kind: input, shape index: {}]
  %s3 = inlined_call_operand.vmem [shape: bf16[64,32], index: 3, kind: input, shape index: {}]
  %s4 = inlined_call_operand.vmem [shape: f32[1,32], index: 4, kind: input, shape index: {}]
  %s5 = inlined_call_operand.vmem [shape: f32[1,32], index: 5, kind: input, shape index: {}]
  %s6 = inlined_call_operand.vmem [shape: f32[1,32], index: 6, kind: input, shape index: {}]
  %s7 = inlined_call_operand.vmem [shape: bf16[2,8,32], index: 7, kind: output, shape index: {}]
  %s8 = sld [smem:[#allocation0]]
  $region69: #{transformer_decoder_forward.9} parent=0
    _
  %s10 = ssub.s32 1, %s8
  %s11 = scalar_select 0, %s10, %s8
  loop: start=0, step=1, limit=4
  $region2: #{transformer_decoder_forward.9} parent=0 // loop_pre_header
    _
  $region3: #{transformer_decoder_forward.9} parent=0 // loop_header
    %s13 = sphi 0, %s17
    %p14 = scmp.ge.s32.totalorder %s13, 4
    %s20 = sphi 0, %s39
    %s21 = sphi 0, %s35
    %s22 = sphi 0, %s31
    %s23 = sphi 0, %s20
    %s24 = sphi 0, %s21
    %s25 = sphi 0, %s22
    %s26 = sphi 0, %s23
    %s27 = sphi 0, %s24
    %s28 = sphi 0, %s25
    %s44 = sphi 0, %s46
    %s47 = sphi 0, %s44
    %s48 = sphi 0, %s47
    %s64 = sphi 0, %s48
    %s70 = sphi 0, %s72
    %s73 = sphi 0, %s70
    %s74 = sphi 0, %s73
    %s90 = sphi 0, %s74
    %s96 = sphi 0, %s98
    %s99 = sphi 0, %s96
    %s100 = sphi 0, %s99
    %s116 = sphi 0, %s100
    %s122 = sphi 0, %s124
    %s125 = sphi 0, %s122
    %s126 = sphi 0, %s125
    %s142 = sphi 0, %s126
    %s146 = sphi 0, %s146
    %s148 = sphi 0, %s146
    %s149 = sphi 0, %s148
    %s163 = sphi 0, %s149
    %s167 = sphi 0, %s167
    %s169 = sphi 0, %s167
    %s170 = sphi 0, %s169
    %s184 = sphi 0, %s170
    %s188 = sphi 0, %s188
    %s190 = sphi 0, %s188
    %s191 = sphi 0, %s190
    %s205 = sphi 0, %s191
    %s213 = sphi 0, %s215
    %s216 = sphi 0, %s213
    %s217 = sphi 0, %s216
    %s233 = sphi 0, %s217
  $region4: #{transformer_decoder_forward.9} parent=0 // loop_header_branch
    %16 = sbr.rel (%p14) target = $region8
  $region5: #{transformer_decoder_forward.9} parent=0 // loop_body
    %s18 = ssub.s32 %s13, 1
    %s19 = ssub.s32 %s13, 2
    %s29 = sadd.s32 1, %s22
    %p30 = scmp.ge.s32.totalorder %s29, 1
    %s31 = scalar_select %p30, 0, %s29
    %s32 = sadd.s32 1, %s21
    %s33 = scalar_select %p30, %s32, %s21
    %p34 = scmp.ge.s32.totalorder %s33, 1
    %s35 = scalar_select %p34, 0, %s33
    %s36 = sadd.s32 1, %s20
    %s37 = scalar_select %p34, %s36, %s20
    %p38 = scmp.ge.s32.totalorder %s37, 2
    %s39 = scalar_select %p38, 0, %s37
    %s40 = ssub.s32 %s20, %s39
    %s41 = ssub.s32 %s21, %s35
    %s42 = sor.u32 %s40, %s41
    %p43 = scmp.eq.s32.totalorder %s42, 0
    %s45 = sadd.s32 %s44, 1
    %s46 = scalar_select %p43, %s44, %s45
    %p49 = pneg %p43
    %p50 = scmp.eq.s32.totalorder %s13, 1
    %p51 = por %p49, %p50
    %p52 = scmp.ne.s32.totalorder %s44, %s47
    %p53 = scmp.eq.s32.totalorder %s13, 0
    %p54 = por %p52, %p53
    %p55 = scmp.ne.s32.totalorder %s44, %s47
    %p56 = scmp.eq.s32.totalorder %s18, 1
    %p57 = por %p55, %p56
    %p58 = scmp.ne.s32.totalorder %s47, %s48
    %p59 = scmp.eq.s32.totalorder %s18, 0
    %p60 = por %p58, %p59
    %p61 = scmp.ne.s32.totalorder %s47, %s48
    %p62 = scmp.eq.s32.totalorder %s19, 1
    %p63 = por %p61, %p62
    %p65 = scmp.ne.s32.totalorder %s48, %s64
    %p66 = scmp.eq.s32.totalorder %s19, 0
    %p67 = por %p65, %p66
    %s68 = ssub.s32 %s22, %s31
    %p69 = scmp.eq.s32.totalorder %s68, 0
    %s71 = sadd.s32 %s70, 1
    %s72 = scalar_select %p69, %s70, %s71
    %p75 = pneg %p69
    %p76 = scmp.eq.s32.totalorder %s13, 1
    %p77 = por %p75, %p76
    %p78 = scmp.ne.s32.totalorder %s70, %s73
    %p79 = scmp.eq.s32.totalorder %s13, 0
    %p80 = por %p78, %p79
    %p81 = scmp.ne.s32.totalorder %s70, %s73
    %p82 = scmp.eq.s32.totalorder %s18, 1
    %p83 = por %p81, %p82
    %p84 = scmp.ne.s32.totalorder %s73, %s74
    %p85 = scmp.eq.s32.totalorder %s18, 0
    %p86 = por %p84, %p85
    %p87 = scmp.ne.s32.totalorder %s73, %s74
    %p88 = scmp.eq.s32.totalorder %s19, 1
    %p89 = por %p87, %p88
    %p91 = scmp.ne.s32.totalorder %s74, %s90
    %p92 = scmp.eq.s32.totalorder %s19, 0
    %p93 = por %p91, %p92
    %s94 = ssub.s32 %s22, %s31
    %p95 = scmp.eq.s32.totalorder %s94, 0
    %s97 = sadd.s32 %s96, 1
    %s98 = scalar_select %p95, %s96, %s97
    %p101 = pneg %p95
    %p102 = scmp.eq.s32.totalorder %s13, 1
    %p103 = por %p101, %p102
    %p104 = scmp.ne.s32.totalorder %s96, %s99
    %p105 = scmp.eq.s32.totalorder %s13, 0
    %p106 = por %p104, %p105
    %p107 = scmp.ne.s32.totalorder %s96, %s99
    %p108 = scmp.eq.s32.totalorder %s18, 1
    %p109 = por %p107, %p108
    %p110 = scmp.ne.s32.totalorder %s99, %s100
    %p111 = scmp.eq.s32.totalorder %s18, 0
    %p112 = por %p110, %p111
    %p113 = scmp.ne.s32.totalorder %s99, %s100
    %p114 = scmp.eq.s32.totalorder %s19, 1
    %p115 = por %p113, %p114
    %p117 = scmp.ne.s32.totalorder %s100, %s116
    %p118 = scmp.eq.s32.totalorder %s19, 0
    %p119 = por %p117, %p118
    %s120 = ssub.s32 %s22, %s31
    %p121 = scmp.eq.s32.totalorder %s120, 0
    %s123 = sadd.s32 %s122, 1
    %s124 = scalar_select %p121, %s122, %s123
    %p127 = pneg %p121
    %p128 = scmp.eq.s32.totalorder %s13, 1
    %p129 = por %p127, %p128
    %p130 = scmp.ne.s32.totalorder %s122, %s125
    %p131 = scmp.eq.s32.totalorder %s13, 0
    %p132 = por %p130, %p131
    %p133 = scmp.ne.s32.totalorder %s122, %s125
    %p134 = scmp.eq.s32.totalorder %s18, 1
    %p135 = por %p133, %p134
    %p136 = scmp.ne.s32.totalorder %s125, %s126
    %p137 = scmp.eq.s32.totalorder %s18, 0
    %p138 = por %p136, %p137
    %p139 = scmp.ne.s32.totalorder %s125, %s126
    %p140 = scmp.eq.s32.totalorder %s19, 1
    %p141 = por %p139, %p140
    %p143 = scmp.ne.s32.totalorder %s126, %s142
    %p144 = scmp.eq.s32.totalorder %s19, 0
    %p145 = por %p143, %p144
    %s147 = sadd.s32 %s146, 1
    %p150 = scmp.eq.s32.totalorder %s13, 1
    %p151 = scmp.ne.s32.totalorder %s146, %s148
    %p152 = scmp.eq.s32.totalorder %s13, 0
    %p153 = por %p151, %p152
    %p154 = scmp.ne.s32.totalorder %s146, %s148
    %p155 = scmp.eq.s32.totalorder %s18, 1
    %p156 = por %p154, %p155
    %p157 = scmp.ne.s32.totalorder %s148, %s149
    %p158 = scmp.eq.s32.totalorder %s18, 0
    %p159 = por %p157, %p158
    %p160 = scmp.ne.s32.totalorder %s148, %s149
    %p161 = scmp.eq.s32.totalorder %s19, 1
    %p162 = por %p160, %p161
    %p164 = scmp.ne.s32.totalorder %s149, %s163
    %p165 = scmp.eq.s32.totalorder %s19, 0
    %p166 = por %p164, %p165
    %s168 = sadd.s32 %s167, 1
    %p171 = scmp.eq.s32.totalorder %s13, 1
    %p172 = scmp.ne.s32.totalorder %s167, %s169
    %p173 = scmp.eq.s32.totalorder %s13, 0
    %p174 = por %p172, %p173
    %p175 = scmp.ne.s32.totalorder %s167, %s169
    %p176 = scmp.eq.s32.totalorder %s18, 1
    %p177 = por %p175, %p176
    %p178 = scmp.ne.s32.totalorder %s169, %s170
    %p179 = scmp.eq.s32.totalorder %s18, 0
    %p180 = por %p178, %p179
    %p181 = scmp.ne.s32.totalorder %s169, %s170
    %p182 = scmp.eq.s32.totalorder %s19, 1
    %p183 = por %p181, %p182
    %p185 = scmp.ne.s32.totalorder %s170, %s184
    %p186 = scmp.eq.s32.totalorder %s19, 0
    %p187 = por %p185, %p186
    %s189 = sadd.s32 %s188, 1
    %p192 = scmp.eq.s32.totalorder %s13, 1
    %p193 = scmp.ne.s32.totalorder %s188, %s190
    %p194 = scmp.eq.s32.totalorder %s13, 0
    %p195 = por %p193, %p194
    %p196 = scmp.ne.s32.totalorder %s188, %s190
    %p197 = scmp.eq.s32.totalorder %s18, 1
    %p198 = por %p196, %p197
    %p199 = scmp.ne.s32.totalorder %s190, %s191
    %p200 = scmp.eq.s32.totalorder %s18, 0
    %p201 = por %p199, %p200
    %p202 = scmp.ne.s32.totalorder %s190, %s191
    %p203 = scmp.eq.s32.totalorder %s19, 1
    %p204 = por %p202, %p203
    %p206 = scmp.ne.s32.totalorder %s191, %s205
    %p207 = scmp.eq.s32.totalorder %s19, 0
    %p208 = por %p206, %p207
    %s209 = ssub.s32 %s20, %s39
    %s210 = ssub.s32 %s21, %s35
    %s211 = sor.u32 %s209, %s210
    %p212 = scmp.eq.s32.totalorder %s211, 0
    %s214 = sadd.s32 %s213, 1
    %s215 = scalar_select %p212, %s213, %s214
    %p218 = pneg %p212
    %p219 = scmp.eq.s32.totalorder %s13, 1
    %p220 = por %p218, %p219
    %p221 = scmp.ne.s32.totalorder %s213, %s216
    %p222 = scmp.eq.s32.totalorder %s13, 0
    %p223 = por %p221, %p222
    %p224 = scmp.ne.s32.totalorder %s213, %s216
    %p225 = scmp.eq.s32.totalorder %s18, 1
    %p226 = por %p224, %p225
    %p227 = scmp.ne.s32.totalorder %s216, %s217
    %p228 = scmp.eq.s32.totalorder %s18, 0
    %p229 = por %p227, %p228
    %p230 = scmp.ne.s32.totalorder %s216, %s217
    %p231 = scmp.eq.s32.totalorder %s19, 1
    %p232 = por %p230, %p231
    %p234 = scmp.ne.s32.totalorder %s217, %s233
    %p235 = scmp.eq.s32.totalorder %s19, 0
    %p236 = por %p234, %p235
    %p237 = scmp.le.s32.totalorder 1, %s13
    %p238 = scmp.lt.s32.totalorder %s13, 3
    %p239 = pnand %p237, %p238
    %p240 = pneg %p239
    // Predicated region
    $region9: #{transformer_decoder_forward.9} parent=5 // pred_check
      _
    $region10: #{transformer_decoder_forward.9} parent=5 // pred_check_branch
      %242 = sbr.rel (%p239) target = $region12
    $region11: #{transformer_decoder_forward.9} parent=5 // pred_region
      %s243 = ssub.s32 %s13, 1
      // Predicated region
      $region13: #{transformer_decoder_forward.9} parent=11 // pred_check
        %p244 = pneg %p86
      $region14: #{transformer_decoder_forward.9} parent=11 // pred_check_branch
        %246 = sbr.rel (%p244) target = $region16
      $region15: #{transformer_decoder_forward.9} parent=11 // pred_region
        %p247 = scmp.lt.s32.totalorder %s25, 0
        %s248 = scalar_select %p247, %s25, 0
        %s249 = smul.addr %s248, 4
        %s250 = scalar_lea.vmem %s1, %s249
      $region16: #{transformer_decoder_forward.9} parent=11 // pred_fallthru
        _
      // Predicated region
      $region17: #{transformer_decoder_forward.9} parent=11 // pred_check
        %p251 = pneg %p112
      $region18: #{transformer_decoder_forward.9} parent=11 // pred_check_branch
        %253 = sbr.rel (%p251) target = $region20
      $region19: #{transformer_decoder_forward.9} parent=11 // pred_region
        %p254 = scmp.lt.s32.totalorder %s25, 0
        %s255 = scalar_select %p254, %s25, 0
        %s256 = scalar_lea.vmem %s2, %s255
      $region20: #{transformer_decoder_forward.9} parent=11 // pred_fallthru
        _
      // Predicated region
      $region21: #{transformer_decoder_forward.9} parent=11 // pred_check
        %p257 = pneg %p138
      $region22: #{transformer_decoder_forward.9} parent=11 // pred_check_branch
        %259 = sbr.rel (%p257) target = $region24
      $region23: #{transformer_decoder_forward.9} parent=11 // pred_region
        %s260 = smul.u32 8, %s25
        %p261 = scmp.lt.s32.totalorder %s260, 7
        %s262 = scalar_select %p261, %s260, 7
        %s263 = smul.addr %s262, 4
        %s264 = scalar_lea.vmem %s3, %s263
        %s265 = smul.u32 8, %s25
      $region24: #{transformer_decoder_forward.9} parent=11 // pred_fallthru
        _
      // Predicated region
      $region25: #{transformer_decoder_forward.9} parent=11 // pred_check
        %p266 = pneg %p159
      $region26: #{transformer_decoder_forward.9} parent=11 // pred_check_branch
        %268 = sbr.rel (%p266) target = $region28
      $region27: #{transformer_decoder_forward.9} parent=11 // pred_region
        _
      $region28: #{transformer_decoder_forward.9} parent=11 // pred_fallthru
        _
      // Predicated region
      $region29: #{transformer_decoder_forward.9} parent=11 // pred_check
        %p269 = pneg %p180
      $region30: #{transformer_decoder_forward.9} parent=11 // pred_check_branch
        %271 = sbr.rel (%p269) target = $region32
      $region31: #{transformer_decoder_forward.9} parent=11 // pred_region
        _
      $region32: #{transformer_decoder_forward.9} parent=11 // pred_fallthru
        _
      // Predicated region
      $region33: #{transformer_decoder_forward.9} parent=11 // pred_check
        %p272 = pneg %p201
      $region34: #{transformer_decoder_forward.9} parent=11 // pred_check_branch
        %274 = sbr.rel (%p272) target = $region36
      $region35: #{transformer_decoder_forward.9} parent=11 // pred_region
        _
      $region36: #{transformer_decoder_forward.9} parent=11 // pred_fallthru
        _
    $region12: #{transformer_decoder_forward.9} parent=5 // pred_fallthru
      _
    %p275 = scmp.lt.s32.totalorder %s13, 2
    // Predicated region
    $region37: #{transformer_decoder_forward.9} parent=5 // pred_check
      %p276 = pneg %p275
    $region38: #{transformer_decoder_forward.9} parent=5 // pred_check_branch
      %278 = sbr.rel (%p276) target = $region40
    $region39: #{transformer_decoder_forward.9} parent=5 // pred_region
      // Predicated region
      $region41: #{transformer_decoder_forward.9} parent=39 // pred_check
        %p279 = pneg %p54
      $region42: #{transformer_decoder_forward.9} parent=39 // pred_check_branch
        %281 = sbr.rel (%p279) target = $region44
      $region43: #{transformer_decoder_forward.9} parent=39 // pred_region
        %p282 = scmp.lt.s32.totalorder %s20, 1
        %s283 = scalar_select %p282, %s20, 1
        %p284 = scmp.lt.s32.totalorder %s21, 0
        %s285 = scalar_select %p284, %s21, 0
        %s286 = sadd.s32 %s285, %s283
        %s287 = smul.addr %s286, 4
        %s288 = scalar_lea.vmem %s0, %s287
      $region44: #{transformer_decoder_forward.9} parent=39 // pred_fallthru
        _
    $region40: #{transformer_decoder_forward.9} parent=5 // pred_fallthru
      _
    %p289 = scmp.le.s32.totalorder 1, %s13
    %p290 = scmp.lt.s32.totalorder %s13, 3
    %p291 = pnand %p289, %p290
    %p292 = pneg %p291
    // Predicated region
    $region45: #{transformer_decoder_forward.9} parent=5 // pred_check
      _
    $region46: #{transformer_decoder_forward.9} parent=5 // pred_check_branch
      %294 = sbr.rel (%p291) target = $region48
    $region47: #{transformer_decoder_forward.9} parent=5 // pred_region
      %s295 = ssub.s32 %s13, 1
      %p296 = scmp.lt.s32.totalorder %s23, 1
      %s297 = scalar_select %p296, %s23, 1
      %p298 = scmp.lt.s32.totalorder %s24, 0
      %s299 = scalar_select %p298, %s24, 0
      %s300 = sadd.s32 %s299, %s297
      %s301 = smul.addr %s300, 4
      %s302 = scalar_lea.vmem %s0, %s301
      %p303 = pneg %p60
      %p304 = pneg %p57
      %p305 = scmp.lt.s32.totalorder %s25, 0
      %s306 = scalar_select %p305, %s25, 0
      %s307 = smul.addr %s306, 4
      %s308 = scalar_lea.vmem %s1, %s307
      %p309 = pneg %p86
      %p310 = pneg %p83
      %p311 = scmp.lt.s32.totalorder %s25, 0
      %s312 = scalar_select %p311, %s25, 0
      %s313 = scalar_lea.vmem %s2, %s312
      %p314 = pneg %p112
      %p315 = pneg %p109
      %s316 = smul.u32 8, %s25
      %p317 = scmp.lt.s32.totalorder %s316, 7
      %s318 = scalar_select %p317, %s316, 7
      %s319 = smul.addr %s318, 4
      %s320 = scalar_lea.vmem %s3, %s319
      %p321 = pneg %p138
      %p322 = pneg %p135
      %p323 = pneg %p159
      %p324 = pneg %p156
      %p325 = pneg %p180
      %p326 = pneg %p177
      %p327 = pneg %p201
      %p328 = pneg %p198
      %p329 = pneg %p229
      %p330 = pneg %p226
      %p331 = scmp.lt.s32.totalorder %s23, 1
      %s332 = scalar_select %p331, %s23, 1
      %p333 = scmp.lt.s32.totalorder %s24, 0
      %s334 = scalar_select %p333, %s24, 0
      %s335 = sadd.s32 %s334, %s332
      %s336 = smul.addr %s335, 4
      %s337 = scalar_lea.vmem %s7, %s336
      %p338 = scmp.lt.s32.totalorder %s23, 1
      %s339 = scalar_select %p338, %s23, 1
      %p340 = scmp.lt.s32.totalorder %s24, 0
      %s341 = scalar_select %p340, %s24, 0
      %s342 = sadd.s32 %s341, %s339
      %s343 = smul.addr %s342, 4
      %s344 = scalar_lea.vmem %s0, %s343
      %p345 = scmp.lt.s32.totalorder %s25, 0
      %s346 = scalar_select %p345, %s25, 0
      %s347 = smul.addr %s346, 4
      %s348 = scalar_lea.vmem %s1, %s347
      %p349 = scmp.lt.s32.totalorder %s25, 0
      %s350 = scalar_select %p349, %s25, 0
      %s351 = scalar_lea.vmem %s2, %s350
      %s352 = smul.u32 8, %s25
      %p353 = scmp.lt.s32.totalorder %s352, 7
      %s354 = scalar_select %p353, %s352, 7
      %s355 = smul.addr %s354, 4
      %s356 = scalar_lea.vmem %s3, %s355
      %s357 = smul.u32 8, %s25
      %p358 = scmp.lt.s32.totalorder %s23, 1
      %s359 = scalar_select %p358, %s23, 1
      %p360 = scmp.lt.s32.totalorder %s24, 0
      %s361 = scalar_select %p360, %s24, 0
      %s362 = sadd.s32 %s361, %s359
      %s363 = smul.addr %s362, 4
      %s364 = scalar_lea.vmem %s7, %s363
      %p366 = scmp.eq.s32.totalorder %s25, 0
      // Predicated region
      $region49: #{transformer_decoder_forward.9} parent=47 // pred_check
        %p367 = pneg %p366
      $region50: #{transformer_decoder_forward.9} parent=47 // pred_check_branch
        %369 = sbr.rel (%p367) target = $region52
      $region51: #{transformer_decoder_forward.9} parent=47 // pred_region
        %vm370 = vcmask 261120
        %371 = vst.msk [vmem:[#allocation2] sm:$0xff] %vm370, 0.0
      $region52: #{transformer_decoder_forward.9} parent=47 // pred_fallthru
        _
      %v372 = vld [vmem:[%s344] sm:$0xf]
      %v373 = vld [vmem:[%s348] sm:$0xf]
      %v374 = vld [vmem:[%s348 + $0x4] sm:$0xf]
      %v375 = vld [vmem:[%s348 + $0x8] sm:$0xf]
      %v376 = vld [vmem:[%s348 + $0xc] sm:$0xf]
      %v377 = vld [vmem:[%s351] sm:$0x1]
      %v379 = vlaneseq
      %v380 = vshrl.u32 %v379, 7
      %v381 = vsub.s32 0, %v380
      %v382 = vrot.slane %v377, %v381
      %v388 = vunpack.c.l.b16 %v373
      %v389 = vunpack.c.l.b16 %v374
      %v390 = vunpack.c.l.b16 %v375
      %v391 = vunpack.c.l.b16 %v376
      %v392 = vpack.c.b16 %v389, %v388
      %v393 = vpack.c.b16 %v391, %v390
      %vm396 = vcmask 261120
      %v398 = vsel %vm396, %v372, 0
      %400 = vmatprep.subr.bf16.mxu0 0
      %401 = vmatpush1.bf16.msra.mxu0 %v392
      %402 = vmatprep.subr.bf16.mxu0 0
      %403 = vmatpush1.bf16.msra.mxu0 %v393
      %404 = vmatprep.subr.bf16.mxu0 0
      %405 = vmatpush1.bf16.msra.mxu0 0
      %406 = vmatprep.subr.bf16.mxu0 0
      %407 = vmatpush1.bf16.msra.mxu0 0
      %408 = vmatprep.subr.bf16.mxu0 0
      %409 = vmatpush1.bf16.msra.mxu0 0
      %410 = vmatprep.subr.bf16.mxu0 0
      %411 = vmatpush1.bf16.msra.mxu0 0
      %412 = vmatprep.subr.bf16.mxu0 0
      %413 = vmatpush1.bf16.msra.mxu0 0
      %414 = vmatprep.subr.bf16.mxu0 0
      %415 = vmatpush1.bf16.msra.mxu0 0
      %416 = vmatprep.subr.bf16.mxu0 0
      %417 = vmatpush1.bf16.msra.mxu0 0
      %418 = vmatprep.subr.bf16.mxu0 0
      %419 = vmatpush1.bf16.msra.mxu0 0
      %420 = vmatprep.subr.bf16.mxu0 0
      %421 = vmatpush1.bf16.msra.mxu0 0
      %422 = vmatprep.subr.bf16.mxu0 0
      %423 = vmatpush1.bf16.msra.mxu0 0
      %424 = vmatprep.subr.bf16.mxu0 0
      %425 = vmatpush1.bf16.msra.mxu0 0
      %426 = vmatprep.subr.bf16.mxu0 0
      %427 = vmatpush1.bf16.msra.mxu0 0
      %428 = vmatprep.subr.bf16.mxu0 0
      %429 = vmatpush1.bf16.msra.mxu0 0
      %430 = vmatprep.subr.bf16.mxu0 0
      %431 = vmatpush1.bf16.msra.mxu0 0
      %432 = vmatprep.mubr.bf16.mxu0 0
      %433 = vmatmul.mubr.bf16.gmra.mrb[0].mxu0 %v398
      %v434 = vpop.f32.mrb[0].mxu0
      %v435 = vadd.f32 %v382, %v434
      %v436 = vpop.f32.mrb[0].mxu0
      %v437 = vpop.f32.mrb[0].mxu0
      %v438 = vpop.f32.mrb[0].mxu0
      %439 = vdwg.mxu0
      %v440 = vmax.f32 %v435, 0.0
      %v441 = vpack.c.bf16 %v440, %v440
      %v442 = vld [vmem:[#allocation2] sm:$0xff]
      %v443 = vld [vmem:[%s356] sm:$0xf]
      %v444 = vld [vmem:[%s356 + $0x4] sm:$0xf]
      %v445 = vld [vmem:[%s356 + $0x8] sm:$0xf]
      %v446 = vld [vmem:[%s356 + $0xc] sm:$0xf]
      %v447 = vld [vmem:[%s356 + $0x10] sm:$0xf]
      %v448 = vld [vmem:[%s356 + $0x14] sm:$0xf]
      %v449 = vld [vmem:[%s356 + $0x18] sm:$0xf]
      %v450 = vld [vmem:[%s356 + $0x1c] sm:$0xf]
      %v459 = vunpack.c.l.b16 %v443
      %v460 = vunpack.c.l.b16 %v444
      %v461 = vunpack.c.l.b16 %v445
      %v462 = vunpack.c.l.b16 %v446
      %v463 = vunpack.c.l.b16 %v447
      %v464 = vunpack.c.l.b16 %v448
      %v465 = vunpack.c.l.b16 %v449
      %v466 = vunpack.c.l.b16 %v450
      %v467 = vpack.c.b16 %v460, %v459
      %v468 = vpack.c.b16 %v462, %v461
      %v469 = vpack.c.b16 %v464, %v463
      %v470 = vpack.c.b16 %v466, %v465
      %vm475 = vcmask 523264
      %v477 = vsel %vm475, %v441, 0
      %479 = vmatprep.subr.bf16.mxu0 0
      %480 = vmatpush1.bf16.msra.mxu0 %v467
      %481 = vmatprep.subr.bf16.mxu0 0
      %482 = vmatpush1.bf16.msra.mxu0 %v468
      %483 = vmatprep.subr.bf16.mxu0 0
      %484 = vmatpush1.bf16.msra.mxu0 %v469
      %485 = vmatprep.subr.bf16.mxu0 0
      %486 = vmatpush1.bf16.msra.mxu0 %v470
      %487 = vmatprep.subr.bf16.mxu0 0
      %488 = vmatpush1.bf16.msra.mxu0 0
      %489 = vmatprep.subr.bf16.mxu0 0
      %490 = vmatpush1.bf16.msra.mxu0 0
      %491 = vmatprep.subr.bf16.mxu0 0
      %492 = vmatpush1.bf16.msra.mxu0 0
      %493 = vmatprep.subr.bf16.mxu0 0
      %494 = vmatpush1.bf16.msra.mxu0 0
      %495 = vmatprep.subr.bf16.mxu0 0
      %496 = vmatpush1.bf16.msra.mxu0 0
      %497 = vmatprep.subr.bf16.mxu0 0
      %498 = vmatpush1.bf16.msra.mxu0 0
      %499 = vmatprep.subr.bf16.mxu0 0
      %500 = vmatpush1.bf16.msra.mxu0 0
      %501 = vmatprep.subr.bf16.mxu0 0
      %502 = vmatpush1.bf16.msra.mxu0 0
      %503 = vmatprep.subr.bf16.mxu0 0
      %504 = vmatpush1.bf16.msra.mxu0 0
      %505 = vmatprep.subr.bf16.mxu0 0
      %506 = vmatpush1.bf16.msra.mxu0 0
      %507 = vmatprep.subr.bf16.mxu0 0
      %508 = vmatpush1.bf16.msra.mxu0 0
      %509 = vmatprep.subr.bf16.mxu0 0
      %510 = vmatpush1.bf16.msra.mxu0 0
      %511 = vmatprep.mubr.bf16.mxu0 0
      %512 = vmatmul.mubr.bf16.gmra.mrb[0].mxu0 %v477
      %v513 = vpop.f32.mrb[0].mxu0
      %v514 = vadd.f32 0.0, %v513
      %v515 = vpop.f32.mrb[0].mxu0
      %v516 = vpop.f32.mrb[0].mxu0
      %v517 = vpop.f32.mrb[0].mxu0
      %518 = vdwg.mxu0
      %v519 = vadd.f32 %v442, %v514
      %520 = vst.msk [vmem:[#allocation2] sm:$0xff] %vm396, %v519
      // Predicated region
      $region53: #{transformer_decoder_forward.9} parent=47 // pred_check
        %p521 = pneg %p366
      $region54: #{transformer_decoder_forward.9} parent=47 // pred_check_branch
        %523 = sbr.rel (%p521) target = $region56
      $region55: #{transformer_decoder_forward.9} parent=47 // pred_region
        %v524 = vunpack.c.l.bf16 %v372
        %v525 = vld [vmem:[#allocation2] sm:$0xff]
        %v526 = vadd.f32 %v524, %v525
        %v527 = vld [vmem:[%s4] sm:$0x1]
        %v529 = vlaneseq
        %v530 = vshrl.u32 %v529, 7
        %v531 = vsub.s32 0, %v530
        %v532 = vrot.slane %v527, %v531
        %v534 = vadd.f32 %v526, %v532
        %v535 = vsel %vm396, %v534, 0.0
        %536 = vadd.xlane.f32.xlu0 %v535
        %v537 = vpop.xlane.xlu0 %536
        %v538 = vrcp.pop 32.0
        %v539 = vmul.f32 %v537, %v538
        %v540 = vsub.f32 %v534, %v539
        %v541 = vmul.f32 %v540, %v540
        %v542 = vsel %vm396, %v541, 0.0
        %543 = vadd.xlane.f32.xlu0 %v542
        %v544 = vpop.xlane.xlu0 %543
        %v545 = vmul.f32 %v544, %v538
        %v546 = vadd.f32 %v545, 1e-05
        %v547 = vrsqrt.pop %v546
        %v548 = vmul.f32 %v540, %v547
        %v549 = vld [vmem:[%s5] sm:$0x1]
        %v551 = vlaneseq
        %v552 = vshrl.u32 %v551, 7
        %v553 = vsub.s32 0, %v552
        %v554 = vrot.slane %v549, %v553
        %v556 = vmul.f32 %v548, %v554
        %v557 = vld [vmem:[%s6] sm:$0x1]
        %v559 = vlaneseq
        %v560 = vshrl.u32 %v559, 7
        %v561 = vsub.s32 0, %v560
        %v562 = vrot.slane %v557, %v561
        %v564 = vadd.f32 %v556, %v562
        %v565 = vpack.c.bf16 %v564, %v564
        %vm566 = vcmask 257024
        %567 = vst.msk [vmem:[%s364] sm:$0xf] %vm566, %v565
      $region56: #{transformer_decoder_forward.9} parent=47 // pred_fallthru
        _
      %p568 = scmp.lt.s32.totalorder %s23, 1
      %s569 = scalar_select %p568, %s23, 1
      %p570 = scmp.lt.s32.totalorder %s24, 0
      %s571 = scalar_select %p570, %s24, 0
      %s572 = sadd.s32 %s571, %s569
      %s573 = smul.addr %s572, 4
      %s574 = scalar_lea.vmem %s7, %s573
      // Predicated region
      $region57: #{transformer_decoder_forward.9} parent=47 // pred_check
        %p575 = pneg %p226
      $region58: #{transformer_decoder_forward.9} parent=47 // pred_check_branch
        %577 = sbr.rel (%p575) target = $region60
      $region59: #{transformer_decoder_forward.9} parent=47 // pred_region
        _
      $region60: #{transformer_decoder_forward.9} parent=47 // pred_fallthru
        _
    $region48: #{transformer_decoder_forward.9} parent=5 // pred_fallthru
      _
    %p578 = scmp.le.s32.totalorder 2, %s13
    // Predicated region
    $region61: #{transformer_decoder_forward.9} parent=5 // pred_check
      %p579 = pneg %p578
    $region62: #{transformer_decoder_forward.9} parent=5 // pred_check_branch
      %581 = sbr.rel (%p579) target = $region64
    $region63: #{transformer_decoder_forward.9} parent=5 // pred_region
      %s582 = ssub.s32 %s13, 2
      // Predicated region
      $region65: #{transformer_decoder_forward.9} parent=63 // pred_check
        %p583 = pneg %p232
      $region66: #{transformer_decoder_forward.9} parent=63 // pred_check_branch
        %585 = sbr.rel (%p583) target = $region68
      $region67: #{transformer_decoder_forward.9} parent=63 // pred_region
        %p586 = scmp.lt.s32.totalorder %s26, 1
        %s587 = scalar_select %p586, %s26, 1
        %p588 = scmp.lt.s32.totalorder %s27, 0
        %s589 = scalar_select %p588, %s27, 0
        %s590 = sadd.s32 %s589, %s587
        %s591 = smul.addr %s590, 4
        %s592 = scalar_lea.vmem %s7, %s591
      $region68: #{transformer_decoder_forward.9} parent=63 // pred_fallthru
        _
    $region64: #{transformer_decoder_forward.9} parent=5 // pred_fallthru
      _
  $region6: #{transformer_decoder_forward.9} parent=0 // loop_footer
    %s17 = sadd.s32 1, %s13
  $region7: #{transformer_decoder_forward.9} parent=0 // loop_footer_branch
    %12 = sbr.rel target = $region3
  $region8: #{transformer_decoder_forward.9} parent=0 // loop_exit
    _

// kernel: transformer_decoder_forward.7
$region0: #{transformer_decoder_forward.7}
  #allocation0 [shape = 'u32[]', space=smem, size = 0x4, offset = 0x4, fixed_abs, tag = 'smem constant byte address 0x4 - core index']
  #allocation1 [shape = 'u32[144,128]{1,0:T(1,128)}', space=vmem, size = 0x12000, scoped, tag = 'internal scratch']
  #allocation2 [shape = 'f32[8,32]{1,0:T(8,128)}', space=vmem, size = 0x1000, scoped, tag = 'scratch operand']
  %s0 = inlined_call_operand.vmem [shape: bf16[2,8,32], index: 0, kind: input, shape index: {}, may-alias: {0,1}]
  %s1 = inlined_call_operand.vmem [shape: bf16[2,8,32], index: 1, kind: input, shape index: {}, may-alias: {0,1}]
  %s2 = inlined_call_operand.vmem [shape: s8[8,8], index: 2, kind: input, shape index: {}]
  %s3 = inlined_call_operand.vmem [shape: bf16[32,32], index: 3, kind: input, shape index: {}]
  %s4 = inlined_call_operand.vmem [shape: f32[1,32], index: 4, kind: input, shape index: {}]
  %s5 = inlined_call_operand.vmem [shape: bf16[32,64], index: 5, kind: input, shape index: {}]
  %s6 = inlined_call_operand.vmem [shape: f32[1,64], index: 6, kind: input, shape index: {}]
  %s7 = inlined_call_operand.vmem [shape: bf16[32,32], index: 7, kind: input, shape index: {}]
  %s8 = inlined_call_operand.vmem [shape: f32[1,32], index: 8, kind: input, shape index: {}]
  %s9 = inlined_call_operand.vmem [shape: f32[1,32], index: 9, kind: input, shape index: {}]
  %s10 = inlined_call_operand.vmem [shape: f32[1,32], index: 10, kind: input, shape index: {}]
  %s11 = inlined_call_operand.vmem [shape: bf16[2,8,32], index: 11, kind: output, shape index: {}]
  %s12 = sld [smem:[#allocation0]]
  $region77: #{transformer_decoder_forward.7} parent=0
    _
  %s14 = ssub.s32 1, %s12
  %s15 = scalar_select 0, %s14, %s12
  loop: start=0, step=1, limit=4
  $region2: #{transformer_decoder_forward.7} parent=0 // loop_pre_header
    _
  $region3: #{transformer_decoder_forward.7} parent=0 // loop_header
    %s17 = sphi 0, %s21
    %p18 = scmp.ge.s32.totalorder %s17, 4
    %s24 = sphi 0, %s36
    %s25 = sphi 0, %s32
    %s26 = sphi 0, %s24
    %s27 = sphi 0, %s25
    %s28 = sphi 0, %s26
    %s29 = sphi 0, %s27
    %s41 = sphi 0, %s43
    %s44 = sphi 0, %s41
    %s45 = sphi 0, %s44
    %s61 = sphi 0, %s45
    %s67 = sphi 0, %s69
    %s70 = sphi 0, %s67
    %s71 = sphi 0, %s70
    %s87 = sphi 0, %s71
    %s93 = sphi 0, %s95
    %s96 = sphi 0, %s93
    %s97 = sphi 0, %s96
    %s113 = sphi 0, %s97
    %s117 = sphi 0, %s117
    %s119 = sphi 0, %s117
    %s120 = sphi 0, %s119
    %s134 = sphi 0, %s120
    %s138 = sphi 0, %s138
    %s140 = sphi 0, %s138
    %s141 = sphi 0, %s140
    %s155 = sphi 0, %s141
    %s159 = sphi 0, %s159
    %s161 = sphi 0, %s159
    %s162 = sphi 0, %s161
    %s176 = sphi 0, %s162
    %s180 = sphi 0, %s180
    %s182 = sphi 0, %s180
    %s183 = sphi 0, %s182
    %s197 = sphi 0, %s183
    %s201 = sphi 0, %s201
    %s203 = sphi 0, %s201
    %s204 = sphi 0, %s203
    %s218 = sphi 0, %s204
    %s222 = sphi 0, %s222
    %s224 = sphi 0, %s222
    %s225 = sphi 0, %s224
    %s239 = sphi 0, %s225
    %s243 = sphi 0, %s243
    %s245 = sphi 0, %s243
    %s246 = sphi 0, %s245
    %s260 = sphi 0, %s246
    %s264 = sphi 0, %s264
    %s266 = sphi 0, %s264
    %s267 = sphi 0, %s266
    %s281 = sphi 0, %s267
    %s289 = sphi 0, %s291
    %s292 = sphi 0, %s289
    %s293 = sphi 0, %s292
    %s309 = sphi 0, %s293
  $region4: #{transformer_decoder_forward.7} parent=0 // loop_header_branch
    %20 = sbr.rel (%p18) target = $region8
  $region5: #{transformer_decoder_forward.7} parent=0 // loop_body
    %s22 = ssub.s32 %s17, 1
    %s23 = ssub.s32 %s17, 2
    %s30 = sadd.s32 1, %s25
    %p31 = scmp.ge.s32.totalorder %s30, 1
    %s32 = scalar_select %p31, 0, %s30
    %s33 = sadd.s32 1, %s24
    %s34 = scalar_select %p31, %s33, %s24
    %p35 = scmp.ge.s32.totalorder %s34, 2
    %s36 = scalar_select %p35, 0, %s34
    %s37 = ssub.s32 %s24, %s36
    %s38 = ssub.s32 %s25, %s32
    %s39 = sor.u32 %s37, %s38
    %p40 = scmp.eq.s32.totalorder %s39, 0
    %s42 = sadd.s32 %s41, 1
    %s43 = scalar_select %p40, %s41, %s42
    %p46 = pneg %p40
    %p47 = scmp.eq.s32.totalorder %s17, 1
    %p48 = por %p46, %p47
    %p49 = scmp.ne.s32.totalorder %s41, %s44
    %p50 = scmp.eq.s32.totalorder %s17, 0
    %p51 = por %p49, %p50
    %p52 = scmp.ne.s32.totalorder %s41, %s44
    %p53 = scmp.eq.s32.totalorder %s22, 1
    %p54 = por %p52, %p53
    %p55 = scmp.ne.s32.totalorder %s44, %s45
    %p56 = scmp.eq.s32.totalorder %s22, 0
    %p57 = por %p55, %p56
    %p58 = scmp.ne.s32.totalorder %s44, %s45
    %p59 = scmp.eq.s32.totalorder %s23, 1
    %p60 = por %p58, %p59
    %p62 = scmp.ne.s32.totalorder %s45, %s61
    %p63 = scmp.eq.s32.totalorder %s23, 0
    %p64 = por %p62, %p63
    %s65 = ssub.s32 %s24, %s36
    %p66 = scmp.eq.s32.totalorder %s65, 0
    %s68 = sadd.s32 %s67, 1
    %s69 = scalar_select %p66, %s67, %s68
    %p72 = pneg %p66
    %p73 = scmp.eq.s32.totalorder %s17, 1
    %p74 = por %p72, %p73
    %p75 = scmp.ne.s32.totalorder %s67, %s70
    %p76 = scmp.eq.s32.totalorder %s17, 0
    %p77 = por %p75, %p76
    %p78 = scmp.ne.s32.totalorder %s67, %s70
    %p79 = scmp.eq.s32.totalorder %s22, 1
    %p80 = por %p78, %p79
    %p81 = scmp.ne.s32.totalorder %s70, %s71
    %p82 = scmp.eq.s32.totalorder %s22, 0
    %p83 = por %p81, %p82
    %p84 = scmp.ne.s32.totalorder %s70, %s71
    %p85 = scmp.eq.s32.totalorder %s23, 1
    %p86 = por %p84, %p85
    %p88 = scmp.ne.s32.totalorder %s71, %s87
    %p89 = scmp.eq.s32.totalorder %s23, 0
    %p90 = por %p88, %p89
    %s91 = ssub.s32 %s25, %s32
    %p92 = scmp.eq.s32.totalorder %s91, 0
    %s94 = sadd.s32 %s93, 1
    %s95 = scalar_select %p92, %s93, %s94
    %p98 = pneg %p92
    %p99 = scmp.eq.s32.totalorder %s17, 1
    %p100 = por %p98, %p99
    %p101 = scmp.ne.s32.totalorder %s93, %s96
    %p102 = scmp.eq.s32.totalorder %s17, 0
    %p103 = por %p101, %p102
    %p104 = scmp.ne.s32.totalorder %s93, %s96
    %p105 = scmp.eq.s32.totalorder %s22, 1
    %p106 = por %p104, %p105
    %p107 = scmp.ne.s32.totalorder %s96, %s97
    %p108 = scmp.eq.s32.totalorder %s22, 0
    %p109 = por %p107, %p108
    %p110 = scmp.ne.s32.totalorder %s96, %s97
    %p111 = scmp.eq.s32.totalorder %s23, 1
    %p112 = por %p110, %p111
    %p114 = scmp.ne.s32.totalorder %s97, %s113
    %p115 = scmp.eq.s32.totalorder %s23, 0
    %p116 = por %p114, %p115
    %s118 = sadd.s32 %s117, 1
    %p121 = scmp.eq.s32.totalorder %s17, 1
    %p122 = scmp.ne.s32.totalorder %s117, %s119
    %p123 = scmp.eq.s32.totalorder %s17, 0
    %p124 = por %p122, %p123
    %p125 = scmp.ne.s32.totalorder %s117, %s119
    %p126 = scmp.eq.s32.totalorder %s22, 1
    %p127 = por %p125, %p126
    %p128 = scmp.ne.s32.totalorder %s119, %s120
    %p129 = scmp.eq.s32.totalorder %s22, 0
    %p130 = por %p128, %p129
    %p131 = scmp.ne.s32.totalorder %s119, %s120
    %p132 = scmp.eq.s32.totalorder %s23, 1
    %p133 = por %p131, %p132
    %p135 = scmp.ne.s32.totalorder %s120, %s134
    %p136 = scmp.eq.s32.totalorder %s23, 0
    %p137 = por %p135, %p136
    %s139 = sadd.s32 %s138, 1
    %p142 = scmp.eq.s32.totalorder %s17, 1
    %p143 = scmp.ne.s32.totalorder %s138, %s140
    %p144 = scmp.eq.s32.totalorder %s17, 0
    %p145 = por %p143, %p144
    %p146 = scmp.ne.s32.totalorder %s138, %s140
    %p147 = scmp.eq.s32.totalorder %s22, 1
    %p148 = por %p146, %p147
    %p149 = scmp.ne.s32.totalorder %s140, %s141
    %p150 = scmp.eq.s32.totalorder %s22, 0
    %p151 = por %p149, %p150
    %p152 = scmp.ne.s32.totalorder %s140, %s141
    %p153 = scmp.eq.s32.totalorder %s23, 1
    %p154 = por %p152, %p153
    %p156 = scmp.ne.s32.totalorder %s141, %s155
    %p157 = scmp.eq.s32.totalorder %s23, 0
    %p158 = por %p156, %p157
    %s160 = sadd.s32 %s159, 1
    %p163 = scmp.eq.s32.totalorder %s17, 1
    %p164 = scmp.ne.s32.totalorder %s159, %s161
    %p165 = scmp.eq.s32.totalorder %s17, 0
    %p166 = por %p164, %p165
    %p167 = scmp.ne.s32.totalorder %s159, %s161
    %p168 = scmp.eq.s32.totalorder %s22, 1
    %p169 = por %p167, %p168
    %p170 = scmp.ne.s32.totalorder %s161, %s162
    %p171 = scmp.eq.s32.totalorder %s22, 0
    %p172 = por %p170, %p171
    %p173 = scmp.ne.s32.totalorder %s161, %s162
    %p174 = scmp.eq.s32.totalorder %s23, 1
    %p175 = por %p173, %p174
    %p177 = scmp.ne.s32.totalorder %s162, %s176
    %p178 = scmp.eq.s32.totalorder %s23, 0
    %p179 = por %p177, %p178
    %s181 = sadd.s32 %s180, 1
    %p184 = scmp.eq.s32.totalorder %s17, 1
    %p185 = scmp.ne.s32.totalorder %s180, %s182
    %p186 = scmp.eq.s32.totalorder %s17, 0
    %p187 = por %p185, %p186
    %p188 = scmp.ne.s32.totalorder %s180, %s182
    %p189 = scmp.eq.s32.totalorder %s22, 1
    %p190 = por %p188, %p189
    %p191 = scmp.ne.s32.totalorder %s182, %s183
    %p192 = scmp.eq.s32.totalorder %s22, 0
    %p193 = por %p191, %p192
    %p194 = scmp.ne.s32.totalorder %s182, %s183
    %p195 = scmp.eq.s32.totalorder %s23, 1
    %p196 = por %p194, %p195
    %p198 = scmp.ne.s32.totalorder %s183, %s197
    %p199 = scmp.eq.s32.totalorder %s23, 0
    %p200 = por %p198, %p199
    %s202 = sadd.s32 %s201, 1
    %p205 = scmp.eq.s32.totalorder %s17, 1
    %p206 = scmp.ne.s32.totalorder %s201, %s203
    %p207 = scmp.eq.s32.totalorder %s17, 0
    %p208 = por %p206, %p207
    %p209 = scmp.ne.s32.totalorder %s201, %s203
    %p210 = scmp.eq.s32.totalorder %s22, 1
    %p211 = por %p209, %p210
    %p212 = scmp.ne.s32.totalorder %s203, %s204
    %p213 = scmp.eq.s32.totalorder %s22, 0
    %p214 = por %p212, %p213
    %p215 = scmp.ne.s32.totalorder %s203, %s204
    %p216 = scmp.eq.s32.totalorder %s23, 1
    %p217 = por %p215, %p216
    %p219 = scmp.ne.s32.totalorder %s204, %s218
    %p220 = scmp.eq.s32.totalorder %s23, 0
    %p221 = por %p219, %p220
    %s223 = sadd.s32 %s222, 1
    %p226 = scmp.eq.s32.totalorder %s17, 1
    %p227 = scmp.ne.s32.totalorder %s222, %s224
    %p228 = scmp.eq.s32.totalorder %s17, 0
    %p229 = por %p227, %p228
    %p230 = scmp.ne.s32.totalorder %s222, %s224
    %p231 = scmp.eq.s32.totalorder %s22, 1
    %p232 = por %p230, %p231
    %p233 = scmp.ne.s32.totalorder %s224, %s225
    %p234 = scmp.eq.s32.totalorder %s22, 0
    %p235 = por %p233, %p234
    %p236 = scmp.ne.s32.totalorder %s224, %s225
    %p237 = scmp.eq.s32.totalorder %s23, 1
    %p238 = por %p236, %p237
    %p240 = scmp.ne.s32.totalorder %s225, %s239
    %p241 = scmp.eq.s32.totalorder %s23, 0
    %p242 = por %p240, %p241
    %s244 = sadd.s32 %s243, 1
    %p247 = scmp.eq.s32.totalorder %s17, 1
    %p248 = scmp.ne.s32.totalorder %s243, %s245
    %p249 = scmp.eq.s32.totalorder %s17, 0
    %p250 = por %p248, %p249
    %p251 = scmp.ne.s32.totalorder %s243, %s245
    %p252 = scmp.eq.s32.totalorder %s22, 1
    %p253 = por %p251, %p252
    %p254 = scmp.ne.s32.totalorder %s245, %s246
    %p255 = scmp.eq.s32.totalorder %s22, 0
    %p256 = por %p254, %p255
    %p257 = scmp.ne.s32.totalorder %s245, %s246
    %p258 = scmp.eq.s32.totalorder %s23, 1
    %p259 = por %p257, %p258
    %p261 = scmp.ne.s32.totalorder %s246, %s260
    %p262 = scmp.eq.s32.totalorder %s23, 0
    %p263 = por %p261, %p262
    %s265 = sadd.s32 %s264, 1
    %p268 = scmp.eq.s32.totalorder %s17, 1
    %p269 = scmp.ne.s32.totalorder %s264, %s266
    %p270 = scmp.eq.s32.totalorder %s17, 0
    %p271 = por %p269, %p270
    %p272 = scmp.ne.s32.totalorder %s264, %s266
    %p273 = scmp.eq.s32.totalorder %s22, 1
    %p274 = por %p272, %p273
    %p275 = scmp.ne.s32.totalorder %s266, %s267
    %p276 = scmp.eq.s32.totalorder %s22, 0
    %p277 = por %p275, %p276
    %p278 = scmp.ne.s32.totalorder %s266, %s267
    %p279 = scmp.eq.s32.totalorder %s23, 1
    %p280 = por %p278, %p279
    %p282 = scmp.ne.s32.totalorder %s267, %s281
    %p283 = scmp.eq.s32.totalorder %s23, 0
    %p284 = por %p282, %p283
    %s285 = ssub.s32 %s24, %s36
    %s286 = ssub.s32 %s25, %s32
    %s287 = sor.u32 %s285, %s286
    %p288 = scmp.eq.s32.totalorder %s287, 0
    %s290 = sadd.s32 %s289, 1
    %s291 = scalar_select %p288, %s289, %s290
    %p294 = pneg %p288
    %p295 = scmp.eq.s32.totalorder %s17, 1
    %p296 = por %p294, %p295
    %p297 = scmp.ne.s32.totalorder %s289, %s292
    %p298 = scmp.eq.s32.totalorder %s17, 0
    %p299 = por %p297, %p298
    %p300 = scmp.ne.s32.totalorder %s289, %s292
    %p301 = scmp.eq.s32.totalorder %s22, 1
    %p302 = por %p300, %p301
    %p303 = scmp.ne.s32.totalorder %s292, %s293
    %p304 = scmp.eq.s32.totalorder %s22, 0
    %p305 = por %p303, %p304
    %p306 = scmp.ne.s32.totalorder %s292, %s293
    %p307 = scmp.eq.s32.totalorder %s23, 1
    %p308 = por %p306, %p307
    %p310 = scmp.ne.s32.totalorder %s293, %s309
    %p311 = scmp.eq.s32.totalorder %s23, 0
    %p312 = por %p310, %p311
    %p313 = scmp.le.s32.totalorder 1, %s17
    %p314 = scmp.lt.s32.totalorder %s17, 3
    %p315 = pnand %p313, %p314
    %p316 = pneg %p315
    // Predicated region
    $region9: #{transformer_decoder_forward.7} parent=5 // pred_check
      _
    $region10: #{transformer_decoder_forward.7} parent=5 // pred_check_branch
      %318 = sbr.rel (%p315) target = $region12
    $region11: #{transformer_decoder_forward.7} parent=5 // pred_region
      %s319 = ssub.s32 %s17, 1
      // Predicated region
      $region13: #{transformer_decoder_forward.7} parent=11 // pred_check
        %p320 = pneg %p109
      $region14: #{transformer_decoder_forward.7} parent=11 // pred_check_branch
        %322 = sbr.rel (%p320) target = $region16
      $region15: #{transformer_decoder_forward.7} parent=11 // pred_region
        %p323 = scmp.lt.s32.totalorder %s27, 0
        %s324 = scalar_select %p323, %s27, 0
        %s325 = smul.addr %s324, 2
        %s326 = scalar_lea.vmem %s2, %s325
      $region16: #{transformer_decoder_forward.7} parent=11 // pred_fallthru
        _
      // Predicated region
      $region17: #{transformer_decoder_forward.7} parent=11 // pred_check
        %p327 = pneg %p130
      $region18: #{transformer_decoder_forward.7} parent=11 // pred_check_branch
        %329 = sbr.rel (%p327) target = $region20
      $region19: #{transformer_decoder_forward.7} parent=11 // pred_region
        _
      $region20: #{transformer_decoder_forward.7} parent=11 // pred_fallthru
        _
      // Predicated region
      $region21: #{transformer_decoder_forward.7} parent=11 // pred_check
        %p330 = pneg %p151
      $region22: #{transformer_decoder_forward.7} parent=11 // pred_check_branch
        %332 = sbr.rel (%p330) target = $region24
      $region23: #{transformer_decoder_forward.7} parent=11 // pred_region
        _
      $region24: #{transformer_decoder_forward.7} parent=11 // pred_fallthru
        _
      // Predicated region
      $region25: #{transformer_decoder_forward.7} parent=11 // pred_check
        %p333 = pneg %p172
      $region26: #{transformer_decoder_forward.7} parent=11 // pred_check_branch
        %335 = sbr.rel (%p333) target = $region28
      $region27: #{transformer_decoder_forward.7} parent=11 // pred_region
        _
      $region28: #{transformer_decoder_forward.7} parent=11 // pred_fallthru
        _
      // Predicated region
      $region29: #{transformer_decoder_forward.7} parent=11 // pred_check
        %p336 = pneg %p193
      $region30: #{transformer_decoder_forward.7} parent=11 // pred_check_branch
        %338 = sbr.rel (%p336) target = $region32
      $region31: #{transformer_decoder_forward.7} parent=11 // pred_region
        _
      $region32: #{transformer_decoder_forward.7} parent=11 // pred_fallthru
        _
      // Predicated region
      $region33: #{transformer_decoder_forward.7} parent=11 // pred_check
        %p339 = pneg %p214
      $region34: #{transformer_decoder_forward.7} parent=11 // pred_check_branch
        %341 = sbr.rel (%p339) target = $region36
      $region35: #{transformer_decoder_forward.7} parent=11 // pred_region
        _
      $region36: #{transformer_decoder_forward.7} parent=11 // pred_fallthru
        _
      // Predicated region
      $region37: #{transformer_decoder_forward.7} parent=11 // pred_check
        %p342 = pneg %p235
      $region38: #{transformer_decoder_forward.7} parent=11 // pred_check_branch
        %344 = sbr.rel (%p342) target = $region40
      $region39: #{transformer_decoder_forward.7} parent=11 // pred_region
        _
      $region40: #{transformer_decoder_forward.7} parent=11 // pred_fallthru
        _
      // Predicated region
      $region41: #{transformer_decoder_forward.7} parent=11 // pred_check
        %p345 = pneg %p256
      $region42: #{transformer_decoder_forward.7} parent=11 // pred_check_branch
        %347 = sbr.rel (%p345) target = $region44
      $region43: #{transformer_decoder_forward.7} parent=11 // pred_region
        _
      $region44: #{transformer_decoder_forward.7} parent=11 // pred_fallthru
        _
      // Predicated region
      $region45: #{transformer_decoder_forward.7} parent=11 // pred_check
        %p348 = pneg %p277
      $region46: #{transformer_decoder_forward.7} parent=11 // pred_check_branch
        %350 = sbr.rel (%p348) target = $region48
      $region47: #{transformer_decoder_forward.7} parent=11 // pred_region
        _
      $region48: #{transformer_decoder_forward.7} parent=11 // pred_fallthru
        _
    $region12: #{transformer_decoder_forward.7} parent=5 // pred_fallthru
      _
    %p351 = scmp.lt.s32.totalorder %s17, 2
    // Predicated region
    $region49: #{transformer_decoder_forward.7} parent=5 // pred_check
      %p352 = pneg %p351
    $region50: #{transformer_decoder_forward.7} parent=5 // pred_check_branch
      %354 = sbr.rel (%p352) target = $region52
    $region51: #{transformer_decoder_forward.7} parent=5 // pred_region
      // Predicated region
      $region53: #{transformer_decoder_forward.7} parent=51 // pred_check
        %p355 = pneg %p51
      $region54: #{transformer_decoder_forward.7} parent=51 // pred_check_branch
        %357 = sbr.rel (%p355) target = $region56
      $region55: #{transformer_decoder_forward.7} parent=51 // pred_region
        %p358 = scmp.lt.s32.totalorder %s24, 1
        %s359 = scalar_select %p358, %s24, 1
        %p360 = scmp.lt.s32.totalorder %s25, 0
        %s361 = scalar_select %p360, %s25, 0
        %s362 = sadd.s32 %s361, %s359
        %s363 = smul.addr %s362, 4
        %s364 = scalar_lea.vmem %s0, %s363
      $region56: #{transformer_decoder_forward.7} parent=51 // pred_fallthru
        _
      // Predicated region
      $region57: #{transformer_decoder_forward.7} parent=51 // pred_check
        %p365 = pneg %p77
      $region58: #{transformer_decoder_forward.7} parent=51 // pred_check_branch
        %367 = sbr.rel (%p365) target = $region60
      $region59: #{transformer_decoder_forward.7} parent=51 // pred_region
        %p368 = scmp.lt.s32.totalorder %s24, 1
        %s369 = scalar_select %p368, %s24, 1
        %s370 = smul.addr %s369, 4
        %s371 = scalar_lea.vmem %s1, %s370
      $region60: #{transformer_decoder_forward.7} parent=51 // pred_fallthru
        _
    $region52: #{transformer_decoder_forward.7} parent=5 // pred_fallthru
      _
    %p372 = scmp.le.s32.totalorder 1, %s17
    %p373 = scmp.lt.s32.totalorder %s17, 3
    %p374 = pnand %p372, %p373
    %p375 = pneg %p374
    // Predicated region
    $region61: #{transformer_decoder_forward.7} parent=5 // pred_check
      _
    $region62: #{transformer_decoder_forward.7} parent=5 // pred_check_branch
      %377 = sbr.rel (%p374) target = $region64
    $region63: #{transformer_decoder_forward.7} parent=5 // pred_region
      %s378 = ssub.s32 %s17, 1
      %p379 = scmp.lt.s32.totalorder %s26, 1
      %s380 = scalar_select %p379, %s26, 1
      %p381 = scmp.lt.s32.totalorder %s27, 0
      %s382 = scalar_select %p381, %s27, 0
      %s383 = sadd.s32 %s382, %s380
      %s384 = smul.addr %s383, 4
      %s385 = scalar_lea.vmem %s0, %s384
      %p386 = pneg %p57
      %p387 = pneg %p54
      %p388 = scmp.lt.s32.totalorder %s26, 1
      %s389 = scalar_select %p388, %s26, 1
      %s390 = smul.addr %s389, 4
      %s391 = scalar_lea.vmem %s1, %s390
      %p392 = pneg %p83
      %p393 = pneg %p80
      %p394 = scmp.lt.s32.totalorder %s27, 0
      %s395 = scalar_select %p394, %s27, 0
      %s396 = smul.addr %s395, 2
      %s397 = scalar_lea.vmem %s2, %s396
      %p398 = pneg %p109
      %p399 = pneg %p106
      %p400 = pneg %p130
      %p401 = pneg %p127
      %p402 = pneg %p151
      %p403 = pneg %p148
      %p404 = pneg %p172
      %p405 = pneg %p169
      %p406 = pneg %p193
      %p407 = pneg %p190
      %p408 = pneg %p214
      %p409 = pneg %p211
      %p410 = pneg %p235
      %p411 = pneg %p232
      %p412 = pneg %p256
      %p413 = pneg %p253
      %p414 = pneg %p277
      %p415 = pneg %p274
      %p416 = pneg %p305
      %p417 = pneg %p302
      %p418 = scmp.lt.s32.totalorder %s26, 1
      %s419 = scalar_select %p418, %s26, 1
      %p420 = scmp.lt.s32.totalorder %s27, 0
      %s421 = scalar_select %p420, %s27, 0
      %s422 = sadd.s32 %s421, %s419
      %s423 = smul.addr %s422, 4
      %s424 = scalar_lea.vmem %s11, %s423
      %p425 = scmp.lt.s32.totalorder %s26, 1
      %s426 = scalar_select %p425, %s26, 1
      %p427 = scmp.lt.s32.totalorder %s27, 0
      %s428 = scalar_select %p427, %s27, 0
      %s429 = sadd.s32 %s428, %s426
      %s430 = smul.addr %s429, 4
      %s431 = scalar_lea.vmem %s0, %s430
      %p432 = scmp.lt.s32.totalorder %s26, 1
      %s433 = scalar_select %p432, %s26, 1
      %s434 = smul.addr %s433, 4
      %s435 = scalar_lea.vmem %s1, %s434
      %p436 = scmp.lt.s32.totalorder %s27, 0
      %s437 = scalar_select %p436, %s27, 0
      %s438 = smul.addr %s437, 2
      %s439 = scalar_lea.vmem %s2, %s438
      %p440 = scmp.lt.s32.totalorder %s26, 1
      %s441 = scalar_select %p440, %s26, 1
      %p442 = scmp.lt.s32.totalorder %s27, 0
      %s443 = scalar_select %p442, %s27, 0
      %s444 = sadd.s32 %s443, %s441
      %s445 = smul.addr %s444, 4
      %s446 = scalar_lea.vmem %s11, %s445
      %v450 = vld [vmem:[%s431] sm:$0xf]
      %v451 = vld [vmem:[%s435] sm:$0xf]
      %v452 = vld [vmem:[%s3] sm:$0xf]
      %v453 = vld [vmem:[%s3 + $0x4] sm:$0xf]
      %v454 = vld [vmem:[%s3 + $0x8] sm:$0xf]
      %v455 = vld [vmem:[%s3 + $0xc] sm:$0xf]
      %v456 = vld [vmem:[%s4] sm:$0x1]
      %v458 = vlaneseq
      %v459 = vshrl.u32 %v458, 7
      %v460 = vsub.s32 0, %v459
      %v461 = vrot.slane %v456, %v460
      %v467 = vunpack.c.l.b16 %v452
      %v468 = vunpack.c.l.b16 %v453
      %v469 = vunpack.c.l.b16 %v454
      %v470 = vunpack.c.l.b16 %v455
      %v471 = vpack.c.b16 %v468, %v467
      %v472 = vpack.c.b16 %v470, %v469
      %vm475 = vcmask 261120
      %v477 = vsel %vm475, %v450, 0
      %479 = vmatprep.subr.bf16.mxu0 0
      %480 = vmatpush1.bf16.msra.mxu0 %v471
      %481 = vmatprep.subr.bf16.mxu0 0
      %482 = vmatpush1.bf16.msra.mxu0 %v472
      %483 = vmatprep.subr.bf16.mxu0 0
      %484 = vmatpush1.bf16.msra.mxu0 0
      %485 = vmatprep.subr.bf16.mxu0 0
      %486 = vmatpush1.bf16.msra.mxu0 0
      %487 = vmatprep.subr.bf16.mxu0 0
      %488 = vmatpush1.bf16.msra.mxu0 0
      %489 = vmatprep.subr.bf16.mxu0 0
      %490 = vmatpush1.bf16.msra.mxu0 0
      %491 = vmatprep.subr.bf16.mxu0 0
      %492 = vmatpush1.bf16.msra.mxu0 0
      %493 = vmatprep.subr.bf16.mxu0 0
      %494 = vmatpush1.bf16.msra.mxu0 0
      %495 = vmatprep.subr.bf16.mxu0 0
      %496 = vmatpush1.bf16.msra.mxu0 0
      %497 = vmatprep.subr.bf16.mxu0 0
      %498 = vmatpush1.bf16.msra.mxu0 0
      %499 = vmatprep.subr.bf16.mxu0 0
      %500 = vmatpush1.bf16.msra.mxu0 0
      %501 = vmatprep.subr.bf16.mxu0 0
      %502 = vmatpush1.bf16.msra.mxu0 0
      %503 = vmatprep.subr.bf16.mxu0 0
      %504 = vmatpush1.bf16.msra.mxu0 0
      %505 = vmatprep.subr.bf16.mxu0 0
      %506 = vmatpush1.bf16.msra.mxu0 0
      %507 = vmatprep.subr.bf16.mxu0 0
      %508 = vmatpush1.bf16.msra.mxu0 0
      %509 = vmatprep.subr.bf16.mxu0 0
      %510 = vmatpush1.bf16.msra.mxu0 0
      %511 = vmatprep.mubr.bf16.mxu0 0
      %512 = vmatmul.mubr.bf16.gmra.mrb[0].mxu0 %v477
      %v513 = vpop.f32.mrb[0].mxu0
      %v514 = vadd.f32 %v461, %v513
      %v515 = vpop.f32.mrb[0].mxu0
      %v516 = vpop.f32.mrb[0].mxu0
      %v517 = vpop.f32.mrb[0].mxu0
      %518 = vdwg.mxu0
      %v519 = vld [vmem:[%s5] sm:$0xf]
      %v520 = vld [vmem:[%s5 + $0x4] sm:$0xf]
      %v521 = vld [vmem:[%s5 + $0x8] sm:$0xf]
      %v522 = vld [vmem:[%s5 + $0xc] sm:$0xf]
      %v523 = vld [vmem:[%s6] sm:$0x1]
      %v525 = vlaneseq
      %v526 = vshrl.u32 %v525, 7
      %v527 = vsub.s32 0, %v526
      %v528 = vrot.slane %v523, %v527
      %v534 = vunpack.c.l.b16 %v519
      %v535 = vunpack.c.l.b16 %v520
      %v536 = vunpack.c.l.b16 %v521
      %v537 = vunpack.c.l.b16 %v522
      %v538 = vpack.c.b16 %v535, %v534
      %v539 = vpack.c.b16 %v537, %v536
      %v543 = vsel %vm475, %v451, 0
      %545 = vmatprep.subr.bf16.mxu0 0
      %546 = vmatpush1.bf16.msra.mxu0 %v538
      %547 = vmatprep.subr.bf16.mxu0 0
      %548 = vmatpush1.bf16.msra.mxu0 %v539
      %549 = vmatprep.subr.bf16.mxu0 0
      %550 = vmatpush1.bf16.msra.mxu0 0
      %551 = vmatprep.subr.bf16.mxu0 0
      %552 = vmatpush1.bf16.msra.mxu0 0
      %553 = vmatprep.subr.bf16.mxu0 0
      %554 = vmatpush1.bf16.msra.mxu0 0
      %555 = vmatprep.subr.bf16.mxu0 0
      %556 = vmatpush1.bf16.msra.mxu0 0
      %557 = vmatprep.subr.bf16.mxu0 0
      %558 = vmatpush1.bf16.msra.mxu0 0
      %559 = vmatprep.subr.bf16.mxu0 0
      %560 = vmatpush1.bf16.msra.mxu0 0
      %561 = vmatprep.subr.bf16.mxu0 0
      %562 = vmatpush1.bf16.msra.mxu0 0
      %563 = vmatprep.subr.bf16.mxu0 0
      %564 = vmatpush1.bf16.msra.mxu0 0
      %565 = vmatprep.subr.bf16.mxu0 0
      %566 = vmatpush1.bf16.msra.mxu0 0
      %567 = vmatprep.subr.bf16.mxu0 0
      %568 = vmatpush1.bf16.msra.mxu0 0
      %569 = vmatprep.subr.bf16.mxu0 0
      %570 = vmatpush1.bf16.msra.mxu0 0
      %571 = vmatprep.subr.bf16.mxu0 0
      %572 = vmatpush1.bf16.msra.mxu0 0
      %573 = vmatprep.subr.bf16.mxu0 0
      %574 = vmatpush1.bf16.msra.mxu0 0
      %575 = vmatprep.subr.bf16.mxu0 0
      %576 = vmatpush1.bf16.msra.mxu0 0
      %577 = vmatprep.mubr.bf16.mxu0 0
      %578 = vmatmul.mubr.bf16.gmra.mrb[0].mxu0 %v543
      %v579 = vpop.f32.mrb[0].mxu0
      %v580 = vadd.f32 %v528, %v579
      %v581 = vpop.f32.mrb[0].mxu0
      %v582 = vpop.f32.mrb[0].mxu0
      %v583 = vpop.f32.mrb[0].mxu0
      %584 = vdwg.mxu0
      %v585 = vld [vmem:[%s439] sm:$0x3]
      %vm586 = vnez %v585
      %v587 = vpack.c.bf16 %v514, %v514
      %v588 = vpack.c.bf16 %v580, %v580
      %vm589 = vcmask 64512
      %v591 = vsel %vm589, %v587, 0
      %v594 = vsel %vm589, %v588, 0
      %596 = vmatprep.subr.bf16.mxu0 0
      %597 = vmatpush1.bf16.xpose.msra.mxu0 %v594
      %598 = vmatprep.subr.bf16.mxu0 0
      %599 = vmatpush1.bf16.xpose.msra.mxu0 0
      %600 = vmatprep.subr.bf16.mxu0 0
      %601 = vmatpush1.bf16.xpose.msra.mxu0 0
      %602 = vmatprep.subr.bf16.mxu0 0
      %603 = vmatpush1.bf16.xpose.msra.mxu0 0
      %604 = vmatprep.subr.bf16.mxu0 0
      %605 = vmatpush1.bf16.xpose.msra.mxu0 0
      %606 = vmatprep.subr.bf16.mxu0 0
      %607 = vmatpush1.bf16.xpose.msra.mxu0 0
      %608 = vmatprep.subr.bf16.mxu0 0
      %609 = vmatpush1.bf16.xpose.msra.mxu0 0
      %610 = vmatprep.subr.bf16.mxu0 0
      %611 = vmatpush1.bf16.xpose.msra.mxu0 0
      %612 = vmatprep.subr.bf16.mxu0 0
      %613 = vmatpush1.bf16.xpose.msra.mxu0 0
      %614 = vmatprep.subr.bf16.mxu0 0
      %615 = vmatpush1.bf16.xpose.msra.mxu0 0
      %616 = vmatprep.subr.bf16.mxu0 0
      %617 = vmatpush1.bf16.xpose.msra.mxu0 0
      %618 = vmatprep.subr.bf16.mxu0 0
      %619 = vmatpush1.bf16.xpose.msra.mxu0 0
      %620 = vmatprep.subr.bf16.mxu0 0
      %621 = vmatpush1.bf16.xpose.msra.mxu0 0
      %622 = vmatprep.subr.bf16.mxu0 0
      %623 = vmatpush1.bf16.xpose.msra.mxu0 0
      %624 = vmatprep.subr.bf16.mxu0 0
      %625 = vmatpush1.bf16.xpose.msra.mxu0 0
      %626 = vmatprep.subr.bf16.mxu0 0
      %627 = vmatpush1.bf16.xpose.msra.mxu0 0
      %628 = vmatprep.mubr.bf16.mxu0 0
      %629 = vmatmul.mubr.bf16.gmra.mrb[0].mxu0 %v591
      %v630 = vpop.f32.mrb[0].mxu0
      %v631 = vadd.f32 0.0, %v630
      %v632 = vpop.f32.mrb[0].mxu0
      %v633 = vpop.f32.mrb[0].mxu0
      %v634 = vpop.f32.mrb[0].mxu0
      %635 = vdwg.mxu0
      %v636 = vsel %vm586, 16843009, 0
      %v637 = vunpack.c.0.s8 %v636
      %vm638 = vcmp.ne.s32.totalorder %v637, 0
      %v639 = vsel %vm638, %v631, -1e+09
      %v640 = vsel %vm589, %v639, -inf
      %641 = vmax.xlane.f32.xlu0 %v640
      %v642 = vpop.xlane.xlu0 %641
      %v643 = vsub.f32 %v639, %v642
      %v644 = vmul.f32 %v643, 1.442695
      %v645 = vpow.pop %v644
      %v646 = vsel %vm589, %v645, 0.0
      %647 = vadd.xlane.f32.xlu0 %v646
      %v648 = vpop.xlane.xlu0 %647
      %v649 = vmax.f32 %v648, 1e-30
      %v650 = vrcp.pop %v649
      %v651 = vmul.f32 %v645, %v650
      %v652 = vpack.c.bf16 %v651, %v651
      %654 = vrot.lane.b32.xlu0 %v588, 96
      %v655 = vpop.permute.xlu0 %654
      %v657 = vsel %vm589, %v652, 0
      %vm659 = vcmask 1043456
      %v661 = vsel %vm659, %v655, 0
      %663 = vmatprep.subr.bf16.mxu0 0
      %664 = vmatpush1.bf16.msra.mxu0 %v661
      %665 = vmatprep.subr.bf16.mxu0 0
      %666 = vmatpush1.bf16.msra.mxu0 0
      %667 = vmatprep.subr.bf16.mxu0 0
      %668 = vmatpush1.bf16.msra.mxu0 0
      %669 = vmatprep.subr.bf16.mxu0 0
      %670 = vmatpush1.bf16.msra.mxu0 0
      %671 = vmatprep.subr.bf16.mxu0 0
      %672 = vmatpush1.bf16.msra.mxu0 0
      %673 = vmatprep.subr.bf16.mxu0 0
      %674 = vmatpush1.bf16.msra.mxu0 0
      %675 = vmatprep.subr.bf16.mxu0 0
      %676 = vmatpush1.bf16.msra.mxu0 0
      %677 = vmatprep.subr.bf16.mxu0 0
      %678 = vmatpush1.bf16.msra.mxu0 0
      %679 = vmatprep.subr.bf16.mxu0 0
      %680 = vmatpush1.bf16.msra.mxu0 0
      %681 = vmatprep.subr.bf16.mxu0 0
      %682 = vmatpush1.bf16.msra.mxu0 0
      %683 = vmatprep.subr.bf16.mxu0 0
      %684 = vmatpush1.bf16.msra.mxu0 0
      %685 = vmatprep.subr.bf16.mxu0 0
      %686 = vmatpush1.bf16.msra.mxu0 0
      %687 = vmatprep.subr.bf16.mxu0 0
      %688 = vmatpush1.bf16.msra.mxu0 0
      %689 = vmatprep.subr.bf16.mxu0 0
      %690 = vmatpush1.bf16.msra.mxu0 0
      %691 = vmatprep.subr.bf16.mxu0 0
      %692 = vmatpush1.bf16.msra.mxu0 0
      %693 = vmatprep.subr.bf16.mxu0 0
      %694 = vmatpush1.bf16.msra.mxu0 0
      %695 = vmatprep.mubr.bf16.mxu0 0
      %696 = vmatmul.mubr.bf16.gmra.mrb[0].mxu0 %v657
      %v697 = vpop.f32.mrb[0].mxu0
      %v698 = vadd.f32 0.0, %v697
      %v699 = vpop.f32.mrb[0].mxu0
      %v700 = vpop.f32.mrb[0].mxu0
      %v701 = vpop.f32.mrb[0].mxu0
      %702 = vdwg.mxu0
      %703 = vst.msk [vmem:[#allocation2] sm:$0xff] %vm589, %v698
      %705 = vrot.lane.b32.xlu0 %v587, 120
      %v706 = vpop.permute.xlu0 %705
      %707 = vrot.lane.b32.xlu0 %v588, 120
      %v708 = vpop.permute.xlu0 %707
      %v710 = vsel %vm589, %v706, 0
      %v713 = vsel %vm589, %v708, 0
      %715 = vmatprep.subr.bf16.mxu0 0
      %716 = vmatpush1.bf16.xpose.msra.mxu0 %v713
      %717 = vmatprep.subr.bf16.mxu0 0
      %718 = vmatpush1.bf16.xpose.msra.mxu0 0
      %719 = vmatprep.subr.bf16.mxu0 0
      %720 = vmatpush1.bf16.xpose.msra.mxu0 0
      %721 = vmatprep.subr.bf16.mxu0 0
      %722 = vmatpush1.bf16.xpose.msra.mxu0 0
      %723 = vmatprep.subr.bf16.mxu0 0
      %724 = vmatpush1.bf16.xpose.msra.mxu0 0
      %725 = vmatprep.subr.bf16.mxu0 0
      %726 = vmatpush1.bf16.xpose.msra.mxu0 0
      %727 = vmatprep.subr.bf16.mxu0 0
      %728 = vmatpush1.bf16.xpose.msra.mxu0 0
      %729 = vmatprep.subr.bf16.mxu0 0
      %730 = vmatpush1.bf16.xpose.msra.mxu0 0
      %731 = vmatprep.subr.bf16.mxu0 0
      %732 = vmatpush1.bf16.xpose.msra.mxu0 0
      %733 = vmatprep.subr.bf16.mxu0 0
      %734 = vmatpush1.bf16.xpose.msra.mxu0 0
      %735 = vmatprep.subr.bf16.mxu0 0
      %736 = vmatpush1.bf16.xpose.msra.mxu0 0
      %737 = vmatprep.subr.bf16.mxu0 0
      %738 = vmatpush1.bf16.xpose.msra.mxu0 0
      %739 = vmatprep.subr.bf16.mxu0 0
      %740 = vmatpush1.bf16.xpose.msra.mxu0 0
      %741 = vmatprep.subr.bf16.mxu0 0
      %742 = vmatpush1.bf16.xpose.msra.mxu0 0
      %743 = vmatprep.subr.bf16.mxu0 0
      %744 = vmatpush1.bf16.xpose.msra.mxu0 0
      %745 = vmatprep.subr.bf16.mxu0 0
      %746 = vmatpush1.bf16.xpose.msra.mxu0 0
      %747 = vmatprep.mubr.bf16.mxu0 0
      %748 = vmatmul.mubr.bf16.gmra.mrb[0].mxu0 %v710
      %v749 = vpop.f32.mrb[0].mxu0
      %v750 = vadd.f32 0.0, %v749
      %v751 = vpop.f32.mrb[0].mxu0
      %v752 = vpop.f32.mrb[0].mxu0
      %v753 = vpop.f32.mrb[0].mxu0
      %754 = vdwg.mxu0
      %v755 = vsel %vm638, %v750, -1e+09
      %v756 = vsel %vm589, %v755, -inf
      %757 = vmax.xlane.f32.xlu0 %v756
      %v758 = vpop.xlane.xlu0 %757
      %v759 = vsub.f32 %v755, %v758
      %v760 = vmul.f32 %v759, 1.442695
      %v761 = vpow.pop %v760
      %v762 = vsel %vm589, %v761, 0.0
      %763 = vadd.xlane.f32.xlu0 %v762
      %v764 = vpop.xlane.xlu0 %763
      %v765 = vmax.f32 %v764, 1e-30
      %v766 = vrcp.pop %v765
      %v767 = vmul.f32 %v761, %v766
      %v768 = vpack.c.bf16 %v767, %v767
      %769 = vrot.lane.b32.xlu0 %v588, 88
      %v770 = vpop.permute.xlu0 %769
      %v772 = vsel %vm589, %v768, 0
      %v775 = vsel %vm659, %v770, 0
      %777 = vmatprep.subr.bf16.mxu0 0
      %778 = vmatpush1.bf16.msra.mxu0 %v775
      %779 = vmatprep.subr.bf16.mxu0 0
      %780 = vmatpush1.bf16.msra.mxu0 0
      %781 = vmatprep.subr.bf16.mxu0 0
      %782 = vmatpush1.bf16.msra.mxu0 0
      %783 = vmatprep.subr.bf16.mxu0 0
      %784 = vmatpush1.bf16.msra.mxu0 0
      %785 = vmatprep.subr.bf16.mxu0 0
      %786 = vmatpush1.bf16.msra.mxu0 0
      %787 = vmatprep.subr.bf16.mxu0 0
      %788 = vmatpush1.bf16.msra.mxu0 0
      %789 = vmatprep.subr.bf16.mxu0 0
      %790 = vmatpush1.bf16.msra.mxu0 0
      %791 = vmatprep.subr.bf16.mxu0 0
      %792 = vmatpush1.bf16.msra.mxu0 0
      %793 = vmatprep.subr.bf16.mxu0 0
      %794 = vmatpush1.bf16.msra.mxu0 0
      %795 = vmatprep.subr.bf16.mxu0 0
      %796 = vmatpush1.bf16.msra.mxu0 0
      %797 = vmatprep.subr.bf16.mxu0 0
      %798 = vmatpush1.bf16.msra.mxu0 0
      %799 = vmatprep.subr.bf16.mxu0 0
      %800 = vmatpush1.bf16.msra.mxu0 0
      %801 = vmatprep.subr.bf16.mxu0 0
      %802 = vmatpush1.bf16.msra.mxu0 0
      %803 = vmatprep.subr.bf16.mxu0 0
      %804 = vmatpush1.bf16.msra.mxu0 0
      %805 = vmatprep.subr.bf16.mxu0 0
      %806 = vmatpush1.bf16.msra.mxu0 0
      %807 = vmatprep.subr.bf16.mxu0 0
      %808 = vmatpush1.bf16.msra.mxu0 0
      %809 = vmatprep.mubr.bf16.mxu0 0
      %810 = vmatmul.mubr.bf16.gmra.mrb[0].mxu0 %v772
      %v811 = vpop.f32.mrb[0].mxu0
      %v812 = vadd.f32 0.0, %v811
      %v813 = vpop.f32.mrb[0].mxu0
      %v814 = vpop.f32.mrb[0].mxu0
      %v815 = vpop.f32.mrb[0].mxu0
      %816 = vdwg.mxu0
      %818 = vrot.lane.b32.xlu0 %v812, 8
      %v819 = vpop.permute.xlu0 %818
      %vm821 = vcmask 130112
      %822 = vst.msk [vmem:[#allocation2] sm:$0xff] %vm821, %v819
      %823 = vrot.lane.b32.xlu0 %v587, 112
      %v824 = vpop.permute.xlu0 %823
      %825 = vrot.lane.b32.xlu0 %v588, 112
      %v826 = vpop.permute.xlu0 %825
      %v828 = vsel %vm589, %v824, 0
      %v831 = vsel %vm589, %v826, 0
      %833 = vmatprep.subr.bf16.mxu0 0
      %834 = vmatpush1.bf16.xpose.msra.mxu0 %v831
      %835 = vmatprep.subr.bf16.mxu0 0
      %836 = vmatpush1.bf16.xpose.msra.mxu0 0
      %837 = vmatprep.subr.bf16.mxu0 0
      %838 = vmatpush1.bf16.xpose.msra.mxu0 0
      %839 = vmatprep.subr.bf16.mxu0 0
      %840 = vmatpush1.bf16.xpose.msra.mxu0 0
      %841 = vmatprep.subr.bf16.mxu0 0
      %842 = vmatpush1.bf16.xpose.msra.mxu0 0
      %843 = vmatprep.subr.bf16.mxu0 0
      %844 = vmatpush1.bf16.xpose.msra.mxu0 0
      %845 = vmatprep.subr.bf16.mxu0 0
      %846 = vmatpush1.bf16.xpose.msra.mxu0 0
      %847 = vmatprep.subr.bf16.mxu0 0
      %848 = vmatpush1.bf16.xpose.msra.mxu0 0
      %849 = vmatprep.subr.bf16.mxu0 0
      %850 = vmatpush1.bf16.xpose.msra.mxu0 0
      %851 = vmatprep.subr.bf16.mxu0 0
      %852 = vmatpush1.bf16.xpose.msra.mxu0 0
      %853 = vmatprep.subr.bf16.mxu0 0
      %854 = vmatpush1.bf16.xpose.msra.mxu0 0
      %855 = vmatprep.subr.bf16.mxu0 0
      %856 = vmatpush1.bf16.xpose.msra.mxu0 0
      %857 = vmatprep.subr.bf16.mxu0 0
      %858 = vmatpush1.bf16.xpose.msra.mxu0 0
      %859 = vmatprep.subr.bf16.mxu0 0
      %860 = vmatpush1.bf16.xpose.msra.mxu0 0
      %861 = vmatprep.subr.bf16.mxu0 0
      %862 = vmatpush1.bf16.xpose.msra.mxu0 0
      %863 = vmatprep.subr.bf16.mxu0 0
      %864 = vmatpush1.bf16.xpose.msra.mxu0 0
      %865 = vmatprep.mubr.bf16.mxu0 0
      %866 = vmatmul.mubr.bf16.gmra.mrb[0].mxu0 %v828
      %v867 = vpop.f32.mrb[0].mxu0
      %v868 = vadd.f32 0.0, %v867
      %v869 = vpop.f32.mrb[0].mxu0
      %v870 = vpop.f32.mrb[0].mxu0
      %v871 = vpop.f32.mrb[0].mxu0
      %872 = vdwg.mxu0
      %v873 = vsel %vm638, %v868, -1e+09
      %v874 = vsel %vm589, %v873, -inf
      %875 = vmax.xlane.f32.xlu0 %v874
      %v876 = vpop.xlane.xlu0 %875
      %v877 = vsub.f32 %v873, %v876
      %v878 = vmul.f32 %v877, 1.442695
      %v879 = vpow.pop %v878
      %v880 = vsel %vm589, %v879, 0.0
      %881 = vadd.xlane.f32.xlu0 %v880
      %v882 = vpop.xlane.xlu0 %881
      %v883 = vmax.f32 %v882, 1e-30
      %v884 = vrcp.pop %v883
      %v885 = vmul.f32 %v879, %v884
      %v886 = vpack.c.bf16 %v885, %v885
      %887 = vrot.lane.b32.xlu0 %v588, 80
      %v888 = vpop.permute.xlu0 %887
      %v890 = vsel %vm589, %v886, 0
      %v893 = vsel %vm659, %v888, 0
      %895 = vmatprep.subr.bf16.mxu0 0
      %896 = vmatpush1.bf16.msra.mxu0 %v893
      %897 = vmatprep.subr.bf16.mxu0 0
      %898 = vmatpush1.bf16.msra.mxu0 0
      %899 = vmatprep.subr.bf16.mxu0 0
      %900 = vmatpush1.bf16.msra.mxu0 0
      %901 = vmatprep.subr.bf16.mxu0 0
      %902 = vmatpush1.bf16.msra.mxu0 0
      %903 = vmatprep.subr.bf16.mxu0 0
      %904 = vmatpush1.bf16.msra.mxu0 0
      %905 = vmatprep.subr.bf16.mxu0 0
      %906 = vmatpush1.bf16.msra.mxu0 0
      %907 = vmatprep.subr.bf16.mxu0 0
      %908 = vmatpush1.bf16.msra.mxu0 0
      %909 = vmatprep.subr.bf16.mxu0 0
      %910 = vmatpush1.bf16.msra.mxu0 0
      %911 = vmatprep.subr.bf16.mxu0 0
      %912 = vmatpush1.bf16.msra.mxu0 0
      %913 = vmatprep.subr.bf16.mxu0 0
      %914 = vmatpush1.bf16.msra.mxu0 0
      %915 = vmatprep.subr.bf16.mxu0 0
      %916 = vmatpush1.bf16.msra.mxu0 0
      %917 = vmatprep.subr.bf16.mxu0 0
      %918 = vmatpush1.bf16.msra.mxu0 0
      %919 = vmatprep.subr.bf16.mxu0 0
      %920 = vmatpush1.bf16.msra.mxu0 0
      %921 = vmatprep.subr.bf16.mxu0 0
      %922 = vmatpush1.bf16.msra.mxu0 0
      %923 = vmatprep.subr.bf16.mxu0 0
      %924 = vmatpush1.bf16.msra.mxu0 0
      %925 = vmatprep.subr.bf16.mxu0 0
      %926 = vmatpush1.bf16.msra.mxu0 0
      %927 = vmatprep.mubr.bf16.mxu0 0
      %928 = vmatmul.mubr.bf16.gmra.mrb[0].mxu0 %v890
      %v929 = vpop.f32.mrb[0].mxu0
      %v930 = vadd.f32 0.0, %v929
      %v931 = vpop.f32.mrb[0].mxu0
      %v932 = vpop.f32.mrb[0].mxu0
      %v933 = vpop.f32.mrb[0].mxu0
      %934 = vdwg.mxu0
      %936 = vrot.lane.b32.xlu0 %v930, 16
      %v937 = vpop.permute.xlu0 %936
      %vm939 = vcmask 195712
      %940 = vst.msk [vmem:[#allocation2] sm:$0xff] %vm939, %v937
      %941 = vrot.lane.b32.xlu0 %v587, 104
      %v942 = vpop.permute.xlu0 %941
      %943 = vrot.lane.b32.xlu0 %v588, 104
      %v944 = vpop.permute.xlu0 %943
      %v946 = vsel %vm589, %v942, 0
      %v949 = vsel %vm589, %v944, 0
      %951 = vmatprep.subr.bf16.mxu0 0
      %952 = vmatpush1.bf16.xpose.msra.mxu0 %v949
      %953 = vmatprep.subr.bf16.mxu0 0
      %954 = vmatpush1.bf16.xpose.msra.mxu0 0
      %955 = vmatprep.subr.bf16.mxu0 0
      %956 = vmatpush1.bf16.xpose.msra.mxu0 0
      %957 = vmatprep.subr.bf16.mxu0 0
      %958 = vmatpush1.bf16.xpose.msra.mxu0 0
      %959 = vmatprep.subr.bf16.mxu0 0
      %960 = vmatpush1.bf16.xpose.msra.mxu0 0
      %961 = vmatprep.subr.bf16.mxu0 0
      %962 = vmatpush1.bf16.xpose.msra.mxu0 0
      %963 = vmatprep.subr.bf16.mxu0 0
      %964 = vmatpush1.bf16.xpose.msra.mxu0 0
      %965 = vmatprep.subr.bf16.mxu0 0
      %966 = vmatpush1.bf16.xpose.msra.mxu0 0
      %967 = vmatprep.subr.bf16.mxu0 0
      %968 = vmatpush1.bf16.xpose.msra.mxu0 0
      %969 = vmatprep.subr.bf16.mxu0 0
      %970 = vmatpush1.bf16.xpose.msra.mxu0 0
      %971 = vmatprep.subr.bf16.mxu0 0
      %972 = vmatpush1.bf16.xpose.msra.mxu0 0
      %973 = vmatprep.subr.bf16.mxu0 0
      %974 = vmatpush1.bf16.xpose.msra.mxu0 0
      %975 = vmatprep.subr.bf16.mxu0 0
      %976 = vmatpush1.bf16.xpose.msra.mxu0 0
      %977 = vmatprep.subr.bf16.mxu0 0
      %978 = vmatpush1.bf16.xpose.msra.mxu0 0
      %979 = vmatprep.subr.bf16.mxu0 0
      %980 = vmatpush1.bf16.xpose.msra.mxu0 0
      %981 = vmatprep.subr.bf16.mxu0 0
      %982 = vmatpush1.bf16.xpose.msra.mxu0 0
      %983 = vmatprep.mubr.bf16.mxu0 0
      %984 = vmatmul.mubr.bf16.gmra.mrb[0].mxu0 %v946
      %v985 = vpop.f32.mrb[0].mxu0
      %v986 = vadd.f32 0.0, %v985
      %v987 = vpop.f32.mrb[0].mxu0
      %v988 = vpop.f32.mrb[0].mxu0
      %v989 = vpop.f32.mrb[0].mxu0
      %990 = vdwg.mxu0
      %v991 = vsel %vm638, %v986, -1e+09
      %v992 = vsel %vm589, %v991, -inf
      %993 = vmax.xlane.f32.xlu0 %v992
      %v994 = vpop.xlane.xlu0 %993
      %v995 = vsub.f32 %v991, %v994
      %v996 = vmul.f32 %v995, 1.442695
      %v997 = vpow.pop %v996
      %v998 = vsel %vm589, %v997, 0.0
      %999 = vadd.xlane.f32.xlu0 %v998
      %v1000 = vpop.xlane.xlu0 %999
      %v1001 = vmax.f32 %v1000, 1e-30
      %v1002 = vrcp.pop %v1001
      %v1003 = vmul.f32 %v997, %v1002
      %v1004 = vpack.c.bf16 %v1003, %v1003
      %1005 = vrot.lane.b32.xlu0 %v588, 72
      %v1006 = vpop.permute.xlu0 %1005
      %v1008 = vsel %vm589, %v1004, 0
      %v1011 = vsel %vm659, %v1006, 0
      %1013 = vmatprep.subr.bf16.mxu0 0
      %1014 = vmatpush1.bf16.msra.mxu0 %v1011
      %1015 = vmatprep.subr.bf16.mxu0 0
      %1016 = vmatpush1.bf16.msra.mxu0 0
      %1017 = vmatprep.subr.bf16.mxu0 0
      %1018 = vmatpush1.bf16.msra.mxu0 0
      %1019 = vmatprep.subr.bf16.mxu0 0
      %1020 = vmatpush1.bf16.msra.mxu0 0
      %1021 = vmatprep.subr.bf16.mxu0 0
      %1022 = vmatpush1.bf16.msra.mxu0 0
      %1023 = vmatprep.subr.bf16.mxu0 0
      %1024 = vmatpush1.bf16.msra.mxu0 0
      %1025 = vmatprep.subr.bf16.mxu0 0
      %1026 = vmatpush1.bf16.msra.mxu0 0
      %1027 = vmatprep.subr.bf16.mxu0 0
      %1028 = vmatpush1.bf16.msra.mxu0 0
      %1029 = vmatprep.subr.bf16.mxu0 0
      %1030 = vmatpush1.bf16.msra.mxu0 0
      %1031 = vmatprep.subr.bf16.mxu0 0
      %1032 = vmatpush1.bf16.msra.mxu0 0
      %1033 = vmatprep.subr.bf16.mxu0 0
      %1034 = vmatpush1.bf16.msra.mxu0 0
      %1035 = vmatprep.subr.bf16.mxu0 0
      %1036 = vmatpush1.bf16.msra.mxu0 0
      %1037 = vmatprep.subr.bf16.mxu0 0
      %1038 = vmatpush1.bf16.msra.mxu0 0
      %1039 = vmatprep.subr.bf16.mxu0 0
      %1040 = vmatpush1.bf16.msra.mxu0 0
      %1041 = vmatprep.subr.bf16.mxu0 0
      %1042 = vmatpush1.bf16.msra.mxu0 0
      %1043 = vmatprep.subr.bf16.mxu0 0
      %1044 = vmatpush1.bf16.msra.mxu0 0
      %1045 = vmatprep.mubr.bf16.mxu0 0
      %1046 = vmatmul.mubr.bf16.gmra.mrb[0].mxu0 %v1008
      %v1047 = vpop.f32.mrb[0].mxu0
      %v1048 = vadd.f32 0.0, %v1047
      %v1049 = vpop.f32.mrb[0].mxu0
      %v1050 = vpop.f32.mrb[0].mxu0
      %v1051 = vpop.f32.mrb[0].mxu0
      %1052 = vdwg.mxu0
      %1054 = vrot.lane.b32.xlu0 %v1048, 24
      %v1055 = vpop.permute.xlu0 %1054
      %vm1057 = vcmask 261312
      %1058 = vst.msk [vmem:[#allocation2] sm:$0xff] %vm1057, %v1055
      %v1059 = vld [vmem:[#allocation2] sm:$0xff]
      %v1060 = vpack.c.bf16 %v1059, %v1059
      %v1061 = vld [vmem:[%s7] sm:$0xf]
      %v1062 = vld [vmem:[%s7 + $0x4] sm:$0xf]
      %v1063 = vld [vmem:[%s7 + $0x8] sm:$0xf]
      %v1064 = vld [vmem:[%s7 + $0xc] sm:$0xf]
      %v1065 = vld [vmem:[%s8] sm:$0x1]
      %v1067 = vlaneseq
      %v1068 = vshrl.u32 %v1067, 7
      %v1069 = vsub.s32 0, %v1068
      %v1070 = vrot.slane %v1065, %v1069
      %v1076 = vunpack.c.l.b16 %v1061
      %v1077 = vunpack.c.l.b16 %v1062
      %v1078 = vunpack.c.l.b16 %v1063
      %v1079 = vunpack.c.l.b16 %v1064
      %v1080 = vpack.c.b16 %v1077, %v1076
      %v1081 = vpack.c.b16 %v1079, %v1078
      %v1085 = vsel %vm475, %v1060, 0
      %1087 = vmatprep.subr.bf16.mxu0 0
      %1088 = vmatpush1.bf16.msra.mxu0 %v1080
      %1089 = vmatprep.subr.bf16.mxu0 0
      %1090 = vmatpush1.bf16.msra.mxu0 %v1081
      %1091 = vmatprep.subr.bf16.mxu0 0
      %1092 = vmatpush1.bf16.msra.mxu0 0
      %1093 = vmatprep.subr.bf16.mxu0 0
      %1094 = vmatpush1.bf16.msra.mxu0 0
      %1095 = vmatprep.subr.bf16.mxu0 0
      %1096 = vmatpush1.bf16.msra.mxu0 0
      %1097 = vmatprep.subr.bf16.mxu0 0
      %1098 = vmatpush1.bf16.msra.mxu0 0
      %1099 = vmatprep.subr.bf16.mxu0 0
      %1100 = vmatpush1.bf16.msra.mxu0 0
      %1101 = vmatprep.subr.bf16.mxu0 0
      %1102 = vmatpush1.bf16.msra.mxu0 0
      %1103 = vmatprep.subr.bf16.mxu0 0
      %1104 = vmatpush1.bf16.msra.mxu0 0
      %1105 = vmatprep.subr.bf16.mxu0 0
      %1106 = vmatpush1.bf16.msra.mxu0 0
      %1107 = vmatprep.subr.bf16.mxu0 0
      %1108 = vmatpush1.bf16.msra.mxu0 0
      %1109 = vmatprep.subr.bf16.mxu0 0
      %1110 = vmatpush1.bf16.msra.mxu0 0
      %1111 = vmatprep.subr.bf16.mxu0 0
      %1112 = vmatpush1.bf16.msra.mxu0 0
      %1113 = vmatprep.subr.bf16.mxu0 0
      %1114 = vmatpush1.bf16.msra.mxu0 0
      %1115 = vmatprep.subr.bf16.mxu0 0
      %1116 = vmatpush1.bf16.msra.mxu0 0
      %1117 = vmatprep.subr.bf16.mxu0 0
      %1118 = vmatpush1.bf16.msra.mxu0 0
      %1119 = vmatprep.mubr.bf16.mxu0 0
      %1120 = vmatmul.mubr.bf16.gmra.mrb[0].mxu0 %v1085
      %v1121 = vpop.f32.mrb[0].mxu0
      %v1122 = vadd.f32 %v1070, %v1121
      %v1123 = vpop.f32.mrb[0].mxu0
      %v1124 = vpop.f32.mrb[0].mxu0
      %v1125 = vpop.f32.mrb[0].mxu0
      %1126 = vdwg.mxu0
      %v1127 = vunpack.c.l.bf16 %v450
      %v1128 = vadd.f32 %v1127, %v1122
      %v1129 = vsel %vm475, %v1128, 0.0
      %1130 = vadd.xlane.f32.xlu0 %v1129
      %v1131 = vpop.xlane.xlu0 %1130
      %v1132 = vrcp.pop 32.0
      %v1133 = vmul.f32 %v1131, %v1132
      %v1134 = vsub.f32 %v1128, %v1133
      %v1135 = vmul.f32 %v1134, %v1134
      %v1136 = vsel %vm475, %v1135, 0.0
      %1137 = vadd.xlane.f32.xlu0 %v1136
      %v1138 = vpop.xlane.xlu0 %1137
      %v1139 = vmul.f32 %v1138, %v1132
      %v1140 = vadd.f32 %v1139, 1e-05
      %v1141 = vrsqrt.pop %v1140
      %v1142 = vmul.f32 %v1134, %v1141
      %v1143 = vld [vmem:[%s9] sm:$0x1]
      %v1145 = vlaneseq
      %v1146 = vshrl.u32 %v1145, 7
      %v1147 = vsub.s32 0, %v1146
      %v1148 = vrot.slane %v1143, %v1147
      %v1150 = vmul.f32 %v1142, %v1148
      %v1151 = vld [vmem:[%s10] sm:$0x1]
      %v1153 = vlaneseq
      %v1154 = vshrl.u32 %v1153, 7
      %v1155 = vsub.s32 0, %v1154
      %v1156 = vrot.slane %v1151, %v1155
      %v1158 = vadd.f32 %v1150, %v1156
      %v1159 = vpack.c.bf16 %v1158, %v1158
      %vm1160 = vcmask 257024
      %1161 = vst.msk [vmem:[%s446] sm:$0xf] %vm1160, %v1159
      %p1162 = scmp.lt.s32.totalorder %s26, 1
      %s1163 = scalar_select %p1162, %s26, 1
      %p1164 = scmp.lt.s32.totalorder %s27, 0
      %s1165 = scalar_select %p1164, %s27, 0
      %s1166 = sadd.s32 %s1165, %s1163
      %s1167 = smul.addr %s1166, 4
      %s1168 = scalar_lea.vmem %s11, %s1167
      // Predicated region
      $region65: #{transformer_decoder_forward.7} parent=63 // pred_check
        %p1169 = pneg %p302
      $region66: #{transformer_decoder_forward.7} parent=63 // pred_check_branch
        %1171 = sbr.rel (%p1169) target = $region68
      $region67: #{transformer_decoder_forward.7} parent=63 // pred_region
        _
      $region68: #{transformer_decoder_forward.7} parent=63 // pred_fallthru
        _
    $region64: #{transformer_decoder_forward.7} parent=5 // pred_fallthru
      _
    %p1172 = scmp.le.s32.totalorder 2, %s17
    // Predicated region
    $region69: #{transformer_decoder_forward.7} parent=5 // pred_check
      %p1173 = pneg %p1172
    $region70: #{transformer_decoder_forward.7} parent=5 // pred_check_branch
      %1175 = sbr.rel (%p1173) target = $region72
    $region71: #{transformer_decoder_forward.7} parent=5 // pred_region
      %s1176 = ssub.s32 %s17, 2
      // Predicated region
      $region73: #{transformer_decoder_forward.7} parent=71 // pred_check
        %p1177 = pneg %p308
      $region74: #{transformer_decoder_forward.7} parent=71 // pred_check_branch
        %1179 = sbr.rel (%p1177) target = $region76
      $region75: #{transformer_decoder_forward.7} parent=71 // pred_region
        %p1180 = scmp.lt.s32.totalorder %s28, 1
        %s1181 = scalar_select %p1180, %s28, 1
        %p1182 = scmp.lt.s32.totalorder %s29, 0
        %s1183 = scalar_select %p1182, %s29, 0
        %s1184 = sadd.s32 %s1183, %s1181
        %s1185 = smul.addr %s1184, 4
        %s1186 = scalar_lea.vmem %s11, %s1185
      $region76: #{transformer_decoder_forward.7} parent=71 // pred_fallthru
        _
    $region72: #{transformer_decoder_forward.7} parent=5 // pred_fallthru
      _
  $region6: #{transformer_decoder_forward.7} parent=0 // loop_footer
    %s21 = sadd.s32 1, %s17
  $region7: #{transformer_decoder_forward.7} parent=0 // loop_footer_branch
    %16 = sbr.rel target = $region3
  $region8: #{transformer_decoder_forward.7} parent=0 // loop_exit
    _

</llo_original>
